<compile_context>
chip_gen: v7x
topology: tpu7x:2x2x1
jax: 0.10.0
libtpu: 0.0.40
codegen_flags: <defaults>
</compile_context>

<pallas_src>
import functools

import numpy as np
import jax
import jax.numpy as jnp
from jax import lax
from jax.experimental import pallas as pl
from jax.experimental.pallas import tpu as pltpu


# ----------------------------------------------------------------------------
# Fused kernel: whole forward pass for one batch tile, activations in VMEM.
#   p_ref : (64, TB, 256) bf16   patches; dim0 = (pool member*16 + 4x4 pos)
#   o_ref : (TB, 256)     f32    decoded 16x16x1 image per sample
# ----------------------------------------------------------------------------
def _fused_autoencoder_kernel(p_ref, w1_ref, b1_ref, w2_ref, b2_ref,
                              mt1_ref, bt1_ref, mt2_ref, bt2_ref,
                              mt3_ref, bt3_ref, o_ref):
    f32 = jnp.float32
    tb = o_ref.shape[0]                       # batch tile (multiple of 16)

    # --- encoder: Conv2d(4,64,8,s8) + ReLU + MaxPool2d(2,2), fused ----------
    # Single MXU weight load for all 4 pool members; 2x2 pool = elementwise
    # max of 4 static, tile-aligned row slabs.
    flat = p_ref[...].reshape(64 * tb, 256)                          # bf16
    m_all = jnp.dot(flat, w1_ref[...], preferred_element_type=f32)   # (64*tb, 64)
    m = m_all[0:16 * tb]
    for j in range(1, 4):
        m = jnp.maximum(m, m_all[j * 16 * tb:(j + 1) * 16 * tb])
    p1 = jnp.maximum(m + b1_ref[...], 0.0)      # (16*tb, 64), rows = (pos, n)

    # --- encoder: Conv2d(64,16,3) + ReLU + MaxPool2d(2,1), fused ------------
    # Each tap is a static row slab of p1 (free slice) + a (64,16) matmul.
    w2 = w2_ref[...]                            # (9, 64, 16)
    code = None
    for oh in range(2):                         # conv2 output position (2x2)
        for ow in range(2):
            acc = None
            for di in range(3):                 # 3x3 kernel taps
                for dj in range(3):
                    pos = (oh + di) * 4 + (ow + dj)
                    g = p1[pos * tb:(pos + 1) * tb]                  # (tb, 64)
                    d = jnp.dot(g, w2[di * 3 + dj],
                                preferred_element_type=f32)          # (tb, 16)
                    acc = d if acc is None else acc + d
            code = acc if code is None else jnp.maximum(code, acc)
    code = jnp.maximum(code + b2_ref[...], 0.0)  # (tb, 16)  encoder output

    # --- decoder: three dense per-sample matmuls (packed at init) -----------
    h = jnp.dot(code, mt1_ref[...], preferred_element_type=f32) + bt1_ref[...]
    h = jnp.maximum(h, 0.0)                      # (tb, 256) = (2, 2, 64)
    h = jnp.dot(h, mt2_ref[...], preferred_element_type=f32) + bt2_ref[...]
    h = jnp.maximum(h, 0.0)                      # (tb, 128) = (4, 4, 8)
    h = jnp.dot(h, mt3_ref[...], preferred_element_type=f32) + bt3_ref[...]
    o_ref[...] = jnp.tanh(h)                     # (tb, 256) = (16, 16, 1)


# ----------------------------------------------------------------------------
# Forward wrapper: im2col relayout + one batch-tiled pallas_call.
# ----------------------------------------------------------------------------
def forward_pallas(x_nchw, kp, tb=128):
    N = x_nchw.shape[0]
    # Batch tile: multiple of 16 (bf16 sublane packing), clamped to the batch.
    tb = max(16, min(int(tb), ((N + 15) // 16) * 16))
    tb = (tb // 16) * 16

    # conv1 (k=8, s=8) is non-overlapping -> im2col is a pure reshape+transpose.
    # Global patch layout: dim0 = (di*2+dj)*16 + (ph*4+pw), dim1 = sample,
    # dim2 = (c, kh, kw).  Streamed in bf16 to halve HBM traffic.
    p = x_nchw.reshape(N, 4, 4, 2, 8, 4, 2, 8)      # (n, c, ph, di, kh, pw, dj, kw)
    p = jnp.transpose(p, (3, 6, 2, 5, 0, 1, 4, 7))  # (di, dj, ph, pw, n, c, kh, kw)
    p = p.reshape(64, N, 256).astype(jnp.bfloat16)

    grid = (pl.cdiv(N, tb),)

    def full(*shape):
        return pl.BlockSpec(shape, lambda i, _s=len(shape): (0,) * _s)

    in_specs = [
        pl.BlockSpec((64, tb, 256), lambda i: (0, i, 0)),   # patches (streamed)
        full(256, 64), full(1, 64),                         # conv1
        full(9, 64, 16), full(1, 16),                       # conv2
        full(16, 256), full(1, 256),                        # convT1
        full(256, 128), full(1, 128),                       # convT2
        full(128, 256), full(1, 256),                       # convT3
    ]
    out_specs = pl.BlockSpec((tb, 256), lambda i: (i, 0))

    weight_keys = ("w1m", "b1", "w2t", "b2", "mt1", "bt1", "mt2", "bt2",
                   "mt3", "bt3")
    weight_bytes = sum(int(np.prod(kp[k].shape)) * kp[k].dtype.itemsize
                       for k in weight_keys)
    flops = 2 * N * (64 * 256 * 64 + 36 * 64 * 16
                     + 16 * 256 + 256 * 128 + 128 * 256)
    cost = pl.CostEstimate(
        flops=flops,
        transcendentals=N * 256,
        bytes_accessed=N * (64 * 256 * 2 + 256 * 4) + weight_bytes)

    out = pl.pallas_call(
        _fused_autoencoder_kernel,
        out_shape=jax.ShapeDtypeStruct((N, 256), jnp.float32),
        grid=grid,
        in_specs=in_specs,
        out_specs=out_specs,
        compiler_params=pltpu.CompilerParams(
            dimension_semantics=("parallel",),
            vmem_limit_bytes=64 * 1024 * 1024),
        cost_estimate=cost,
    )(p, kp["w1m"], kp["b1"], kp["w2t"], kp["b2"],
      kp["mt1"], kp["bt1"], kp["mt2"], kp["bt2"], kp["mt3"], kp["bt3"])
    return out.reshape(N, 1, 16, 16), 1


# ----------------------------------------------------------------------------
# Init-time weight packing (numpy, done ONCE, batch-size independent).
# ----------------------------------------------------------------------------
def pack_params(raw):
    f32 = np.float32
    w1 = np.asarray(raw["w1"]); b1 = np.asarray(raw["b1"])
    w2 = np.asarray(raw["w2"]); b2 = np.asarray(raw["b2"])
    wt1 = np.asarray(raw["wt1"]); bt1 = np.asarray(raw["bt1"])
    wt2 = np.asarray(raw["wt2"]); bt2 = np.asarray(raw["bt2"])
    wt3 = np.asarray(raw["wt3"]); bt3 = np.asarray(raw["bt3"])

    # conv1: (Cout,Cin,8,8) -> (c,kh,kw,co) -> (256, 64), matches patch cols.
    w1m = w1.transpose(1, 2, 3, 0).reshape(4 * 8 * 8, 64).astype(f32)
    b1r = b1.reshape(1, 64).astype(f32)

    # conv2 per-tap weights: (16,64,3,3) -> (kh,kw,c,co) -> (9, 64, 16)
    w2t = w2.transpose(2, 3, 1, 0).reshape(9, 64, 16).astype(f32)
    b2r = b2.reshape(1, 16).astype(f32)

    # convT1 (16->64, k=2, s=2) on 1x1 input: dense map (16, 2*2*64)
    mt1 = wt1.transpose(0, 2, 3, 1).reshape(16, 2 * 2 * 64).astype(f32)
    bt1r = np.tile(bt1, 4).reshape(1, 256).astype(f32)

    # convT2 (64->8, k=3, s=1): (2,2,64) -> (4,4,8) dense map (256, 128)
    mt2 = np.zeros((2 * 2 * 64, 4 * 4 * 8), f32)
    for ih in range(2):
        for iw in range(2):
            for oh in range(4):
                for ow in range(4):
                    kh, kw = oh - ih, ow - iw
                    if 0 <= kh < 3 and 0 <= kw < 3:
                        i0 = (ih * 2 + iw) * 64
                        j0 = (oh * 4 + ow) * 8
                        mt2[i0:i0 + 64, j0:j0 + 8] = wt2[:, :, kh, kw]
    bt2r = np.tile(bt2, 16).reshape(1, 128).astype(f32)

    # convT3 (8->1, k=10, s=2): (4,4,8) -> (16,16,1) dense map (128, 256)
    mt3 = np.zeros((4 * 4 * 8, 16 * 16), f32)
    for ih in range(4):
        for iw in range(4):
            for oh in range(16):
                for ow in range(16):
                    kh, kw = oh - 2 * ih, ow - 2 * iw
                    if 0 <= kh < 10 and 0 <= kw < 10:
                        i0 = (ih * 4 + iw) * 8
                        mt3[i0:i0 + 8, oh * 16 + ow] = wt3[:, 0, kh, kw]
    bt3r = np.full((1, 256), float(bt3[0]), f32)

    packed = dict(w1m=w1m, b1=b1r, w2t=w2t, b2=b2r,
                  mt1=mt1, bt1=bt1r, mt2=mt2, bt2=bt2r, mt3=mt3, bt3=bt3r)
    out = {k: jnp.asarray(v) for k, v in packed.items()}
    # conv1 weights ride the bf16 MXU path together with the bf16 patch stream.
    out["w1m"] = out["w1m"].astype(jnp.bfloat16)
    return out


# ----------------------------------------------------------------------------
# Deterministic parameter init (PyTorch default-style uniform bounds)
# ----------------------------------------------------------------------------
def init_params(key):
    def conv_init(k, cout, cin, kh, kw):
        bound = 1.0 / np.sqrt(cin * kh * kw)
        kw_, kb = jax.random.split(k)
        w = jax.random.uniform(kw_, (cout, cin, kh, kw), jnp.float32, -bound, bound)
        b = jax.random.uniform(kb, (cout,), jnp.float32, -bound, bound)
        return w, b

    def convt_init(k, cin, cout, kh, kw):
        bound = 1.0 / np.sqrt(cout * kh * kw)
        kw_, kb = jax.random.split(k)
        w = jax.random.uniform(kw_, (cin, cout, kh, kw), jnp.float32, -bound, bound)
        b = jax.random.uniform(kb, (cout,), jnp.float32, -bound, bound)
        return w, b

    ks = jax.random.split(key, 5)
    w1, b1 = conv_init(ks[0], 64, 4, 8, 8)
    w2, b2 = conv_init(ks[1], 16, 64, 3, 3)
    wt1, bt1 = convt_init(ks[2], 16, 64, 2, 2)
    wt2, bt2 = convt_init(ks[3], 64, 8, 3, 3)
    wt3, bt3 = convt_init(ks[4], 8, 1, 10, 10)
    return dict(w1=w1, b1=b1, w2=w2, b2=b2,
                wt1=wt1, bt1=bt1, wt2=wt2, bt2=bt2, wt3=wt3, bt3=bt3)


# ----------------------------------------------------------------------------
# Pure-JAX (XLA) reference for verification, NCHW exactly like PyTorch.
# ----------------------------------------------------------------------------
def _ref_conv(x, w, b, stride):
    y = lax.conv_general_dilated(x, w, (stride, stride), "VALID",
                                 dimension_numbers=("NCHW", "OIHW", "NCHW"),
                                 precision=lax.Precision.HIGHEST)
    return y + b[None, :, None, None]


def _ref_convt(x, w, b, stride):
    cin, cout, kh, kw = w.shape
    w_conv = jnp.flip(w, (2, 3)).transpose(1, 0, 2, 3)  # -> OIHW
    y = lax.conv_general_dilated(x, w_conv, (1, 1),
                                 padding=[(kh - 1, kh - 1), (kw - 1, kw - 1)],
                                 lhs_dilation=(stride, stride),
                                 dimension_numbers=("NCHW", "OIHW", "NCHW"),
                                 precision=lax.Precision.HIGHEST)
    return y + b[None, :, None, None]


def _ref_maxpool(x, k, s):
    return lax.reduce_window(x, -jnp.inf, lax.max, (1, 1, k, k), (1, 1, s, s), "VALID")


def forward_ref(x, p):
    x = jax.nn.relu(_ref_conv(x, p["w1"], p["b1"], 8))
    x = _ref_maxpool(x, 2, 2)
    x = jax.nn.relu(_ref_conv(x, p["w2"], p["b2"], 1))
    x = _ref_maxpool(x, 2, 1)
    x = jax.nn.relu(_ref_convt(x, p["wt1"], p["bt1"], 2))
    x = jax.nn.relu(_ref_convt(x, p["wt2"], p["bt2"], 1))
    x = jnp.tanh(_ref_convt(x, p["wt3"], p["bt3"], 2))
    return x, 1


# ----------------------------------------------------------------------------
if __name__ == "__main__":
    key = jax.random.PRNGKey(0)
    kp_, kx = jax.random.split(key)
    raw = init_params(kp_)

    # 64x64 is the smallest spatial size valid for this encoder chain
    # (64 -> conv8/8 -> 8 -> pool2/2 -> 4 -> conv3 -> 2 -> pool2/1 -> 1).
    # Use N=32 with tile tb=16 so the batch grid has 2 steps.
    N = 32
    x = jax.random.normal(kx, (N, 4, 64, 64), jnp.float32)

    kparams = pack_params(raw)
    fwd = jax.jit(functools.partial(forward_pallas, tb=16))
    out, flag = fwd(x, kparams)
    out_np = np.asarray(jax.block_until_ready(out))

    ref, _ = forward_ref(x, raw)
    ref = np.asarray(jax.block_until_ready(ref))

    assert out_np.shape == (N, 1, 16, 16), out_np.shape
    assert int(flag) == 1
    # bf16 patch/conv1-weight stream (f32 accumulation everywhere) -> ~1e-3 err
    if not np.allclose(out_np, ref, atol=1e-2, rtol=1e-2):
        raise AssertionError(
            f"Pallas vs reference mismatch, max abs err = {np.abs(out_np - ref).max()}"
        )
    print("KERNEL_OK")
</pallas_src>

<mosaic_0001>
module attributes {stable_mosaic.version = 11 : i64} {
  func.func @_fused_autoencoder_kernel(%arg0: i32, %arg1: memref<64x16x256xbf16, #tpu.memory_space<vmem>>, %arg2: memref<256x64xbf16, #tpu.memory_space<vmem>>, %arg3: memref<1x64xf32, #tpu.memory_space<vmem>>, %arg4: memref<9x64x16xf32, #tpu.memory_space<vmem>>, %arg5: memref<1x16xf32, #tpu.memory_space<vmem>>, %arg6: memref<16x256xf32, #tpu.memory_space<vmem>>, %arg7: memref<1x256xf32, #tpu.memory_space<vmem>>, %arg8: memref<256x128xf32, #tpu.memory_space<vmem>>, %arg9: memref<1x128xf32, #tpu.memory_space<vmem>>, %arg10: memref<128x256xf32, #tpu.memory_space<vmem>>, %arg11: memref<1x256xf32, #tpu.memory_space<vmem>>, %arg12: memref<16x256xf32, #tpu.memory_space<vmem>>) attributes {dimension_semantics = [#tpu.dimension_semantics<parallel>], iteration_bounds = array<i64: 2>, scalar_prefetch = 0 : i64, scratch_operands = 0 : i64, tpu.core_type = #tpu.core_type<tc>, window_params = [{transform_indices = @transform_0, window_bounds = array<i64: 64, 16, 256>}, {pipeline_mode = #tpu.pipeline_mode<synchronous>, transform_indices = @transform_1, window_bounds = array<i64: 256, 64>}, {pipeline_mode = #tpu.pipeline_mode<synchronous>, transform_indices = @transform_2, window_bounds = array<i64: 1, 64>}, {pipeline_mode = #tpu.pipeline_mode<synchronous>, transform_indices = @transform_3, window_bounds = array<i64: 9, 64, 16>}, {pipeline_mode = #tpu.pipeline_mode<synchronous>, transform_indices = @transform_4, window_bounds = array<i64: 1, 16>}, {pipeline_mode = #tpu.pipeline_mode<synchronous>, transform_indices = @transform_5, window_bounds = array<i64: 16, 256>}, {pipeline_mode = #tpu.pipeline_mode<synchronous>, transform_indices = @transform_6, window_bounds = array<i64: 1, 256>}, {pipeline_mode = #tpu.pipeline_mode<synchronous>, transform_indices = @transform_7, window_bounds = array<i64: 256, 128>}, {pipeline_mode = #tpu.pipeline_mode<synchronous>, transform_indices = @transform_8, window_bounds = array<i64: 1, 128>}, {pipeline_mode = #tpu.pipeline_mode<synchronous>, transform_indices = @transform_9, window_bounds = array<i64: 128, 256>}, {pipeline_mode = #tpu.pipeline_mode<synchronous>, transform_indices = @transform_10, window_bounds = array<i64: 1, 256>}, {transform_indices = @transform_11, window_bounds = array<i64: 16, 256>}]} {
    %c0 = arith.constant 0 : index
    %c0_0 = arith.constant 0 : index
    %c0_1 = arith.constant 0 : index
    %0 = vector.load %arg1[%c0, %c0_0, %c0_1] : memref<64x16x256xbf16, #tpu.memory_space<vmem>>, vector<64x16x256xbf16>
    %1 = vector.shape_cast %0 : vector<64x16x256xbf16> to vector<1024x256xbf16>
    %c0_2 = arith.constant 0 : index
    %c0_3 = arith.constant 0 : index
    %2 = vector.load %arg2[%c0_2, %c0_3] : memref<256x64xbf16, #tpu.memory_space<vmem>>, vector<256x64xbf16>
    %cst = arith.constant dense<0.000000e+00> : vector<1024x64xf32>
    %3 = tpu.matmul %1, %2, %cst {dimension_numbers = #tpu.dot_dimension_numbers<[1], [0], [0], [1], [0, 0, 1, 1], [], []>} : vector<1024x256xbf16>, vector<256x64xbf16>, vector<1024x64xf32> -> vector<1024x64xf32>
    %4 = vector.extract_strided_slice %3 {offsets = [0, 0], sizes = [256, 64], strides = [1, 1]} : vector<1024x64xf32> to vector<256x64xf32>
    %5 = vector.extract_strided_slice %3 {offsets = [256, 0], sizes = [256, 64], strides = [1, 1]} : vector<1024x64xf32> to vector<256x64xf32>
    %6 = arith.maximumf %4, %5 : vector<256x64xf32>
    %7 = vector.extract_strided_slice %3 {offsets = [512, 0], sizes = [256, 64], strides = [1, 1]} : vector<1024x64xf32> to vector<256x64xf32>
    %8 = arith.maximumf %6, %7 : vector<256x64xf32>
    %9 = vector.extract_strided_slice %3 {offsets = [768, 0], sizes = [256, 64], strides = [1, 1]} : vector<1024x64xf32> to vector<256x64xf32>
    %10 = arith.maximumf %8, %9 : vector<256x64xf32>
    %c0_4 = arith.constant 0 : index
    %c0_5 = arith.constant 0 : index
    %11 = vector.load %arg3[%c0_4, %c0_5] : memref<1x64xf32, #tpu.memory_space<vmem>>, vector<1x64xf32>
    %12 = vector.broadcast %11 : vector<1x64xf32> to vector<256x64xf32>
    %13 = arith.addf %10, %12 : vector<256x64xf32>
    %cst_6 = arith.constant 0.000000e+00 : f32
    %14 = vector.broadcast %cst_6 : f32 to vector<256x64xf32>
    %15 = arith.maximumf %13, %14 : vector<256x64xf32>
    %c0_7 = arith.constant 0 : index
    %c0_8 = arith.constant 0 : index
    %c0_9 = arith.constant 0 : index
    %16 = vector.load %arg4[%c0_7, %c0_8, %c0_9] : memref<9x64x16xf32, #tpu.memory_space<vmem>>, vector<9x64x16xf32>
    %17 = vector.extract_strided_slice %15 {offsets = [0, 0], sizes = [16, 64], strides = [1, 1]} : vector<256x64xf32> to vector<16x64xf32>
    %18 = vector.extract_strided_slice %16 {offsets = [0, 0, 0], sizes = [1, 64, 16], strides = [1, 1, 1]} : vector<9x64x16xf32> to vector<1x64x16xf32>
    %19 = vector.shape_cast %18 : vector<1x64x16xf32> to vector<64x16xf32>
    %cst_10 = arith.constant dense<0.000000e+00> : vector<16x16xf32>
    %20 = tpu.matmul %17, %19, %cst_10 {dimension_numbers = #tpu.dot_dimension_numbers<[1], [0], [0], [1], [0, 0, 1, 1], [], []>} : vector<16x64xf32>, vector<64x16xf32>, vector<16x16xf32> -> vector<16x16xf32>
    %21 = vector.extract_strided_slice %15 {offsets = [16, 0], sizes = [16, 64], strides = [1, 1]} : vector<256x64xf32> to vector<16x64xf32>
    %22 = vector.extract_strided_slice %16 {offsets = [1, 0, 0], sizes = [1, 64, 16], strides = [1, 1, 1]} : vector<9x64x16xf32> to vector<1x64x16xf32>
    %23 = vector.shape_cast %22 : vector<1x64x16xf32> to vector<64x16xf32>
    %cst_11 = arith.constant dense<0.000000e+00> : vector<16x16xf32>
    %24 = tpu.matmul %21, %23, %cst_11 {dimension_numbers = #tpu.dot_dimension_numbers<[1], [0], [0], [1], [0, 0, 1, 1], [], []>} : vector<16x64xf32>, vector<64x16xf32>, vector<16x16xf32> -> vector<16x16xf32>
    %25 = arith.addf %20, %24 : vector<16x16xf32>
    %26 = vector.extract_strided_slice %15 {offsets = [32, 0], sizes = [16, 64], strides = [1, 1]} : vector<256x64xf32> to vector<16x64xf32>
    %27 = vector.extract_strided_slice %16 {offsets = [2, 0, 0], sizes = [1, 64, 16], strides = [1, 1, 1]} : vector<9x64x16xf32> to vector<1x64x16xf32>
    %28 = vector.shape_cast %27 : vector<1x64x16xf32> to vector<64x16xf32>
    %cst_12 = arith.constant dense<0.000000e+00> : vector<16x16xf32>
    %29 = tpu.matmul %26, %28, %cst_12 {dimension_numbers = #tpu.dot_dimension_numbers<[1], [0], [0], [1], [0, 0, 1, 1], [], []>} : vector<16x64xf32>, vector<64x16xf32>, vector<16x16xf32> -> vector<16x16xf32>
    %30 = arith.addf %25, %29 : vector<16x16xf32>
    %31 = vector.extract_strided_slice %15 {offsets = [64, 0], sizes = [16, 64], strides = [1, 1]} : vector<256x64xf32> to vector<16x64xf32>
    %32 = vector.extract_strided_slice %16 {offsets = [3, 0, 0], sizes = [1, 64, 16], strides = [1, 1, 1]} : vector<9x64x16xf32> to vector<1x64x16xf32>
    %33 = vector.shape_cast %32 : vector<1x64x16xf32> to vector<64x16xf32>
    %cst_13 = arith.constant dense<0.000000e+00> : vector<16x16xf32>
    %34 = tpu.matmul %31, %33, %cst_13 {dimension_numbers = #tpu.dot_dimension_numbers<[1], [0], [0], [1], [0, 0, 1, 1], [], []>} : vector<16x64xf32>, vector<64x16xf32>, vector<16x16xf32> -> vector<16x16xf32>
    %35 = arith.addf %30, %34 : vector<16x16xf32>
    %36 = vector.extract_strided_slice %15 {offsets = [80, 0], sizes = [16, 64], strides = [1, 1]} : vector<256x64xf32> to vector<16x64xf32>
    %37 = vector.extract_strided_slice %16 {offsets = [4, 0, 0], sizes = [1, 64, 16], strides = [1, 1, 1]} : vector<9x64x16xf32> to vector<1x64x16xf32>
    %38 = vector.shape_cast %37 : vector<1x64x16xf32> to vector<64x16xf32>
    %cst_14 = arith.constant dense<0.000000e+00> : vector<16x16xf32>
    %39 = tpu.matmul %36, %38, %cst_14 {dimension_numbers = #tpu.dot_dimension_numbers<[1], [0], [0], [1], [0, 0, 1, 1], [], []>} : vector<16x64xf32>, vector<64x16xf32>, vector<16x16xf32> -> vector<16x16xf32>
    %40 = arith.addf %35, %39 : vector<16x16xf32>
    %41 = vector.extract_strided_slice %15 {offsets = [96, 0], sizes = [16, 64], strides = [1, 1]} : vector<256x64xf32> to vector<16x64xf32>
    %42 = vector.extract_strided_slice %16 {offsets = [5, 0, 0], sizes = [1, 64, 16], strides = [1, 1, 1]} : vector<9x64x16xf32> to vector<1x64x16xf32>
    %43 = vector.shape_cast %42 : vector<1x64x16xf32> to vector<64x16xf32>
    %cst_15 = arith.constant dense<0.000000e+00> : vector<16x16xf32>
    %44 = tpu.matmul %41, %43, %cst_15 {dimension_numbers = #tpu.dot_dimension_numbers<[1], [0], [0], [1], [0, 0, 1, 1], [], []>} : vector<16x64xf32>, vector<64x16xf32>, vector<16x16xf32> -> vector<16x16xf32>
    %45 = arith.addf %40, %44 : vector<16x16xf32>
    %46 = vector.extract_strided_slice %15 {offsets = [128, 0], sizes = [16, 64], strides = [1, 1]} : vector<256x64xf32> to vector<16x64xf32>
    %47 = vector.extract_strided_slice %16 {offsets = [6, 0, 0], sizes = [1, 64, 16], strides = [1, 1, 1]} : vector<9x64x16xf32> to vector<1x64x16xf32>
    %48 = vector.shape_cast %47 : vector<1x64x16xf32> to vector<64x16xf32>
    %cst_16 = arith.constant dense<0.000000e+00> : vector<16x16xf32>
    %49 = tpu.matmul %46, %48, %cst_16 {dimension_numbers = #tpu.dot_dimension_numbers<[1], [0], [0], [1], [0, 0, 1, 1], [], []>} : vector<16x64xf32>, vector<64x16xf32>, vector<16x16xf32> -> vector<16x16xf32>
    %50 = arith.addf %45, %49 : vector<16x16xf32>
    %51 = vector.extract_strided_slice %15 {offsets = [144, 0], sizes = [16, 64], strides = [1, 1]} : vector<256x64xf32> to vector<16x64xf32>
    %52 = vector.extract_strided_slice %16 {offsets = [7, 0, 0], sizes = [1, 64, 16], strides = [1, 1, 1]} : vector<9x64x16xf32> to vector<1x64x16xf32>
    %53 = vector.shape_cast %52 : vector<1x64x16xf32> to vector<64x16xf32>
    %cst_17 = arith.constant dense<0.000000e+00> : vector<16x16xf32>
    %54 = tpu.matmul %51, %53, %cst_17 {dimension_numbers = #tpu.dot_dimension_numbers<[1], [0], [0], [1], [0, 0, 1, 1], [], []>} : vector<16x64xf32>, vector<64x16xf32>, vector<16x16xf32> -> vector<16x16xf32>
    %55 = arith.addf %50, %54 : vector<16x16xf32>
    %56 = vector.extract_strided_slice %15 {offsets = [160, 0], sizes = [16, 64], strides = [1, 1]} : vector<256x64xf32> to vector<16x64xf32>
    %57 = vector.extract_strided_slice %16 {offsets = [8, 0, 0], sizes = [1, 64, 16], strides = [1, 1, 1]} : vector<9x64x16xf32> to vector<1x64x16xf32>
    %58 = vector.shape_cast %57 : vector<1x64x16xf32> to vector<64x16xf32>
    %cst_18 = arith.constant dense<0.000000e+00> : vector<16x16xf32>
    %59 = tpu.matmul %56, %58, %cst_18 {dimension_numbers = #tpu.dot_dimension_numbers<[1], [0], [0], [1], [0, 0, 1, 1], [], []>} : vector<16x64xf32>, vector<64x16xf32>, vector<16x16xf32> -> vector<16x16xf32>
    %60 = arith.addf %55, %59 : vector<16x16xf32>
    %61 = vector.extract_strided_slice %15 {offsets = [16, 0], sizes = [16, 64], strides = [1, 1]} : vector<256x64xf32> to vector<16x64xf32>
    %62 = vector.extract_strided_slice %16 {offsets = [0, 0, 0], sizes = [1, 64, 16], strides = [1, 1, 1]} : vector<9x64x16xf32> to vector<1x64x16xf32>
    %63 = vector.shape_cast %62 : vector<1x64x16xf32> to vector<64x16xf32>
    %cst_19 = arith.constant dense<0.000000e+00> : vector<16x16xf32>
    %64 = tpu.matmul %61, %63, %cst_19 {dimension_numbers = #tpu.dot_dimension_numbers<[1], [0], [0], [1], [0, 0, 1, 1], [], []>} : vector<16x64xf32>, vector<64x16xf32>, vector<16x16xf32> -> vector<16x16xf32>
    %65 = vector.extract_strided_slice %15 {offsets = [32, 0], sizes = [16, 64], strides = [1, 1]} : vector<256x64xf32> to vector<16x64xf32>
    %66 = vector.extract_strided_slice %16 {offsets = [1, 0, 0], sizes = [1, 64, 16], strides = [1, 1, 1]} : vector<9x64x16xf32> to vector<1x64x16xf32>
    %67 = vector.shape_cast %66 : vector<1x64x16xf32> to vector<64x16xf32>
    %cst_20 = arith.constant dense<0.000000e+00> : vector<16x16xf32>
    %68 = tpu.matmul %65, %67, %cst_20 {dimension_numbers = #tpu.dot_dimension_numbers<[1], [0], [0], [1], [0, 0, 1, 1], [], []>} : vector<16x64xf32>, vector<64x16xf32>, vector<16x16xf32> -> vector<16x16xf32>
    %69 = arith.addf %64, %68 : vector<16x16xf32>
    %70 = vector.extract_strided_slice %15 {offsets = [48, 0], sizes = [16, 64], strides = [1, 1]} : vector<256x64xf32> to vector<16x64xf32>
    %71 = vector.extract_strided_slice %16 {offsets = [2, 0, 0], sizes = [1, 64, 16], strides = [1, 1, 1]} : vector<9x64x16xf32> to vector<1x64x16xf32>
    %72 = vector.shape_cast %71 : vector<1x64x16xf32> to vector<64x16xf32>
    %cst_21 = arith.constant dense<0.000000e+00> : vector<16x16xf32>
    %73 = tpu.matmul %70, %72, %cst_21 {dimension_numbers = #tpu.dot_dimension_numbers<[1], [0], [0], [1], [0, 0, 1, 1], [], []>} : vector<16x64xf32>, vector<64x16xf32>, vector<16x16xf32> -> vector<16x16xf32>
    %74 = arith.addf %69, %73 : vector<16x16xf32>
    %75 = vector.extract_strided_slice %15 {offsets = [80, 0], sizes = [16, 64], strides = [1, 1]} : vector<256x64xf32> to vector<16x64xf32>
    %76 = vector.extract_strided_slice %16 {offsets = [3, 0, 0], sizes = [1, 64, 16], strides = [1, 1, 1]} : vector<9x64x16xf32> to vector<1x64x16xf32>
    %77 = vector.shape_cast %76 : vector<1x64x16xf32> to vector<64x16xf32>
    %cst_22 = arith.constant dense<0.000000e+00> : vector<16x16xf32>
    %78 = tpu.matmul %75, %77, %cst_22 {dimension_numbers = #tpu.dot_dimension_numbers<[1], [0], [0], [1], [0, 0, 1, 1], [], []>} : vector<16x64xf32>, vector<64x16xf32>, vector<16x16xf32> -> vector<16x16xf32>
    %79 = arith.addf %74, %78 : vector<16x16xf32>
    %80 = vector.extract_strided_slice %15 {offsets = [96, 0], sizes = [16, 64], strides = [1, 1]} : vector<256x64xf32> to vector<16x64xf32>
    %81 = vector.extract_strided_slice %16 {offsets = [4, 0, 0], sizes = [1, 64, 16], strides = [1, 1, 1]} : vector<9x64x16xf32> to vector<1x64x16xf32>
    %82 = vector.shape_cast %81 : vector<1x64x16xf32> to vector<64x16xf32>
    %cst_23 = arith.constant dense<0.000000e+00> : vector<16x16xf32>
    %83 = tpu.matmul %80, %82, %cst_23 {dimension_numbers = #tpu.dot_dimension_numbers<[1], [0], [0], [1], [0, 0, 1, 1], [], []>} : vector<16x64xf32>, vector<64x16xf32>, vector<16x16xf32> -> vector<16x16xf32>
    %84 = arith.addf %79, %83 : vector<16x16xf32>
    %85 = vector.extract_strided_slice %15 {offsets = [112, 0], sizes = [16, 64], strides = [1, 1]} : vector<256x64xf32> to vector<16x64xf32>
    %86 = vector.extract_strided_slice %16 {offsets = [5, 0, 0], sizes = [1, 64, 16], strides = [1, 1, 1]} : vector<9x64x16xf32> to vector<1x64x16xf32>
    %87 = vector.shape_cast %86 : vector<1x64x16xf32> to vector<64x16xf32>
    %cst_24 = arith.constant dense<0.000000e+00> : vector<16x16xf32>
    %88 = tpu.matmul %85, %87, %cst_24 {dimension_numbers = #tpu.dot_dimension_numbers<[1], [0], [0], [1], [0, 0, 1, 1], [], []>} : vector<16x64xf32>, vector<64x16xf32>, vector<16x16xf32> -> vector<16x16xf32>
    %89 = arith.addf %84, %88 : vector<16x16xf32>
    %90 = vector.extract_strided_slice %15 {offsets = [144, 0], sizes = [16, 64], strides = [1, 1]} : vector<256x64xf32> to vector<16x64xf32>
    %91 = vector.extract_strided_slice %16 {offsets = [6, 0, 0], sizes = [1, 64, 16], strides = [1, 1, 1]} : vector<9x64x16xf32> to vector<1x64x16xf32>
    %92 = vector.shape_cast %91 : vector<1x64x16xf32> to vector<64x16xf32>
    %cst_25 = arith.constant dense<0.000000e+00> : vector<16x16xf32>
    %93 = tpu.matmul %90, %92, %cst_25 {dimension_numbers = #tpu.dot_dimension_numbers<[1], [0], [0], [1], [0, 0, 1, 1], [], []>} : vector<16x64xf32>, vector<64x16xf32>, vector<16x16xf32> -> vector<16x16xf32>
    %94 = arith.addf %89, %93 : vector<16x16xf32>
    %95 = vector.extract_strided_slice %15 {offsets = [160, 0], sizes = [16, 64], strides = [1, 1]} : vector<256x64xf32> to vector<16x64xf32>
    %96 = vector.extract_strided_slice %16 {offsets = [7, 0, 0], sizes = [1, 64, 16], strides = [1, 1, 1]} : vector<9x64x16xf32> to vector<1x64x16xf32>
    %97 = vector.shape_cast %96 : vector<1x64x16xf32> to vector<64x16xf32>
    %cst_26 = arith.constant dense<0.000000e+00> : vector<16x16xf32>
    %98 = tpu.matmul %95, %97, %cst_26 {dimension_numbers = #tpu.dot_dimension_numbers<[1], [0], [0], [1], [0, 0, 1, 1], [], []>} : vector<16x64xf32>, vector<64x16xf32>, vector<16x16xf32> -> vector<16x16xf32>
    %99 = arith.addf %94, %98 : vector<16x16xf32>
    %100 = vector.extract_strided_slice %15 {offsets = [176, 0], sizes = [16, 64], strides = [1, 1]} : vector<256x64xf32> to vector<16x64xf32>
    %101 = vector.extract_strided_slice %16 {offsets = [8, 0, 0], sizes = [1, 64, 16], strides = [1, 1, 1]} : vector<9x64x16xf32> to vector<1x64x16xf32>
    %102 = vector.shape_cast %101 : vector<1x64x16xf32> to vector<64x16xf32>
    %cst_27 = arith.constant dense<0.000000e+00> : vector<16x16xf32>
    %103 = tpu.matmul %100, %102, %cst_27 {dimension_numbers = #tpu.dot_dimension_numbers<[1], [0], [0], [1], [0, 0, 1, 1], [], []>} : vector<16x64xf32>, vector<64x16xf32>, vector<16x16xf32> -> vector<16x16xf32>
    %104 = arith.addf %99, %103 : vector<16x16xf32>
    %105 = arith.maximumf %60, %104 : vector<16x16xf32>
    %106 = vector.extract_strided_slice %15 {offsets = [64, 0], sizes = [16, 64], strides = [1, 1]} : vector<256x64xf32> to vector<16x64xf32>
    %107 = vector.extract_strided_slice %16 {offsets = [0, 0, 0], sizes = [1, 64, 16], strides = [1, 1, 1]} : vector<9x64x16xf32> to vector<1x64x16xf32>
    %108 = vector.shape_cast %107 : vector<1x64x16xf32> to vector<64x16xf32>
    %cst_28 = arith.constant dense<0.000000e+00> : vector<16x16xf32>
    %109 = tpu.matmul %106, %108, %cst_28 {dimension_numbers = #tpu.dot_dimension_numbers<[1], [0], [0], [1], [0, 0, 1, 1], [], []>} : vector<16x64xf32>, vector<64x16xf32>, vector<16x16xf32> -> vector<16x16xf32>
    %110 = vector.extract_strided_slice %15 {offsets = [80, 0], sizes = [16, 64], strides = [1, 1]} : vector<256x64xf32> to vector<16x64xf32>
    %111 = vector.extract_strided_slice %16 {offsets = [1, 0, 0], sizes = [1, 64, 16], strides = [1, 1, 1]} : vector<9x64x16xf32> to vector<1x64x16xf32>
    %112 = vector.shape_cast %111 : vector<1x64x16xf32> to vector<64x16xf32>
    %cst_29 = arith.constant dense<0.000000e+00> : vector<16x16xf32>
    %113 = tpu.matmul %110, %112, %cst_29 {dimension_numbers = #tpu.dot_dimension_numbers<[1], [0], [0], [1], [0, 0, 1, 1], [], []>} : vector<16x64xf32>, vector<64x16xf32>, vector<16x16xf32> -> vector<16x16xf32>
    %114 = arith.addf %109, %113 : vector<16x16xf32>
    %115 = vector.extract_strided_slice %15 {offsets = [96, 0], sizes = [16, 64], strides = [1, 1]} : vector<256x64xf32> to vector<16x64xf32>
    %116 = vector.extract_strided_slice %16 {offsets = [2, 0, 0], sizes = [1, 64, 16], strides = [1, 1, 1]} : vector<9x64x16xf32> to vector<1x64x16xf32>
    %117 = vector.shape_cast %116 : vector<1x64x16xf32> to vector<64x16xf32>
    %cst_30 = arith.constant dense<0.000000e+00> : vector<16x16xf32>
    %118 = tpu.matmul %115, %117, %cst_30 {dimension_numbers = #tpu.dot_dimension_numbers<[1], [0], [0], [1], [0, 0, 1, 1], [], []>} : vector<16x64xf32>, vector<64x16xf32>, vector<16x16xf32> -> vector<16x16xf32>
    %119 = arith.addf %114, %118 : vector<16x16xf32>
    %120 = vector.extract_strided_slice %15 {offsets = [128, 0], sizes = [16, 64], strides = [1, 1]} : vector<256x64xf32> to vector<16x64xf32>
    %121 = vector.extract_strided_slice %16 {offsets = [3, 0, 0], sizes = [1, 64, 16], strides = [1, 1, 1]} : vector<9x64x16xf32> to vector<1x64x16xf32>
    %122 = vector.shape_cast %121 : vector<1x64x16xf32> to vector<64x16xf32>
    %cst_31 = arith.constant dense<0.000000e+00> : vector<16x16xf32>
    %123 = tpu.matmul %120, %122, %cst_31 {dimension_numbers = #tpu.dot_dimension_numbers<[1], [0], [0], [1], [0, 0, 1, 1], [], []>} : vector<16x64xf32>, vector<64x16xf32>, vector<16x16xf32> -> vector<16x16xf32>
    %124 = arith.addf %119, %123 : vector<16x16xf32>
    %125 = vector.extract_strided_slice %15 {offsets = [144, 0], sizes = [16, 64], strides = [1, 1]} : vector<256x64xf32> to vector<16x64xf32>
    %126 = vector.extract_strided_slice %16 {offsets = [4, 0, 0], sizes = [1, 64, 16], strides = [1, 1, 1]} : vector<9x64x16xf32> to vector<1x64x16xf32>
    %127 = vector.shape_cast %126 : vector<1x64x16xf32> to vector<64x16xf32>
    %cst_32 = arith.constant dense<0.000000e+00> : vector<16x16xf32>
    %128 = tpu.matmul %125, %127, %cst_32 {dimension_numbers = #tpu.dot_dimension_numbers<[1], [0], [0], [1], [0, 0, 1, 1], [], []>} : vector<16x64xf32>, vector<64x16xf32>, vector<16x16xf32> -> vector<16x16xf32>
    %129 = arith.addf %124, %128 : vector<16x16xf32>
    %130 = vector.extract_strided_slice %15 {offsets = [160, 0], sizes = [16, 64], strides = [1, 1]} : vector<256x64xf32> to vector<16x64xf32>
    %131 = vector.extract_strided_slice %16 {offsets = [5, 0, 0], sizes = [1, 64, 16], strides = [1, 1, 1]} : vector<9x64x16xf32> to vector<1x64x16xf32>
    %132 = vector.shape_cast %131 : vector<1x64x16xf32> to vector<64x16xf32>
    %cst_33 = arith.constant dense<0.000000e+00> : vector<16x16xf32>
    %133 = tpu.matmul %130, %132, %cst_33 {dimension_numbers = #tpu.dot_dimension_numbers<[1], [0], [0], [1], [0, 0, 1, 1], [], []>} : vector<16x64xf32>, vector<64x16xf32>, vector<16x16xf32> -> vector<16x16xf32>
    %134 = arith.addf %129, %133 : vector<16x16xf32>
    %135 = vector.extract_strided_slice %15 {offsets = [192, 0], sizes = [16, 64], strides = [1, 1]} : vector<256x64xf32> to vector<16x64xf32>
    %136 = vector.extract_strided_slice %16 {offsets = [6, 0, 0], sizes = [1, 64, 16], strides = [1, 1, 1]} : vector<9x64x16xf32> to vector<1x64x16xf32>
    %137 = vector.shape_cast %136 : vector<1x64x16xf32> to vector<64x16xf32>
    %cst_34 = arith.constant dense<0.000000e+00> : vector<16x16xf32>
    %138 = tpu.matmul %135, %137, %cst_34 {dimension_numbers = #tpu.dot_dimension_numbers<[1], [0], [0], [1], [0, 0, 1, 1], [], []>} : vector<16x64xf32>, vector<64x16xf32>, vector<16x16xf32> -> vector<16x16xf32>
    %139 = arith.addf %134, %138 : vector<16x16xf32>
    %140 = vector.extract_strided_slice %15 {offsets = [208, 0], sizes = [16, 64], strides = [1, 1]} : vector<256x64xf32> to vector<16x64xf32>
    %141 = vector.extract_strided_slice %16 {offsets = [7, 0, 0], sizes = [1, 64, 16], strides = [1, 1, 1]} : vector<9x64x16xf32> to vector<1x64x16xf32>
    %142 = vector.shape_cast %141 : vector<1x64x16xf32> to vector<64x16xf32>
    %cst_35 = arith.constant dense<0.000000e+00> : vector<16x16xf32>
    %143 = tpu.matmul %140, %142, %cst_35 {dimension_numbers = #tpu.dot_dimension_numbers<[1], [0], [0], [1], [0, 0, 1, 1], [], []>} : vector<16x64xf32>, vector<64x16xf32>, vector<16x16xf32> -> vector<16x16xf32>
    %144 = arith.addf %139, %143 : vector<16x16xf32>
    %145 = vector.extract_strided_slice %15 {offsets = [224, 0], sizes = [16, 64], strides = [1, 1]} : vector<256x64xf32> to vector<16x64xf32>
    %146 = vector.extract_strided_slice %16 {offsets = [8, 0, 0], sizes = [1, 64, 16], strides = [1, 1, 1]} : vector<9x64x16xf32> to vector<1x64x16xf32>
    %147 = vector.shape_cast %146 : vector<1x64x16xf32> to vector<64x16xf32>
    %cst_36 = arith.constant dense<0.000000e+00> : vector<16x16xf32>
    %148 = tpu.matmul %145, %147, %cst_36 {dimension_numbers = #tpu.dot_dimension_numbers<[1], [0], [0], [1], [0, 0, 1, 1], [], []>} : vector<16x64xf32>, vector<64x16xf32>, vector<16x16xf32> -> vector<16x16xf32>
    %149 = arith.addf %144, %148 : vector<16x16xf32>
    %150 = arith.maximumf %105, %149 : vector<16x16xf32>
    %151 = vector.extract_strided_slice %15 {offsets = [80, 0], sizes = [16, 64], strides = [1, 1]} : vector<256x64xf32> to vector<16x64xf32>
    %152 = vector.extract_strided_slice %16 {offsets = [0, 0, 0], sizes = [1, 64, 16], strides = [1, 1, 1]} : vector<9x64x16xf32> to vector<1x64x16xf32>
    %153 = vector.shape_cast %152 : vector<1x64x16xf32> to vector<64x16xf32>
    %cst_37 = arith.constant dense<0.000000e+00> : vector<16x16xf32>
    %154 = tpu.matmul %151, %153, %cst_37 {dimension_numbers = #tpu.dot_dimension_numbers<[1], [0], [0], [1], [0, 0, 1, 1], [], []>} : vector<16x64xf32>, vector<64x16xf32>, vector<16x16xf32> -> vector<16x16xf32>
    %155 = vector.extract_strided_slice %15 {offsets = [96, 0], sizes = [16, 64], strides = [1, 1]} : vector<256x64xf32> to vector<16x64xf32>
    %156 = vector.extract_strided_slice %16 {offsets = [1, 0, 0], sizes = [1, 64, 16], strides = [1, 1, 1]} : vector<9x64x16xf32> to vector<1x64x16xf32>
    %157 = vector.shape_cast %156 : vector<1x64x16xf32> to vector<64x16xf32>
    %cst_38 = arith.constant dense<0.000000e+00> : vector<16x16xf32>
    %158 = tpu.matmul %155, %157, %cst_38 {dimension_numbers = #tpu.dot_dimension_numbers<[1], [0], [0], [1], [0, 0, 1, 1], [], []>} : vector<16x64xf32>, vector<64x16xf32>, vector<16x16xf32> -> vector<16x16xf32>
    %159 = arith.addf %154, %158 : vector<16x16xf32>
    %160 = vector.extract_strided_slice %15 {offsets = [112, 0], sizes = [16, 64], strides = [1, 1]} : vector<256x64xf32> to vector<16x64xf32>
    %161 = vector.extract_strided_slice %16 {offsets = [2, 0, 0], sizes = [1, 64, 16], strides = [1, 1, 1]} : vector<9x64x16xf32> to vector<1x64x16xf32>
    %162 = vector.shape_cast %161 : vector<1x64x16xf32> to vector<64x16xf32>
    %cst_39 = arith.constant dense<0.000000e+00> : vector<16x16xf32>
    %163 = tpu.matmul %160, %162, %cst_39 {dimension_numbers = #tpu.dot_dimension_numbers<[1], [0], [0], [1], [0, 0, 1, 1], [], []>} : vector<16x64xf32>, vector<64x16xf32>, vector<16x16xf32> -> vector<16x16xf32>
    %164 = arith.addf %159, %163 : vector<16x16xf32>
    %165 = vector.extract_strided_slice %15 {offsets = [144, 0], sizes = [16, 64], strides = [1, 1]} : vector<256x64xf32> to vector<16x64xf32>
    %166 = vector.extract_strided_slice %16 {offsets = [3, 0, 0], sizes = [1, 64, 16], strides = [1, 1, 1]} : vector<9x64x16xf32> to vector<1x64x16xf32>
    %167 = vector.shape_cast %166 : vector<1x64x16xf32> to vector<64x16xf32>
    %cst_40 = arith.constant dense<0.000000e+00> : vector<16x16xf32>
    %168 = tpu.matmul %165, %167, %cst_40 {dimension_numbers = #tpu.dot_dimension_numbers<[1], [0], [0], [1], [0, 0, 1, 1], [], []>} : vector<16x64xf32>, vector<64x16xf32>, vector<16x16xf32> -> vector<16x16xf32>
    %169 = arith.addf %164, %168 : vector<16x16xf32>
    %170 = vector.extract_strided_slice %15 {offsets = [160, 0], sizes = [16, 64], strides = [1, 1]} : vector<256x64xf32> to vector<16x64xf32>
    %171 = vector.extract_strided_slice %16 {offsets = [4, 0, 0], sizes = [1, 64, 16], strides = [1, 1, 1]} : vector<9x64x16xf32> to vector<1x64x16xf32>
    %172 = vector.shape_cast %171 : vector<1x64x16xf32> to vector<64x16xf32>
    %cst_41 = arith.constant dense<0.000000e+00> : vector<16x16xf32>
    %173 = tpu.matmul %170, %172, %cst_41 {dimension_numbers = #tpu.dot_dimension_numbers<[1], [0], [0], [1], [0, 0, 1, 1], [], []>} : vector<16x64xf32>, vector<64x16xf32>, vector<16x16xf32> -> vector<16x16xf32>
    %174 = arith.addf %169, %173 : vector<16x16xf32>
    %175 = vector.extract_strided_slice %15 {offsets = [176, 0], sizes = [16, 64], strides = [1, 1]} : vector<256x64xf32> to vector<16x64xf32>
    %176 = vector.extract_strided_slice %16 {offsets = [5, 0, 0], sizes = [1, 64, 16], strides = [1, 1, 1]} : vector<9x64x16xf32> to vector<1x64x16xf32>
    %177 = vector.shape_cast %176 : vector<1x64x16xf32> to vector<64x16xf32>
    %cst_42 = arith.constant dense<0.000000e+00> : vector<16x16xf32>
    %178 = tpu.matmul %175, %177, %cst_42 {dimension_numbers = #tpu.dot_dimension_numbers<[1], [0], [0], [1], [0, 0, 1, 1], [], []>} : vector<16x64xf32>, vector<64x16xf32>, vector<16x16xf32> -> vector<16x16xf32>
    %179 = arith.addf %174, %178 : vector<16x16xf32>
    %180 = vector.extract_strided_slice %15 {offsets = [208, 0], sizes = [16, 64], strides = [1, 1]} : vector<256x64xf32> to vector<16x64xf32>
    %181 = vector.extract_strided_slice %16 {offsets = [6, 0, 0], sizes = [1, 64, 16], strides = [1, 1, 1]} : vector<9x64x16xf32> to vector<1x64x16xf32>
    %182 = vector.shape_cast %181 : vector<1x64x16xf32> to vector<64x16xf32>
    %cst_43 = arith.constant dense<0.000000e+00> : vector<16x16xf32>
    %183 = tpu.matmul %180, %182, %cst_43 {dimension_numbers = #tpu.dot_dimension_numbers<[1], [0], [0], [1], [0, 0, 1, 1], [], []>} : vector<16x64xf32>, vector<64x16xf32>, vector<16x16xf32> -> vector<16x16xf32>
    %184 = arith.addf %179, %183 : vector<16x16xf32>
    %185 = vector.extract_strided_slice %15 {offsets = [224, 0], sizes = [16, 64], strides = [1, 1]} : vector<256x64xf32> to vector<16x64xf32>
    %186 = vector.extract_strided_slice %16 {offsets = [7, 0, 0], sizes = [1, 64, 16], strides = [1, 1, 1]} : vector<9x64x16xf32> to vector<1x64x16xf32>
    %187 = vector.shape_cast %186 : vector<1x64x16xf32> to vector<64x16xf32>
    %cst_44 = arith.constant dense<0.000000e+00> : vector<16x16xf32>
    %188 = tpu.matmul %185, %187, %cst_44 {dimension_numbers = #tpu.dot_dimension_numbers<[1], [0], [0], [1], [0, 0, 1, 1], [], []>} : vector<16x64xf32>, vector<64x16xf32>, vector<16x16xf32> -> vector<16x16xf32>
    %189 = arith.addf %184, %188 : vector<16x16xf32>
    %190 = vector.extract_strided_slice %15 {offsets = [240, 0], sizes = [16, 64], strides = [1, 1]} : vector<256x64xf32> to vector<16x64xf32>
    %191 = vector.extract_strided_slice %16 {offsets = [8, 0, 0], sizes = [1, 64, 16], strides = [1, 1, 1]} : vector<9x64x16xf32> to vector<1x64x16xf32>
    %192 = vector.shape_cast %191 : vector<1x64x16xf32> to vector<64x16xf32>
    %cst_45 = arith.constant dense<0.000000e+00> : vector<16x16xf32>
    %193 = tpu.matmul %190, %192, %cst_45 {dimension_numbers = #tpu.dot_dimension_numbers<[1], [0], [0], [1], [0, 0, 1, 1], [], []>} : vector<16x64xf32>, vector<64x16xf32>, vector<16x16xf32> -> vector<16x16xf32>
    %194 = arith.addf %189, %193 : vector<16x16xf32>
    %195 = arith.maximumf %150, %194 : vector<16x16xf32>
    %c0_46 = arith.constant 0 : index
    %c0_47 = arith.constant 0 : index
    %196 = vector.load %arg5[%c0_46, %c0_47] : memref<1x16xf32, #tpu.memory_space<vmem>>, vector<1x16xf32>
    %197 = vector.broadcast %196 : vector<1x16xf32> to vector<16x16xf32>
    %198 = arith.addf %195, %197 : vector<16x16xf32>
    %cst_48 = arith.constant 0.000000e+00 : f32
    %199 = vector.broadcast %cst_48 : f32 to vector<16x16xf32>
    %200 = arith.maximumf %198, %199 : vector<16x16xf32>
    %c0_49 = arith.constant 0 : index
    %c0_50 = arith.constant 0 : index
    %201 = vector.load %arg6[%c0_49, %c0_50] : memref<16x256xf32, #tpu.memory_space<vmem>>, vector<16x256xf32>
    %cst_51 = arith.constant dense<0.000000e+00> : vector<16x256xf32>
    %202 = tpu.matmul %200, %201, %cst_51 {dimension_numbers = #tpu.dot_dimension_numbers<[1], [0], [0], [1], [0, 0, 1, 1], [], []>} : vector<16x16xf32>, vector<16x256xf32>, vector<16x256xf32> -> vector<16x256xf32>
    %c0_52 = arith.constant 0 : index
    %c0_53 = arith.constant 0 : index
    %203 = vector.load %arg7[%c0_52, %c0_53] : memref<1x256xf32, #tpu.memory_space<vmem>>, vector<1x256xf32>
    %204 = vector.broadcast %203 : vector<1x256xf32> to vector<16x256xf32>
    %205 = arith.addf %202, %204 : vector<16x256xf32>
    %cst_54 = arith.constant 0.000000e+00 : f32
    %206 = vector.broadcast %cst_54 : f32 to vector<16x256xf32>
    %207 = arith.maximumf %205, %206 : vector<16x256xf32>
    %c0_55 = arith.constant 0 : index
    %c0_56 = arith.constant 0 : index
    %208 = vector.load %arg8[%c0_55, %c0_56] : memref<256x128xf32, #tpu.memory_space<vmem>>, vector<256x128xf32>
    %cst_57 = arith.constant dense<0.000000e+00> : vector<16x128xf32>
    %209 = tpu.matmul %207, %208, %cst_57 {dimension_numbers = #tpu.dot_dimension_numbers<[1], [0], [0], [1], [0, 0, 1, 1], [], []>} : vector<16x256xf32>, vector<256x128xf32>, vector<16x128xf32> -> vector<16x128xf32>
    %c0_58 = arith.constant 0 : index
    %c0_59 = arith.constant 0 : index
    %210 = vector.load %arg9[%c0_58, %c0_59] : memref<1x128xf32, #tpu.memory_space<vmem>>, vector<1x128xf32>
    %211 = vector.broadcast %210 : vector<1x128xf32> to vector<16x128xf32>
    %212 = arith.addf %209, %211 : vector<16x128xf32>
    %cst_60 = arith.constant 0.000000e+00 : f32
    %213 = vector.broadcast %cst_60 : f32 to vector<16x128xf32>
    %214 = arith.maximumf %212, %213 : vector<16x128xf32>
    %c0_61 = arith.constant 0 : index
    %c0_62 = arith.constant 0 : index
    %215 = vector.load %arg10[%c0_61, %c0_62] : memref<128x256xf32, #tpu.memory_space<vmem>>, vector<128x256xf32>
    %cst_63 = arith.constant dense<0.000000e+00> : vector<16x256xf32>
    %216 = tpu.matmul %214, %215, %cst_63 {dimension_numbers = #tpu.dot_dimension_numbers<[1], [0], [0], [1], [0, 0, 1, 1], [], []>} : vector<16x128xf32>, vector<128x256xf32>, vector<16x256xf32> -> vector<16x256xf32>
    %c0_64 = arith.constant 0 : index
    %c0_65 = arith.constant 0 : index
    %217 = vector.load %arg11[%c0_64, %c0_65] : memref<1x256xf32, #tpu.memory_space<vmem>>, vector<1x256xf32>
    %218 = vector.broadcast %217 : vector<1x256xf32> to vector<16x256xf32>
    %219 = arith.addf %216, %218 : vector<16x256xf32>
    %220 = math.tanh %219 : vector<16x256xf32>
    %c0_66 = arith.constant 0 : index
    %c0_67 = arith.constant 0 : index
    %221 = vector.load %arg12[%c0_66, %c0_67] : memref<16x256xf32, #tpu.memory_space<vmem>>, vector<16x256xf32>
    tpu.vector_store %arg12[%c0_66, %c0_67], %220 {strides = array<i32>} : memref<16x256xf32, #tpu.memory_space<vmem>>, vector<16x256xf32>,
    return
  }
  func.func @transform_0(%arg0: i32) -> (i32, i32, i32) {
    %c0_i32 = arith.constant 0 : i32
    %c0_i32_0 = arith.constant 0 : i32
    %c0_i32_1 = arith.constant 0 : i32
    return %c0_i32, %arg0, %c0_i32_0 : i32, i32, i32
  }
  func.func @transform_1(%arg0: i32) -> (i32, i32) {
    %c0_i32 = arith.constant 0 : i32
    %c0_i32_0 = arith.constant 0 : i32
    %c0_i32_1 = arith.constant 0 : i32
    return %c0_i32, %c0_i32_0 : i32, i32
  }
  func.func @transform_2(%arg0: i32) -> (i32, i32) {
    %c0_i32 = arith.constant 0 : i32
    %c0_i32_0 = arith.constant 0 : i32
    %c0_i32_1 = arith.constant 0 : i32
    return %c0_i32, %c0_i32_0 : i32, i32
  }
  func.func @transform_3(%arg0: i32) -> (i32, i32, i32) {
    %c0_i32 = arith.constant 0 : i32
    %c0_i32_0 = arith.constant 0 : i32
    %c0_i32_1 = arith.constant 0 : i32
    %c0_i32_2 = arith.constant 0 : i32
    return %c0_i32, %c0_i32_0, %c0_i32_1 : i32, i32, i32
  }
  func.func @transform_4(%arg0: i32) -> (i32, i32) {
    %c0_i32 = arith.constant 0 : i32
    %c0_i32_0 = arith.constant 0 : i32
    %c0_i32_1 = arith.constant 0 : i32
    return %c0_i32, %c0_i32_0 : i32, i32
  }
  func.func @transform_5(%arg0: i32) -> (i32, i32) {
    %c0_i32 = arith.constant 0 : i32
    %c0_i32_0 = arith.constant 0 : i32
    %c0_i32_1 = arith.constant 0 : i32
    return %c0_i32, %c0_i32_0 : i32, i32
  }
  func.func @transform_6(%arg0: i32) -> (i32, i32) {
    %c0_i32 = arith.constant 0 : i32
    %c0_i32_0 = arith.constant 0 : i32
    %c0_i32_1 = arith.constant 0 : i32
    return %c0_i32, %c0_i32_0 : i32, i32
  }
  func.func @transform_7(%arg0: i32) -> (i32, i32) {
    %c0_i32 = arith.constant 0 : i32
    %c0_i32_0 = arith.constant 0 : i32
    %c0_i32_1 = arith.constant 0 : i32
    return %c0_i32, %c0_i32_0 : i32, i32
  }
  func.func @transform_8(%arg0: i32) -> (i32, i32) {
    %c0_i32 = arith.constant 0 : i32
    %c0_i32_0 = arith.constant 0 : i32
    %c0_i32_1 = arith.constant 0 : i32
    return %c0_i32, %c0_i32_0 : i32, i32
  }
  func.func @transform_9(%arg0: i32) -> (i32, i32) {
    %c0_i32 = arith.constant 0 : i32
    %c0_i32_0 = arith.constant 0 : i32
    %c0_i32_1 = arith.constant 0 : i32
    return %c0_i32, %c0_i32_0 : i32, i32
  }
  func.func @transform_10(%arg0: i32) -> (i32, i32) {
    %c0_i32 = arith.constant 0 : i32
    %c0_i32_0 = arith.constant 0 : i32
    %c0_i32_1 = arith.constant 0 : i32
    return %c0_i32, %c0_i32_0 : i32, i32
  }
  func.func @transform_11(%arg0: i32) -> (i32, i32) {
    %c0_i32 = arith.constant 0 : i32
    %c0_i32_0 = arith.constant 0 : i32
    return %arg0, %c0_i32 : i32, i32
  }
}

</mosaic_0001>

<llo_original>
// kernel: forward_pallas.1
$region0: #{forward_pallas.1}
  #allocation0 [shape = 'u32[]', space=smem, size = 0x4, offset = 0x4, fixed_abs, tag = 'smem constant byte address 0x4 - core index']
  #allocation1 [shape = 'u32[144,128]{1,0:T(1,128)}', space=vmem, size = 0x12000, scoped, tag = 'internal scratch']
  #allocation21 [shape = 's32[]', space=sflag, size = 0x4, offset = 0, fixed_abs, tag = 'sflag constant byte address 0x0 - dummy sync flag']
  %s0 = inlined_call_operand.hbm [shape: bf16[64,32,256], index: 0, kind: input, shape index: {}]
  %s1 = inlined_call_operand.hbm [shape: bf16[256,64], index: 1, kind: input, shape index: {}]
  %s2 = inlined_call_operand.hbm [shape: f32[1,64], index: 2, kind: input, shape index: {}]
  %s3 = inlined_call_operand.hbm [shape: f32[9,64,16], index: 3, kind: input, shape index: {}]
  %s4 = inlined_call_operand.hbm [shape: f32[1,16], index: 4, kind: input, shape index: {}]
  %s5 = inlined_call_operand.hbm [shape: f32[16,256], index: 5, kind: input, shape index: {}]
  %s6 = inlined_call_operand.hbm [shape: f32[1,256], index: 6, kind: input, shape index: {}]
  %s7 = inlined_call_operand.hbm [shape: f32[256,128], index: 7, kind: input, shape index: {}]
  %s8 = inlined_call_operand.hbm [shape: f32[1,128], index: 8, kind: input, shape index: {}]
  %s9 = inlined_call_operand.hbm [shape: f32[128,256], index: 9, kind: input, shape index: {}]
  %s10 = inlined_call_operand.hbm [shape: f32[1,256], index: 10, kind: input, shape index: {}]
  %s11 = inlined_call_operand.hbm [shape: f32[32,256], index: 11, kind: output, shape index: {}]
  %s12 = sld [smem:[#allocation0]]
  $region121: #{forward_pallas.1} parent=0
    _
  %s14 = ssub.s32 1, %s12
  %s15 = scalar_select 0, %s14, %s12
  $region1: #{forward_pallas.1} parent=0
    #allocation2 [shape = 'u8[1048576]{0}', space=vmem, size = 0x100000, scoped, tag = 'input window, operand 0']
    #allocation3 [shape = 's32[2]{0}', space=sflag, size = 0x8, scoped, tag = 'scoped memory for forward_pallas.1']
    #allocation4 [shape = 's32[2]{0}', space=sflag, size = 0x8, scoped, tag = 'scoped memory for forward_pallas.1']
    #allocation5 [shape = 'u8[65536]{0}', space=vmem, size = 0x10000, scoped, tag = 'input window, operand 1, single buffered']
    #allocation6 [shape = 's32[1]{0}', space=sflag, size = 0x4, scoped, tag = 'scoped memory for forward_pallas.1']
    #allocation7 [shape = 'u8[512]{0}', space=vmem, size = 0x400, scoped, tag = 'input window, operand 2, single buffered']
    #allocation8 [shape = 'u8[294912]{0}', space=vmem, size = 0x48000, scoped, tag = 'input window, operand 3, single buffered']
    #allocation9 [shape = 's32[1]{0}', space=sflag, size = 0x4, scoped, tag = 'scoped memory for forward_pallas.1']
    #allocation10 [shape = 'u8[512]{0}', space=vmem, size = 0x400, scoped, tag = 'input window, operand 4, single buffered']
    #allocation11 [shape = 'u8[16384]{0}', space=vmem, size = 0x4000, scoped, tag = 'input window, operand 5, single buffered']
    #allocation12 [shape = 's32[1]{0}', space=sflag, size = 0x4, scoped, tag = 'scoped memory for forward_pallas.1']
    #allocation13 [shape = 'u8[1024]{0}', space=vmem, size = 0x400, scoped, tag = 'input window, operand 6, single buffered']
    #allocation14 [shape = 'u8[131072]{0}', space=vmem, size = 0x20000, scoped, tag = 'input window, operand 7, single buffered']
    #allocation15 [shape = 's32[1]{0}', space=sflag, size = 0x4, scoped, tag = 'scoped memory for forward_pallas.1']
    #allocation16 [shape = 'u8[512]{0}', space=vmem, size = 0x400, scoped, tag = 'input window, operand 8, single buffered']
    #allocation17 [shape = 'u8[131072]{0}', space=vmem, size = 0x20000, scoped, tag = 'input window, operand 9, single buffered']
    #allocation18 [shape = 's32[1]{0}', space=sflag, size = 0x4, scoped, tag = 'scoped memory for forward_pallas.1']
    #allocation19 [shape = 'u8[1024]{0}', space=vmem, size = 0x400, scoped, tag = 'input window, operand 10, single buffered']
    #allocation20 [shape = 'u8[32768]{0}', space=vmem, size = 0x8000, scoped, tag = 'output window, operand 0']
    %16 = vsyncpa [#allocation3], 0
    %s17 = scalar_lea.sflag [#allocation3], 1
    %18 = vsyncpa %s17, 0
    %19 = vsyncpa [#allocation6], 0
    %20 = vsyncpa [#allocation9], 0
    %21 = vsyncpa [#allocation12], 0
    %22 = vsyncpa [#allocation15], 0
    %23 = vsyncpa [#allocation18], 0
    %24 = vsyncpa [#allocation4], 0
    %s25 = scalar_lea.sflag [#allocation4], 1
    %26 = vsyncpa %s25, 0
    loop: start=0, step=1, limit=4
    $region2: #{forward_pallas.1} parent=1 // loop_pre_header
      _
    $region3: #{forward_pallas.1} parent=1 // loop_header
      %s28 = sphi 0, %s32
      %p29 = scmp.ge.s32.totalorder %s28, 4
      %s38 = sphi 0, %s40
      %s41 = sphi 0, %s38
      %s42 = sphi 0, %s41
      %s58 = sphi 0, %s42
      %s62 = sphi 0, %s62
      %s64 = sphi 0, %s62
      %s65 = sphi 0, %s64
      %s79 = sphi 0, %s65
      %s83 = sphi 0, %s83
      %s85 = sphi 0, %s83
      %s86 = sphi 0, %s85
      %s100 = sphi 0, %s86
      %s104 = sphi 0, %s104
      %s106 = sphi 0, %s104
      %s107 = sphi 0, %s106
      %s121 = sphi 0, %s107
      %s125 = sphi 0, %s125
      %s127 = sphi 0, %s125
      %s128 = sphi 0, %s127
      %s142 = sphi 0, %s128
      %s146 = sphi 0, %s146
      %s148 = sphi 0, %s146
      %s149 = sphi 0, %s148
      %s163 = sphi 0, %s149
      %s167 = sphi 0, %s167
      %s169 = sphi 0, %s167
      %s170 = sphi 0, %s169
      %s184 = sphi 0, %s170
      %s188 = sphi 0, %s188
      %s190 = sphi 0, %s188
      %s191 = sphi 0, %s190
      %s205 = sphi 0, %s191
      %s209 = sphi 0, %s209
      %s211 = sphi 0, %s209
      %s212 = sphi 0, %s211
      %s226 = sphi 0, %s212
      %s230 = sphi 0, %s230
      %s232 = sphi 0, %s230
      %s233 = sphi 0, %s232
      %s247 = sphi 0, %s233
      %s251 = sphi 0, %s251
      %s253 = sphi 0, %s251
      %s254 = sphi 0, %s253
      %s268 = sphi 0, %s254
      %s274 = sphi 0, %s276
      %s277 = sphi 0, %s274
      %s278 = sphi 0, %s277
      %s294 = sphi 0, %s278
    $region4: #{forward_pallas.1} parent=1 // loop_header_branch
      %31 = sbr.rel (%p29) target = $region8
    $region5: #{forward_pallas.1} parent=1 // loop_body
      %s33 = ssub.s32 %s28, 1
      %s34 = ssub.s32 %s28, 2
      %s35 = sadd.s32 %s28, 1
      %s36 = ssub.s32 %s28, %s35
      %p37 = scmp.eq.s32.totalorder %s36, 0
      %s39 = sadd.s32 %s38, 1
      %s40 = scalar_select %p37, %s38, %s39
      %p43 = pneg %p37
      %p44 = scmp.eq.s32.totalorder %s28, 1
      %p45 = por %p43, %p44
      %p46 = scmp.ne.s32.totalorder %s38, %s41
      %p47 = scmp.eq.s32.totalorder %s28, 0
      %p48 = por %p46, %p47
      %p49 = scmp.ne.s32.totalorder %s38, %s41
      %p50 = scmp.eq.s32.totalorder %s33, 1
      %p51 = por %p49, %p50
      %p52 = scmp.ne.s32.totalorder %s41, %s42
      %p53 = scmp.eq.s32.totalorder %s33, 0
      %p54 = por %p52, %p53
      %p55 = scmp.ne.s32.totalorder %s41, %s42
      %p56 = scmp.eq.s32.totalorder %s34, 1
      %p57 = por %p55, %p56
      %p59 = scmp.ne.s32.totalorder %s42, %s58
      %p60 = scmp.eq.s32.totalorder %s34, 0
      %p61 = por %p59, %p60
      %s63 = sadd.s32 %s62, 1
      %p66 = scmp.eq.s32.totalorder %s28, 1
      %p67 = scmp.ne.s32.totalorder %s62, %s64
      %p68 = scmp.eq.s32.totalorder %s28, 0
      %p69 = por %p67, %p68
      %p70 = scmp.ne.s32.totalorder %s62, %s64
      %p71 = scmp.eq.s32.totalorder %s33, 1
      %p72 = por %p70, %p71
      %p73 = scmp.ne.s32.totalorder %s64, %s65
      %p74 = scmp.eq.s32.totalorder %s33, 0
      %p75 = por %p73, %p74
      %p76 = scmp.ne.s32.totalorder %s64, %s65
      %p77 = scmp.eq.s32.totalorder %s34, 1
      %p78 = por %p76, %p77
      %p80 = scmp.ne.s32.totalorder %s65, %s79
      %p81 = scmp.eq.s32.totalorder %s34, 0
      %p82 = por %p80, %p81
      %s84 = sadd.s32 %s83, 1
      %p87 = scmp.eq.s32.totalorder %s28, 1
      %p88 = scmp.ne.s32.totalorder %s83, %s85
      %p89 = scmp.eq.s32.totalorder %s28, 0
      %p90 = por %p88, %p89
      %p91 = scmp.ne.s32.totalorder %s83, %s85
      %p92 = scmp.eq.s32.totalorder %s33, 1
      %p93 = por %p91, %p92
      %p94 = scmp.ne.s32.totalorder %s85, %s86
      %p95 = scmp.eq.s32.totalorder %s33, 0
      %p96 = por %p94, %p95
      %p97 = scmp.ne.s32.totalorder %s85, %s86
      %p98 = scmp.eq.s32.totalorder %s34, 1
      %p99 = por %p97, %p98
      %p101 = scmp.ne.s32.totalorder %s86, %s100
      %p102 = scmp.eq.s32.totalorder %s34, 0
      %p103 = por %p101, %p102
      %s105 = sadd.s32 %s104, 1
      %p108 = scmp.eq.s32.totalorder %s28, 1
      %p109 = scmp.ne.s32.totalorder %s104, %s106
      %p110 = scmp.eq.s32.totalorder %s28, 0
      %p111 = por %p109, %p110
      %p112 = scmp.ne.s32.totalorder %s104, %s106
      %p113 = scmp.eq.s32.totalorder %s33, 1
      %p114 = por %p112, %p113
      %p115 = scmp.ne.s32.totalorder %s106, %s107
      %p116 = scmp.eq.s32.totalorder %s33, 0
      %p117 = por %p115, %p116
      %p118 = scmp.ne.s32.totalorder %s106, %s107
      %p119 = scmp.eq.s32.totalorder %s34, 1
      %p120 = por %p118, %p119
      %p122 = scmp.ne.s32.totalorder %s107, %s121
      %p123 = scmp.eq.s32.totalorder %s34, 0
      %p124 = por %p122, %p123
      %s126 = sadd.s32 %s125, 1
      %p129 = scmp.eq.s32.totalorder %s28, 1
      %p130 = scmp.ne.s32.totalorder %s125, %s127
      %p131 = scmp.eq.s32.totalorder %s28, 0
      %p132 = por %p130, %p131
      %p133 = scmp.ne.s32.totalorder %s125, %s127
      %p134 = scmp.eq.s32.totalorder %s33, 1
      %p135 = por %p133, %p134
      %p136 = scmp.ne.s32.totalorder %s127, %s128
      %p137 = scmp.eq.s32.totalorder %s33, 0
      %p138 = por %p136, %p137
      %p139 = scmp.ne.s32.totalorder %s127, %s128
      %p140 = scmp.eq.s32.totalorder %s34, 1
      %p141 = por %p139, %p140
      %p143 = scmp.ne.s32.totalorder %s128, %s142
      %p144 = scmp.eq.s32.totalorder %s34, 0
      %p145 = por %p143, %p144
      %s147 = sadd.s32 %s146, 1
      %p150 = scmp.eq.s32.totalorder %s28, 1
      %p151 = scmp.ne.s32.totalorder %s146, %s148
      %p152 = scmp.eq.s32.totalorder %s28, 0
      %p153 = por %p151, %p152
      %p154 = scmp.ne.s32.totalorder %s146, %s148
      %p155 = scmp.eq.s32.totalorder %s33, 1
      %p156 = por %p154, %p155
      %p157 = scmp.ne.s32.totalorder %s148, %s149
      %p158 = scmp.eq.s32.totalorder %s33, 0
      %p159 = por %p157, %p158
      %p160 = scmp.ne.s32.totalorder %s148, %s149
      %p161 = scmp.eq.s32.totalorder %s34, 1
      %p162 = por %p160, %p161
      %p164 = scmp.ne.s32.totalorder %s149, %s163
      %p165 = scmp.eq.s32.totalorder %s34, 0
      %p166 = por %p164, %p165
      %s168 = sadd.s32 %s167, 1
      %p171 = scmp.eq.s32.totalorder %s28, 1
      %p172 = scmp.ne.s32.totalorder %s167, %s169
      %p173 = scmp.eq.s32.totalorder %s28, 0
      %p174 = por %p172, %p173
      %p175 = scmp.ne.s32.totalorder %s167, %s169
      %p176 = scmp.eq.s32.totalorder %s33, 1
      %p177 = por %p175, %p176
      %p178 = scmp.ne.s32.totalorder %s169, %s170
      %p179 = scmp.eq.s32.totalorder %s33, 0
      %p180 = por %p178, %p179
      %p181 = scmp.ne.s32.totalorder %s169, %s170
      %p182 = scmp.eq.s32.totalorder %s34, 1
      %p183 = por %p181, %p182
      %p185 = scmp.ne.s32.totalorder %s170, %s184
      %p186 = scmp.eq.s32.totalorder %s34, 0
      %p187 = por %p185, %p186
      %s189 = sadd.s32 %s188, 1
      %p192 = scmp.eq.s32.totalorder %s28, 1
      %p193 = scmp.ne.s32.totalorder %s188, %s190
      %p194 = scmp.eq.s32.totalorder %s28, 0
      %p195 = por %p193, %p194
      %p196 = scmp.ne.s32.totalorder %s188, %s190
      %p197 = scmp.eq.s32.totalorder %s33, 1
      %p198 = por %p196, %p197
      %p199 = scmp.ne.s32.totalorder %s190, %s191
      %p200 = scmp.eq.s32.totalorder %s33, 0
      %p201 = por %p199, %p200
      %p202 = scmp.ne.s32.totalorder %s190, %s191
      %p203 = scmp.eq.s32.totalorder %s34, 1
      %p204 = por %p202, %p203
      %p206 = scmp.ne.s32.totalorder %s191, %s205
      %p207 = scmp.eq.s32.totalorder %s34, 0
      %p208 = por %p206, %p207
      %s210 = sadd.s32 %s209, 1
      %p213 = scmp.eq.s32.totalorder %s28, 1
      %p214 = scmp.ne.s32.totalorder %s209, %s211
      %p215 = scmp.eq.s32.totalorder %s28, 0
      %p216 = por %p214, %p215
      %p217 = scmp.ne.s32.totalorder %s209, %s211
      %p218 = scmp.eq.s32.totalorder %s33, 1
      %p219 = por %p217, %p218
      %p220 = scmp.ne.s32.totalorder %s211, %s212
      %p221 = scmp.eq.s32.totalorder %s33, 0
      %p222 = por %p220, %p221
      %p223 = scmp.ne.s32.totalorder %s211, %s212
      %p224 = scmp.eq.s32.totalorder %s34, 1
      %p225 = por %p223, %p224
      %p227 = scmp.ne.s32.totalorder %s212, %s226
      %p228 = scmp.eq.s32.totalorder %s34, 0
      %p229 = por %p227, %p228
      %s231 = sadd.s32 %s230, 1
      %p234 = scmp.eq.s32.totalorder %s28, 1
      %p235 = scmp.ne.s32.totalorder %s230, %s232
      %p236 = scmp.eq.s32.totalorder %s28, 0
      %p237 = por %p235, %p236
      %p238 = scmp.ne.s32.totalorder %s230, %s232
      %p239 = scmp.eq.s32.totalorder %s33, 1
      %p240 = por %p238, %p239
      %p241 = scmp.ne.s32.totalorder %s232, %s233
      %p242 = scmp.eq.s32.totalorder %s33, 0
      %p243 = por %p241, %p242
      %p244 = scmp.ne.s32.totalorder %s232, %s233
      %p245 = scmp.eq.s32.totalorder %s34, 1
      %p246 = por %p244, %p245
      %p248 = scmp.ne.s32.totalorder %s233, %s247
      %p249 = scmp.eq.s32.totalorder %s34, 0
      %p250 = por %p248, %p249
      %s252 = sadd.s32 %s251, 1
      %p255 = scmp.eq.s32.totalorder %s28, 1
      %p256 = scmp.ne.s32.totalorder %s251, %s253
      %p257 = scmp.eq.s32.totalorder %s28, 0
      %p258 = por %p256, %p257
      %p259 = scmp.ne.s32.totalorder %s251, %s253
      %p260 = scmp.eq.s32.totalorder %s33, 1
      %p261 = por %p259, %p260
      %p262 = scmp.ne.s32.totalorder %s253, %s254
      %p263 = scmp.eq.s32.totalorder %s33, 0
      %p264 = por %p262, %p263
      %p265 = scmp.ne.s32.totalorder %s253, %s254
      %p266 = scmp.eq.s32.totalorder %s34, 1
      %p267 = por %p265, %p266
      %p269 = scmp.ne.s32.totalorder %s254, %s268
      %p270 = scmp.eq.s32.totalorder %s34, 0
      %p271 = por %p269, %p270
      %s272 = ssub.s32 %s28, %s35
      %p273 = scmp.eq.s32.totalorder %s272, 0
      %s275 = sadd.s32 %s274, 1
      %s276 = scalar_select %p273, %s274, %s275
      %p279 = pneg %p273
      %p280 = scmp.eq.s32.totalorder %s28, 1
      %p281 = por %p279, %p280
      %p282 = scmp.ne.s32.totalorder %s274, %s277
      %p283 = scmp.eq.s32.totalorder %s28, 0
      %p284 = por %p282, %p283
      %p285 = scmp.ne.s32.totalorder %s274, %s277
      %p286 = scmp.eq.s32.totalorder %s33, 1
      %p287 = por %p285, %p286
      %p288 = scmp.ne.s32.totalorder %s277, %s278
      %p289 = scmp.eq.s32.totalorder %s33, 0
      %p290 = por %p288, %p289
      %p291 = scmp.ne.s32.totalorder %s277, %s278
      %p292 = scmp.eq.s32.totalorder %s34, 1
      %p293 = por %p291, %p292
      %p295 = scmp.ne.s32.totalorder %s278, %s294
      %p296 = scmp.eq.s32.totalorder %s34, 0
      %p297 = por %p295, %p296
      %p298 = scmp.le.s32.totalorder 1, %s28
      %p299 = scmp.lt.s32.totalorder %s28, 3
      %p300 = pnand %p298, %p299
      %p301 = pneg %p300
      // Predicated region
      $region9: #{forward_pallas.1} parent=5 // pred_check
        _
      $region10: #{forward_pallas.1} parent=5 // pred_check_branch
        %303 = sbr.rel (%p300) target = $region12
      $region11: #{forward_pallas.1} parent=5 // pred_region
        %s304 = ssub.s32 %s28, 1
        // Predicated region
        $region13: #{forward_pallas.1} parent=11 // pred_check
          %p305 = pneg %p75
        $region14: #{forward_pallas.1} parent=11 // pred_check_branch
          %307 = sbr.rel (%p305) target = $region16
        $region15: #{forward_pallas.1} parent=11 // pred_region
          %s309 = ssub.s32 2048, 2048
          %310 = vsyncadd [#allocation6], %s309
          %s311 = sshll.u32 [#allocation5], 4
          %s312 = int_to_ptr.vmem [resolvable:$true] %s311
          %317 = dma.hbm_to_vmem [thread:$0]  %s1, 2048, %s312, [#allocation6], 64, 64, 4
        $region16: #{forward_pallas.1} parent=11 // pred_fallthru
          _
        // Predicated region
        $region17: #{forward_pallas.1} parent=11 // pred_check
          %p318 = pneg %p96
        $region18: #{forward_pallas.1} parent=11 // pred_check_branch
          %320 = sbr.rel (%p318) target = $region20
        $region19: #{forward_pallas.1} parent=11 // pred_region
          %s322 = ssub.s32 16, 16
          %323 = vsyncadd [#allocation6], %s322
          %s325 = sshll.u32 [#allocation7], 4
          %s326 = int_to_ptr.vmem [resolvable:$true] %s325
          %328 = dma.hbm_to_vmem [thread:$0]  %s2, 16, %s326, [#allocation6]
        $region20: #{forward_pallas.1} parent=11 // pred_fallthru
          _
        // Predicated region
        $region21: #{forward_pallas.1} parent=11 // pred_check
          %p329 = pneg %p117
        $region22: #{forward_pallas.1} parent=11 // pred_check_branch
          %331 = sbr.rel (%p329) target = $region24
        $region23: #{forward_pallas.1} parent=11 // pred_region
          %s333 = ssub.s32 9216, 9216
          %334 = vsyncadd [#allocation9], %s333
          %s335 = sshll.u32 [#allocation8], 4
          %s336 = int_to_ptr.vmem [resolvable:$true] %s335
          %341 = dma.hbm_to_vmem [thread:$0]  %s3, 9216, %s336, [#allocation9], 128, 128, 8
        $region24: #{forward_pallas.1} parent=11 // pred_fallthru
          _
        // Predicated region
        $region25: #{forward_pallas.1} parent=11 // pred_check
          %p342 = pneg %p138
        $region26: #{forward_pallas.1} parent=11 // pred_check_branch
          %344 = sbr.rel (%p342) target = $region28
        $region27: #{forward_pallas.1} parent=11 // pred_region
          %s346 = ssub.s32 16, 16
          %347 = vsyncadd [#allocation9], %s346
          %s349 = sshll.u32 [#allocation10], 4
          %s350 = int_to_ptr.vmem [resolvable:$true] %s349
          %352 = dma.hbm_to_vmem [thread:$0]  %s4, 16, %s350, [#allocation9]
        $region28: #{forward_pallas.1} parent=11 // pred_fallthru
          _
        // Predicated region
        $region29: #{forward_pallas.1} parent=11 // pred_check
          %p353 = pneg %p159
        $region30: #{forward_pallas.1} parent=11 // pred_check_branch
          %355 = sbr.rel (%p353) target = $region32
        $region31: #{forward_pallas.1} parent=11 // pred_region
          %s357 = ssub.s32 512, 512
          %358 = vsyncadd [#allocation12], %s357
          %s359 = sshll.u32 [#allocation11], 4
          %s360 = int_to_ptr.vmem [resolvable:$true] %s359
          %365 = dma.hbm_to_vmem [thread:$0]  %s5, 512, %s360, [#allocation12], 256, 256, 16
        $region32: #{forward_pallas.1} parent=11 // pred_fallthru
          _
        // Predicated region
        $region33: #{forward_pallas.1} parent=11 // pred_check
          %p366 = pneg %p180
        $region34: #{forward_pallas.1} parent=11 // pred_check_branch
          %368 = sbr.rel (%p366) target = $region36
        $region35: #{forward_pallas.1} parent=11 // pred_region
          %s370 = ssub.s32 32, 32
          %371 = vsyncadd [#allocation12], %s370
          %s373 = sshll.u32 [#allocation13], 4
          %s374 = int_to_ptr.vmem [resolvable:$true] %s373
          %376 = dma.hbm_to_vmem [thread:$0]  %s6, 32, %s374, [#allocation12]
        $region36: #{forward_pallas.1} parent=11 // pred_fallthru
          _
        // Predicated region
        $region37: #{forward_pallas.1} parent=11 // pred_check
          %p377 = pneg %p201
        $region38: #{forward_pallas.1} parent=11 // pred_check_branch
          %379 = sbr.rel (%p377) target = $region40
        $region39: #{forward_pallas.1} parent=11 // pred_region
          %s381 = ssub.s32 4096, 4096
          %382 = vsyncadd [#allocation15], %s381
          %s383 = sshll.u32 [#allocation14], 4
          %s384 = int_to_ptr.vmem [resolvable:$true] %s383
          %389 = dma.hbm_to_vmem [thread:$0]  %s7, 4096, %s384, [#allocation15], 128, 128, 8
        $region40: #{forward_pallas.1} parent=11 // pred_fallthru
          _
        // Predicated region
        $region41: #{forward_pallas.1} parent=11 // pred_check
          %p390 = pneg %p222
        $region42: #{forward_pallas.1} parent=11 // pred_check_branch
          %392 = sbr.rel (%p390) target = $region44
        $region43: #{forward_pallas.1} parent=11 // pred_region
          %s394 = ssub.s32 16, 16
          %395 = vsyncadd [#allocation15], %s394
          %s397 = sshll.u32 [#allocation16], 4
          %s398 = int_to_ptr.vmem [resolvable:$true] %s397
          %400 = dma.hbm_to_vmem [thread:$0]  %s8, 16, %s398, [#allocation15]
        $region44: #{forward_pallas.1} parent=11 // pred_fallthru
          _
        // Predicated region
        $region45: #{forward_pallas.1} parent=11 // pred_check
          %p401 = pneg %p243
        $region46: #{forward_pallas.1} parent=11 // pred_check_branch
          %403 = sbr.rel (%p401) target = $region48
        $region47: #{forward_pallas.1} parent=11 // pred_region
          %s405 = ssub.s32 4096, 4096
          %406 = vsyncadd [#allocation18], %s405
          %s407 = sshll.u32 [#allocation17], 4
          %s408 = int_to_ptr.vmem [resolvable:$true] %s407
          %413 = dma.hbm_to_vmem [thread:$0]  %s9, 4096, %s408, [#allocation18], 256, 256, 16
        $region48: #{forward_pallas.1} parent=11 // pred_fallthru
          _
        // Predicated region
        $region49: #{forward_pallas.1} parent=11 // pred_check
          %p414 = pneg %p264
        $region50: #{forward_pallas.1} parent=11 // pred_check_branch
          %416 = sbr.rel (%p414) target = $region52
        $region51: #{forward_pallas.1} parent=11 // pred_region
          %s418 = ssub.s32 32, 32
          %419 = vsyncadd [#allocation18], %s418
          %s421 = sshll.u32 [#allocation19], 4
          %s422 = int_to_ptr.vmem [resolvable:$true] %s421
          %424 = dma.hbm_to_vmem [thread:$0]  %s10, 32, %s422, [#allocation18]
        $region52: #{forward_pallas.1} parent=11 // pred_fallthru
          _
      $region12: #{forward_pallas.1} parent=5 // pred_fallthru
        _
      %p425 = scmp.lt.s32.totalorder %s28, 2
      // Predicated region
      $region53: #{forward_pallas.1} parent=5 // pred_check
        %p426 = pneg %p425
      $region54: #{forward_pallas.1} parent=5 // pred_check_branch
        %428 = sbr.rel (%p426) target = $region56
      $region55: #{forward_pallas.1} parent=5 // pred_region
        // Predicated region
        $region57: #{forward_pallas.1} parent=55 // pred_check
          %p429 = pneg %p48
        $region58: #{forward_pallas.1} parent=55 // pred_check_branch
          %431 = sbr.rel (%p429) target = $region60
        $region59: #{forward_pallas.1} parent=55 // pred_region
          #allocation22 [shape = 'u32[6]{0}', space=smem, size = 0x18, scoped, tag = 'DMA stride descriptor']
          %s432 = sand.u32 %s38, 1
          %s433 = scalar_lea.sflag [#allocation3], %s432
          %s434 = sand.u32 %s38, 1
          %s435 = smul.addr %s434, 1024
          %s436 = scalar_lea.vmem [#allocation2], %s435
          %s437 = smul.u32 2, %s28
          %s439 = ssub.s32 16384, 16384
          %440 = vsyncadd %s433, %s439
          %s441 = smul.addr %s437, 2
          %s442 = smul.addr %s441, 64
          %s443 = scalar_lea.hbm %s0, %s442
          %s445 = sshll.u32 1, 14
          %s446 = sxor.u32 4294967295, %s445
          %s448 = sld [smem:[#allocation0]]
          %s449 = sadd.s32 2, %s448
          %s451 = sshll.u32 7, 26
          %s452 = sxor.u32 4294967295, %s451
          %s453 = sand.u32 0, %s452
          %s454 = sshll.u32 %s449, 26
          %s455 = sor.u32 %s453, %s454
          %s456 = sshll.u32 %s436, 4
          %s457 = int_to_ptr.vmem [resolvable:$true] %s456
          %463 = sst [smem:[#allocation22]] 512
          %s464 = scalar_lea.smem [#allocation22], 1
          %465 = sst [smem:[%s464]] 256
          %s466 = scalar_lea.smem [#allocation22], 2
          %467 = sst [smem:[%s466]] 2
          %s468 = scalar_lea.smem [#allocation22], 3
          %469 = sst [smem:[%s468]] 128
          %s470 = scalar_lea.smem [#allocation22], 4
          %471 = sst [smem:[%s470]] 128
          %s472 = scalar_lea.smem [#allocation22], 5
          %473 = sst [smem:[%s472]] 8
          %475 = dma.general %s443, 16384, %s457, %s433, [#allocation21], [#allocation22], %s455, 0
        $region60: #{forward_pallas.1} parent=55 // pred_fallthru
          _
      $region56: #{forward_pallas.1} parent=5 // pred_fallthru
        _
      %p476 = scmp.le.s32.totalorder 1, %s28
      %p477 = scmp.lt.s32.totalorder %s28, 3
      %p478 = pnand %p476, %p477
      %p479 = pneg %p478
      // Predicated region
      $region61: #{forward_pallas.1} parent=5 // pred_check
        _
      $region62: #{forward_pallas.1} parent=5 // pred_check_branch
        %481 = sbr.rel (%p478) target = $region64
      $region63: #{forward_pallas.1} parent=5 // pred_region
        %s482 = ssub.s32 %s28, 1
        %s483 = sand.u32 %s41, 1
        %s484 = scalar_lea.sflag [#allocation3], %s483
        %s485 = sand.u32 %s41, 1
        %s486 = smul.addr %s485, 1024
        %s487 = scalar_lea.vmem [#allocation2], %s486
        // Predicated region
        $region65: #{forward_pallas.1} parent=63 // pred_check
          %p488 = pneg %p54
        $region66: #{forward_pallas.1} parent=63 // pred_check_branch
          %490 = sbr.rel (%p488) target = $region68
        $region67: #{forward_pallas.1} parent=63 // pred_region
          %491 = dma.done %s484, 16384
        $region68: #{forward_pallas.1} parent=63 // pred_fallthru
          _
        // Predicated region
        $region69: #{forward_pallas.1} parent=63 // pred_check
          %p492 = pneg %p75
        $region70: #{forward_pallas.1} parent=63 // pred_check_branch
          %494 = sbr.rel (%p492) target = $region72
        $region71: #{forward_pallas.1} parent=63 // pred_region
          %495 = dma.done [#allocation6], 2048
        $region72: #{forward_pallas.1} parent=63 // pred_fallthru
          _
        // Predicated region
        $region73: #{forward_pallas.1} parent=63 // pred_check
          %p496 = pneg %p96
        $region74: #{forward_pallas.1} parent=63 // pred_check_branch
          %498 = sbr.rel (%p496) target = $region76
        $region75: #{forward_pallas.1} parent=63 // pred_region
          %499 = dma.done [#allocation6], 16
        $region76: #{forward_pallas.1} parent=63 // pred_fallthru
          _
        // Predicated region
        $region77: #{forward_pallas.1} parent=63 // pred_check
          %p500 = pneg %p117
        $region78: #{forward_pallas.1} parent=63 // pred_check_branch
          %502 = sbr.rel (%p500) target = $region80
        $region79: #{forward_pallas.1} parent=63 // pred_region
          %503 = dma.done [#allocation9], 9216
        $region80: #{forward_pallas.1} parent=63 // pred_fallthru
          _
        // Predicated region
        $region81: #{forward_pallas.1} parent=63 // pred_check
          %p504 = pneg %p138
        $region82: #{forward_pallas.1} parent=63 // pred_check_branch
          %506 = sbr.rel (%p504) target = $region84
        $region83: #{forward_pallas.1} parent=63 // pred_region
          %507 = dma.done [#allocation9], 16
        $region84: #{forward_pallas.1} parent=63 // pred_fallthru
          _
        // Predicated region
        $region85: #{forward_pallas.1} parent=63 // pred_check
          %p508 = pneg %p159
        $region86: #{forward_pallas.1} parent=63 // pred_check_branch
          %510 = sbr.rel (%p508) target = $region88
        $region87: #{forward_pallas.1} parent=63 // pred_region
          %511 = dma.done [#allocation12], 512
        $region88: #{forward_pallas.1} parent=63 // pred_fallthru
          _
        // Predicated region
        $region89: #{forward_pallas.1} parent=63 // pred_check
          %p512 = pneg %p180
        $region90: #{forward_pallas.1} parent=63 // pred_check_branch
          %514 = sbr.rel (%p512) target = $region92
        $region91: #{forward_pallas.1} parent=63 // pred_region
          %515 = dma.done [#allocation12], 32
        $region92: #{forward_pallas.1} parent=63 // pred_fallthru
          _
        // Predicated region
        $region93: #{forward_pallas.1} parent=63 // pred_check
          %p516 = pneg %p201
        $region94: #{forward_pallas.1} parent=63 // pred_check_branch
          %518 = sbr.rel (%p516) target = $region96
        $region95: #{forward_pallas.1} parent=63 // pred_region
          %519 = dma.done [#allocation15], 4096
        $region96: #{forward_pallas.1} parent=63 // pred_fallthru
          _
        // Predicated region
        $region97: #{forward_pallas.1} parent=63 // pred_check
          %p520 = pneg %p222
        $region98: #{forward_pallas.1} parent=63 // pred_check_branch
          %522 = sbr.rel (%p520) target = $region100
        $region99: #{forward_pallas.1} parent=63 // pred_region
          %523 = dma.done [#allocation15], 16
        $region100: #{forward_pallas.1} parent=63 // pred_fallthru
          _
        // Predicated region
        $region101: #{forward_pallas.1} parent=63 // pred_check
          %p524 = pneg %p243
        $region102: #{forward_pallas.1} parent=63 // pred_check_branch
          %526 = sbr.rel (%p524) target = $region104
        $region103: #{forward_pallas.1} parent=63 // pred_region
          %527 = dma.done [#allocation18], 4096
        $region104: #{forward_pallas.1} parent=63 // pred_fallthru
          _
        // Predicated region
        $region105: #{forward_pallas.1} parent=63 // pred_check
          %p528 = pneg %p264
        $region106: #{forward_pallas.1} parent=63 // pred_check_branch
          %530 = sbr.rel (%p528) target = $region108
        $region107: #{forward_pallas.1} parent=63 // pred_region
          %531 = dma.done [#allocation18], 32
        $region108: #{forward_pallas.1} parent=63 // pred_fallthru
          _
        %s532 = sand.u32 %s41, 1
        %s533 = scalar_lea.sflag [#allocation3], %s532
        %s534 = sand.u32 %s41, 1
        %s535 = smul.addr %s534, 1024
        %s536 = scalar_lea.vmem [#allocation2], %s535
        %p537 = pneg %p54
        %p538 = pneg %p51
        %p539 = pneg %p75
        %p540 = pneg %p72
        %p541 = pneg %p96
        %p542 = pneg %p93
        %p543 = pneg %p117
        %p544 = pneg %p114
        %p545 = pneg %p138
        %p546 = pneg %p135
        %p547 = pneg %p159
        %p548 = pneg %p156
        %p549 = pneg %p180
        %p550 = pneg %p177
        %p551 = pneg %p201
        %p552 = pneg %p198
        %p553 = pneg %p222
        %p554 = pneg %p219
        %p555 = pneg %p243
        %p556 = pneg %p240
        %p557 = pneg %p264
        %p558 = pneg %p261
        %p559 = pneg %p290
        %p560 = pneg %p287
        %s561 = sand.u32 %s277, 1
        %s562 = scalar_lea.sflag [#allocation4], %s561
        %s563 = sand.u32 %s277, 1
        %s564 = smul.addr %s563, 32
        %s565 = scalar_lea.vmem [#allocation20], %s564
        %s566 = smul.u32 2, %s33
        %s567 = smul.u32 2, %s33
        %v569 = vld [vmem:[%s487] sm:$0xff]
        %v570 = vld [vmem:[%s487 + $0x8] sm:$0xff]
        %v571 = vld [vmem:[%s487 + $0x10] sm:$0xff]
        %v572 = vld [vmem:[%s487 + $0x18] sm:$0xff]
        %v573 = vld [vmem:[%s487 + $0x20] sm:$0xff]
        %v574 = vld [vmem:[%s487 + $0x28] sm:$0xff]
        %v575 = vld [vmem:[%s487 + $0x30] sm:$0xff]
        %v576 = vld [vmem:[%s487 + $0x38] sm:$0xff]
        %v577 = vld [vmem:[%s487 + $0x40] sm:$0xff]
        %v578 = vld [vmem:[%s487 + $0x48] sm:$0xff]
        %v579 = vld [vmem:[%s487 + $0x50] sm:$0xff]
        %v580 = vld [vmem:[%s487 + $0x58] sm:$0xff]
        %v581 = vld [vmem:[%s487 + $0x60] sm:$0xff]
        %v582 = vld [vmem:[%s487 + $0x68] sm:$0xff]
        %v583 = vld [vmem:[%s487 + $0x70] sm:$0xff]
        %v584 = vld [vmem:[%s487 + $0x78] sm:$0xff]
        %v585 = vld [vmem:[%s487 + $0x80] sm:$0xff]
        %v586 = vld [vmem:[%s487 + $0x88] sm:$0xff]
        %v587 = vld [vmem:[%s487 + $0x90] sm:$0xff]
        %v588 = vld [vmem:[%s487 + $0x98] sm:$0xff]
        %v589 = vld [vmem:[%s487 + $0xa0] sm:$0xff]
        %v590 = vld [vmem:[%s487 + $0xa8] sm:$0xff]
        %v591 = vld [vmem:[%s487 + $0xb0] sm:$0xff]
        %v592 = vld [vmem:[%s487 + $0xb8] sm:$0xff]
        %v593 = vld [vmem:[%s487 + $0xc0] sm:$0xff]
        %v594 = vld [vmem:[%s487 + $0xc8] sm:$0xff]
        %v595 = vld [vmem:[%s487 + $0xd0] sm:$0xff]
        %v596 = vld [vmem:[%s487 + $0xd8] sm:$0xff]
        %v597 = vld [vmem:[%s487 + $0xe0] sm:$0xff]
        %v598 = vld [vmem:[%s487 + $0xe8] sm:$0xff]
        %v599 = vld [vmem:[%s487 + $0xf0] sm:$0xff]
        %v600 = vld [vmem:[%s487 + $0xf8] sm:$0xff]
        %v601 = vld [vmem:[%s487 + $0x100] sm:$0xff]
        %v602 = vld [vmem:[%s487 + $0x108] sm:$0xff]
        %v603 = vld [vmem:[%s487 + $0x110] sm:$0xff]
        %v604 = vld [vmem:[%s487 + $0x118] sm:$0xff]
        %v605 = vld [vmem:[%s487 + $0x120] sm:$0xff]
        %v606 = vld [vmem:[%s487 + $0x128] sm:$0xff]
        %v607 = vld [vmem:[%s487 + $0x130] sm:$0xff]
        %v608 = vld [vmem:[%s487 + $0x138] sm:$0xff]
        %v609 = vld [vmem:[%s487 + $0x140] sm:$0xff]
        %v610 = vld [vmem:[%s487 + $0x148] sm:$0xff]
        %v611 = vld [vmem:[%s487 + $0x150] sm:$0xff]
        %v612 = vld [vmem:[%s487 + $0x158] sm:$0xff]
        %v613 = vld [vmem:[%s487 + $0x160] sm:$0xff]
        %v614 = vld [vmem:[%s487 + $0x168] sm:$0xff]
        %v615 = vld [vmem:[%s487 + $0x170] sm:$0xff]
        %v616 = vld [vmem:[%s487 + $0x178] sm:$0xff]
        %v617 = vld [vmem:[%s487 + $0x180] sm:$0xff]
        %v618 = vld [vmem:[%s487 + $0x188] sm:$0xff]
        %v619 = vld [vmem:[%s487 + $0x190] sm:$0xff]
        %v620 = vld [vmem:[%s487 + $0x198] sm:$0xff]
        %v621 = vld [vmem:[%s487 + $0x1a0] sm:$0xff]
        %v622 = vld [vmem:[%s487 + $0x1a8] sm:$0xff]
        %v623 = vld [vmem:[%s487 + $0x1b0] sm:$0xff]
        %v624 = vld [vmem:[%s487 + $0x1b8] sm:$0xff]
        %v625 = vld [vmem:[%s487 + $0x1c0] sm:$0xff]
        %v626 = vld [vmem:[%s487 + $0x1c8] sm:$0xff]
        %v627 = vld [vmem:[%s487 + $0x1d0] sm:$0xff]
        %v628 = vld [vmem:[%s487 + $0x1d8] sm:$0xff]
        %v629 = vld [vmem:[%s487 + $0x1e0] sm:$0xff]
        %v630 = vld [vmem:[%s487 + $0x1e8] sm:$0xff]
        %v631 = vld [vmem:[%s487 + $0x1f0] sm:$0xff]
        %v632 = vld [vmem:[%s487 + $0x1f8] sm:$0xff]
        %v633 = vld [vmem:[%s487 + $0x200] sm:$0xff]
        %v634 = vld [vmem:[%s487 + $0x208] sm:$0xff]
        %v635 = vld [vmem:[%s487 + $0x210] sm:$0xff]
        %v636 = vld [vmem:[%s487 + $0x218] sm:$0xff]
        %v637 = vld [vmem:[%s487 + $0x220] sm:$0xff]
        %v638 = vld [vmem:[%s487 + $0x228] sm:$0xff]
        %v639 = vld [vmem:[%s487 + $0x230] sm:$0xff]
        %v640 = vld [vmem:[%s487 + $0x238] sm:$0xff]
        %v641 = vld [vmem:[%s487 + $0x240] sm:$0xff]
        %v642 = vld [vmem:[%s487 + $0x248] sm:$0xff]
        %v643 = vld [vmem:[%s487 + $0x250] sm:$0xff]
        %v644 = vld [vmem:[%s487 + $0x258] sm:$0xff]
        %v645 = vld [vmem:[%s487 + $0x260] sm:$0xff]
        %v646 = vld [vmem:[%s487 + $0x268] sm:$0xff]
        %v647 = vld [vmem:[%s487 + $0x270] sm:$0xff]
        %v648 = vld [vmem:[%s487 + $0x278] sm:$0xff]
        %v649 = vld [vmem:[%s487 + $0x280] sm:$0xff]
        %v650 = vld [vmem:[%s487 + $0x288] sm:$0xff]
        %v651 = vld [vmem:[%s487 + $0x290] sm:$0xff]
        %v652 = vld [vmem:[%s487 + $0x298] sm:$0xff]
        %v653 = vld [vmem:[%s487 + $0x2a0] sm:$0xff]
        %v654 = vld [vmem:[%s487 + $0x2a8] sm:$0xff]
        %v655 = vld [vmem:[%s487 + $0x2b0] sm:$0xff]
        %v656 = vld [vmem:[%s487 + $0x2b8] sm:$0xff]
        %v657 = vld [vmem:[%s487 + $0x2c0] sm:$0xff]
        %v658 = vld [vmem:[%s487 + $0x2c8] sm:$0xff]
        %v659 = vld [vmem:[%s487 + $0x2d0] sm:$0xff]
        %v660 = vld [vmem:[%s487 + $0x2d8] sm:$0xff]
        %v661 = vld [vmem:[%s487 + $0x2e0] sm:$0xff]
        %v662 = vld [vmem:[%s487 + $0x2e8] sm:$0xff]
        %v663 = vld [vmem:[%s487 + $0x2f0] sm:$0xff]
        %v664 = vld [vmem:[%s487 + $0x2f8] sm:$0xff]
        %v665 = vld [vmem:[%s487 + $0x300] sm:$0xff]
        %v666 = vld [vmem:[%s487 + $0x308] sm:$0xff]
        %v667 = vld [vmem:[%s487 + $0x310] sm:$0xff]
        %v668 = vld [vmem:[%s487 + $0x318] sm:$0xff]
        %v669 = vld [vmem:[%s487 + $0x320] sm:$0xff]
        %v670 = vld [vmem:[%s487 + $0x328] sm:$0xff]
        %v671 = vld [vmem:[%s487 + $0x330] sm:$0xff]
        %v672 = vld [vmem:[%s487 + $0x338] sm:$0xff]
        %v673 = vld [vmem:[%s487 + $0x340] sm:$0xff]
        %v674 = vld [vmem:[%s487 + $0x348] sm:$0xff]
        %v675 = vld [vmem:[%s487 + $0x350] sm:$0xff]
        %v676 = vld [vmem:[%s487 + $0x358] sm:$0xff]
        %v677 = vld [vmem:[%s487 + $0x360] sm:$0xff]
        %v678 = vld [vmem:[%s487 + $0x368] sm:$0xff]
        %v679 = vld [vmem:[%s487 + $0x370] sm:$0xff]
        %v680 = vld [vmem:[%s487 + $0x378] sm:$0xff]
        %v681 = vld [vmem:[%s487 + $0x380] sm:$0xff]
        %v682 = vld [vmem:[%s487 + $0x388] sm:$0xff]
        %v683 = vld [vmem:[%s487 + $0x390] sm:$0xff]
        %v684 = vld [vmem:[%s487 + $0x398] sm:$0xff]
        %v685 = vld [vmem:[%s487 + $0x3a0] sm:$0xff]
        %v686 = vld [vmem:[%s487 + $0x3a8] sm:$0xff]
        %v687 = vld [vmem:[%s487 + $0x3b0] sm:$0xff]
        %v688 = vld [vmem:[%s487 + $0x3b8] sm:$0xff]
        %v689 = vld [vmem:[%s487 + $0x3c0] sm:$0xff]
        %v690 = vld [vmem:[%s487 + $0x3c8] sm:$0xff]
        %v691 = vld [vmem:[%s487 + $0x3d0] sm:$0xff]
        %v692 = vld [vmem:[%s487 + $0x3d8] sm:$0xff]
        %v693 = vld [vmem:[%s487 + $0x3e0] sm:$0xff]
        %v694 = vld [vmem:[%s487 + $0x3e8] sm:$0xff]
        %v695 = vld [vmem:[%s487 + $0x3f0] sm:$0xff]
        %v696 = vld [vmem:[%s487 + $0x3f8] sm:$0xff]
        %v697 = vld [vmem:[#allocation5] sm:$0xf]
        %v698 = vld [vmem:[#allocation5 + $0x4] sm:$0xf]
        %v699 = vld [vmem:[#allocation5 + $0x8] sm:$0xf]
        %v700 = vld [vmem:[#allocation5 + $0xc] sm:$0xf]
        %v701 = vld [vmem:[#allocation5 + $0x10] sm:$0xf]
        %v702 = vld [vmem:[#allocation5 + $0x14] sm:$0xf]
        %v703 = vld [vmem:[#allocation5 + $0x18] sm:$0xf]
        %v704 = vld [vmem:[#allocation5 + $0x1c] sm:$0xf]
        %v705 = vld [vmem:[#allocation5 + $0x20] sm:$0xf]
        %v706 = vld [vmem:[#allocation5 + $0x24] sm:$0xf]
        %v707 = vld [vmem:[#allocation5 + $0x28] sm:$0xf]
        %v708 = vld [vmem:[#allocation5 + $0x2c] sm:$0xf]
        %v709 = vld [vmem:[#allocation5 + $0x30] sm:$0xf]
        %v710 = vld [vmem:[#allocation5 + $0x34] sm:$0xf]
        %v711 = vld [vmem:[#allocation5 + $0x38] sm:$0xf]
        %v712 = vld [vmem:[#allocation5 + $0x3c] sm:$0xf]
        %v713 = vld [vmem:[#allocation5 + $0x40] sm:$0xf]
        %v714 = vld [vmem:[#allocation5 + $0x44] sm:$0xf]
        %v715 = vld [vmem:[#allocation5 + $0x48] sm:$0xf]
        %v716 = vld [vmem:[#allocation5 + $0x4c] sm:$0xf]
        %v717 = vld [vmem:[#allocation5 + $0x50] sm:$0xf]
        %v718 = vld [vmem:[#allocation5 + $0x54] sm:$0xf]
        %v719 = vld [vmem:[#allocation5 + $0x58] sm:$0xf]
        %v720 = vld [vmem:[#allocation5 + $0x5c] sm:$0xf]
        %v721 = vld [vmem:[#allocation5 + $0x60] sm:$0xf]
        %v722 = vld [vmem:[#allocation5 + $0x64] sm:$0xf]
        %v723 = vld [vmem:[#allocation5 + $0x68] sm:$0xf]
        %v724 = vld [vmem:[#allocation5 + $0x6c] sm:$0xf]
        %v725 = vld [vmem:[#allocation5 + $0x70] sm:$0xf]
        %v726 = vld [vmem:[#allocation5 + $0x74] sm:$0xf]
        %v727 = vld [vmem:[#allocation5 + $0x78] sm:$0xf]
        %v728 = vld [vmem:[#allocation5 + $0x7c] sm:$0xf]
        %v857 = vunpack.c.l.b16 %v569
        %v858 = vunpack.c.h.b16 %v569
        %v859 = vunpack.c.l.b16 %v570
        %v860 = vunpack.c.h.b16 %v570
        %v861 = vunpack.c.l.b16 %v571
        %v862 = vunpack.c.h.b16 %v571
        %v863 = vunpack.c.l.b16 %v572
        %v864 = vunpack.c.h.b16 %v572
        %v865 = vunpack.c.l.b16 %v573
        %v866 = vunpack.c.h.b16 %v573
        %v867 = vunpack.c.l.b16 %v574
        %v868 = vunpack.c.h.b16 %v574
        %v869 = vunpack.c.l.b16 %v575
        %v870 = vunpack.c.h.b16 %v575
        %v871 = vunpack.c.l.b16 %v576
        %v872 = vunpack.c.h.b16 %v576
        %v873 = vunpack.c.l.b16 %v577
        %v874 = vunpack.c.h.b16 %v577
        %v875 = vunpack.c.l.b16 %v578
        %v876 = vunpack.c.h.b16 %v578
        %v877 = vunpack.c.l.b16 %v579
        %v878 = vunpack.c.h.b16 %v579
        %v879 = vunpack.c.l.b16 %v580
        %v880 = vunpack.c.h.b16 %v580
        %v881 = vunpack.c.l.b16 %v581
        %v882 = vunpack.c.h.b16 %v581
        %v883 = vunpack.c.l.b16 %v582
        %v884 = vunpack.c.h.b16 %v582
        %v885 = vunpack.c.l.b16 %v583
        %v886 = vunpack.c.h.b16 %v583
        %v887 = vunpack.c.l.b16 %v584
        %v888 = vunpack.c.h.b16 %v584
        %v889 = vunpack.c.l.b16 %v585
        %v890 = vunpack.c.h.b16 %v585
        %v891 = vunpack.c.l.b16 %v586
        %v892 = vunpack.c.h.b16 %v586
        %v893 = vunpack.c.l.b16 %v587
        %v894 = vunpack.c.h.b16 %v587
        %v895 = vunpack.c.l.b16 %v588
        %v896 = vunpack.c.h.b16 %v588
        %v897 = vunpack.c.l.b16 %v589
        %v898 = vunpack.c.h.b16 %v589
        %v899 = vunpack.c.l.b16 %v590
        %v900 = vunpack.c.h.b16 %v590
        %v901 = vunpack.c.l.b16 %v591
        %v902 = vunpack.c.h.b16 %v591
        %v903 = vunpack.c.l.b16 %v592
        %v904 = vunpack.c.h.b16 %v592
        %v905 = vunpack.c.l.b16 %v593
        %v906 = vunpack.c.h.b16 %v593
        %v907 = vunpack.c.l.b16 %v594
        %v908 = vunpack.c.h.b16 %v594
        %v909 = vunpack.c.l.b16 %v595
        %v910 = vunpack.c.h.b16 %v595
        %v911 = vunpack.c.l.b16 %v596
        %v912 = vunpack.c.h.b16 %v596
        %v913 = vunpack.c.l.b16 %v597
        %v914 = vunpack.c.h.b16 %v597
        %v915 = vunpack.c.l.b16 %v598
        %v916 = vunpack.c.h.b16 %v598
        %v917 = vunpack.c.l.b16 %v599
        %v918 = vunpack.c.h.b16 %v599
        %v919 = vunpack.c.l.b16 %v600
        %v920 = vunpack.c.h.b16 %v600
        %v921 = vunpack.c.l.b16 %v601
        %v922 = vunpack.c.h.b16 %v601
        %v923 = vunpack.c.l.b16 %v602
        %v924 = vunpack.c.h.b16 %v602
        %v925 = vunpack.c.l.b16 %v603
        %v926 = vunpack.c.h.b16 %v603
        %v927 = vunpack.c.l.b16 %v604
        %v928 = vunpack.c.h.b16 %v604
        %v929 = vunpack.c.l.b16 %v605
        %v930 = vunpack.c.h.b16 %v605
        %v931 = vunpack.c.l.b16 %v606
        %v932 = vunpack.c.h.b16 %v606
        %v933 = vunpack.c.l.b16 %v607
        %v934 = vunpack.c.h.b16 %v607
        %v935 = vunpack.c.l.b16 %v608
        %v936 = vunpack.c.h.b16 %v608
        %v937 = vunpack.c.l.b16 %v609
        %v938 = vunpack.c.h.b16 %v609
        %v939 = vunpack.c.l.b16 %v610
        %v940 = vunpack.c.h.b16 %v610
        %v941 = vunpack.c.l.b16 %v611
        %v942 = vunpack.c.h.b16 %v611
        %v943 = vunpack.c.l.b16 %v612
        %v944 = vunpack.c.h.b16 %v612
        %v945 = vunpack.c.l.b16 %v613
        %v946 = vunpack.c.h.b16 %v613
        %v947 = vunpack.c.l.b16 %v614
        %v948 = vunpack.c.h.b16 %v614
        %v949 = vunpack.c.l.b16 %v615
        %v950 = vunpack.c.h.b16 %v615
        %v951 = vunpack.c.l.b16 %v616
        %v952 = vunpack.c.h.b16 %v616
        %v953 = vunpack.c.l.b16 %v617
        %v954 = vunpack.c.h.b16 %v617
        %v955 = vunpack.c.l.b16 %v618
        %v956 = vunpack.c.h.b16 %v618
        %v957 = vunpack.c.l.b16 %v619
        %v958 = vunpack.c.h.b16 %v619
        %v959 = vunpack.c.l.b16 %v620
        %v960 = vunpack.c.h.b16 %v620
        %v961 = vunpack.c.l.b16 %v621
        %v962 = vunpack.c.h.b16 %v621
        %v963 = vunpack.c.l.b16 %v622
        %v964 = vunpack.c.h.b16 %v622
        %v965 = vunpack.c.l.b16 %v623
        %v966 = vunpack.c.h.b16 %v623
        %v967 = vunpack.c.l.b16 %v624
        %v968 = vunpack.c.h.b16 %v624
        %v969 = vunpack.c.l.b16 %v625
        %v970 = vunpack.c.h.b16 %v625
        %v971 = vunpack.c.l.b16 %v626
        %v972 = vunpack.c.h.b16 %v626
        %v973 = vunpack.c.l.b16 %v627
        %v974 = vunpack.c.h.b16 %v627
        %v975 = vunpack.c.l.b16 %v628
        %v976 = vunpack.c.h.b16 %v628
        %v977 = vunpack.c.l.b16 %v629
        %v978 = vunpack.c.h.b16 %v629
        %v979 = vunpack.c.l.b16 %v630
        %v980 = vunpack.c.h.b16 %v630
        %v981 = vunpack.c.l.b16 %v631
        %v982 = vunpack.c.h.b16 %v631
        %v983 = vunpack.c.l.b16 %v632
        %v984 = vunpack.c.h.b16 %v632
        %v985 = vunpack.c.l.b16 %v633
        %v986 = vunpack.c.h.b16 %v633
        %v987 = vunpack.c.l.b16 %v634
        %v988 = vunpack.c.h.b16 %v634
        %v989 = vunpack.c.l.b16 %v635
        %v990 = vunpack.c.h.b16 %v635
        %v991 = vunpack.c.l.b16 %v636
        %v992 = vunpack.c.h.b16 %v636
        %v993 = vunpack.c.l.b16 %v637
        %v994 = vunpack.c.h.b16 %v637
        %v995 = vunpack.c.l.b16 %v638
        %v996 = vunpack.c.h.b16 %v638
        %v997 = vunpack.c.l.b16 %v639
        %v998 = vunpack.c.h.b16 %v639
        %v999 = vunpack.c.l.b16 %v640
        %v1000 = vunpack.c.h.b16 %v640
        %v1001 = vunpack.c.l.b16 %v641
        %v1002 = vunpack.c.h.b16 %v641
        %v1003 = vunpack.c.l.b16 %v642
        %v1004 = vunpack.c.h.b16 %v642
        %v1005 = vunpack.c.l.b16 %v643
        %v1006 = vunpack.c.h.b16 %v643
        %v1007 = vunpack.c.l.b16 %v644
        %v1008 = vunpack.c.h.b16 %v644
        %v1009 = vunpack.c.l.b16 %v645
        %v1010 = vunpack.c.h.b16 %v645
        %v1011 = vunpack.c.l.b16 %v646
        %v1012 = vunpack.c.h.b16 %v646
        %v1013 = vunpack.c.l.b16 %v647
        %v1014 = vunpack.c.h.b16 %v647
        %v1015 = vunpack.c.l.b16 %v648
        %v1016 = vunpack.c.h.b16 %v648
        %v1017 = vunpack.c.l.b16 %v649
        %v1018 = vunpack.c.h.b16 %v649
        %v1019 = vunpack.c.l.b16 %v650
        %v1020 = vunpack.c.h.b16 %v650
        %v1021 = vunpack.c.l.b16 %v651
        %v1022 = vunpack.c.h.b16 %v651
        %v1023 = vunpack.c.l.b16 %v652
        %v1024 = vunpack.c.h.b16 %v652
        %v1025 = vunpack.c.l.b16 %v653
        %v1026 = vunpack.c.h.b16 %v653
        %v1027 = vunpack.c.l.b16 %v654
        %v1028 = vunpack.c.h.b16 %v654
        %v1029 = vunpack.c.l.b16 %v655
        %v1030 = vunpack.c.h.b16 %v655
        %v1031 = vunpack.c.l.b16 %v656
        %v1032 = vunpack.c.h.b16 %v656
        %v1033 = vunpack.c.l.b16 %v657
        %v1034 = vunpack.c.h.b16 %v657
        %v1035 = vunpack.c.l.b16 %v658
        %v1036 = vunpack.c.h.b16 %v658
        %v1037 = vunpack.c.l.b16 %v659
        %v1038 = vunpack.c.h.b16 %v659
        %v1039 = vunpack.c.l.b16 %v660
        %v1040 = vunpack.c.h.b16 %v660
        %v1041 = vunpack.c.l.b16 %v661
        %v1042 = vunpack.c.h.b16 %v661
        %v1043 = vunpack.c.l.b16 %v662
        %v1044 = vunpack.c.h.b16 %v662
        %v1045 = vunpack.c.l.b16 %v663
        %v1046 = vunpack.c.h.b16 %v663
        %v1047 = vunpack.c.l.b16 %v664
        %v1048 = vunpack.c.h.b16 %v664
        %v1049 = vunpack.c.l.b16 %v665
        %v1050 = vunpack.c.h.b16 %v665
        %v1051 = vunpack.c.l.b16 %v666
        %v1052 = vunpack.c.h.b16 %v666
        %v1053 = vunpack.c.l.b16 %v667
        %v1054 = vunpack.c.h.b16 %v667
        %v1055 = vunpack.c.l.b16 %v668
        %v1056 = vunpack.c.h.b16 %v668
        %v1057 = vunpack.c.l.b16 %v669
        %v1058 = vunpack.c.h.b16 %v669
        %v1059 = vunpack.c.l.b16 %v670
        %v1060 = vunpack.c.h.b16 %v670
        %v1061 = vunpack.c.l.b16 %v671
        %v1062 = vunpack.c.h.b16 %v671
        %v1063 = vunpack.c.l.b16 %v672
        %v1064 = vunpack.c.h.b16 %v672
        %v1065 = vunpack.c.l.b16 %v673
        %v1066 = vunpack.c.h.b16 %v673
        %v1067 = vunpack.c.l.b16 %v674
        %v1068 = vunpack.c.h.b16 %v674
        %v1069 = vunpack.c.l.b16 %v675
        %v1070 = vunpack.c.h.b16 %v675
        %v1071 = vunpack.c.l.b16 %v676
        %v1072 = vunpack.c.h.b16 %v676
        %v1073 = vunpack.c.l.b16 %v677
        %v1074 = vunpack.c.h.b16 %v677
        %v1075 = vunpack.c.l.b16 %v678
        %v1076 = vunpack.c.h.b16 %v678
        %v1077 = vunpack.c.l.b16 %v679
        %v1078 = vunpack.c.h.b16 %v679
        %v1079 = vunpack.c.l.b16 %v680
        %v1080 = vunpack.c.h.b16 %v680
        %v1081 = vunpack.c.l.b16 %v681
        %v1082 = vunpack.c.h.b16 %v681
        %v1083 = vunpack.c.l.b16 %v682
        %v1084 = vunpack.c.h.b16 %v682
        %v1085 = vunpack.c.l.b16 %v683
        %v1086 = vunpack.c.h.b16 %v683
        %v1087 = vunpack.c.l.b16 %v684
        %v1088 = vunpack.c.h.b16 %v684
        %v1089 = vunpack.c.l.b16 %v685
        %v1090 = vunpack.c.h.b16 %v685
        %v1091 = vunpack.c.l.b16 %v686
        %v1092 = vunpack.c.h.b16 %v686
        %v1093 = vunpack.c.l.b16 %v687
        %v1094 = vunpack.c.h.b16 %v687
        %v1095 = vunpack.c.l.b16 %v688
        %v1096 = vunpack.c.h.b16 %v688
        %v1097 = vunpack.c.l.b16 %v689
        %v1098 = vunpack.c.h.b16 %v689
        %v1099 = vunpack.c.l.b16 %v690
        %v1100 = vunpack.c.h.b16 %v690
        %v1101 = vunpack.c.l.b16 %v691
        %v1102 = vunpack.c.h.b16 %v691
        %v1103 = vunpack.c.l.b16 %v692
        %v1104 = vunpack.c.h.b16 %v692
        %v1105 = vunpack.c.l.b16 %v693
        %v1106 = vunpack.c.h.b16 %v693
        %v1107 = vunpack.c.l.b16 %v694
        %v1108 = vunpack.c.h.b16 %v694
        %v1109 = vunpack.c.l.b16 %v695
        %v1110 = vunpack.c.h.b16 %v695
        %v1111 = vunpack.c.l.b16 %v696
        %v1112 = vunpack.c.h.b16 %v696
        %v1113 = vpack.c.b16 %v859, %v857
        %v1114 = vpack.c.b16 %v860, %v858
        %v1115 = vpack.c.b16 %v863, %v861
        %v1116 = vpack.c.b16 %v864, %v862
        %v1117 = vpack.c.b16 %v867, %v865
        %v1118 = vpack.c.b16 %v868, %v866
        %v1119 = vpack.c.b16 %v871, %v869
        %v1120 = vpack.c.b16 %v872, %v870
        %v1121 = vpack.c.b16 %v875, %v873
        %v1122 = vpack.c.b16 %v876, %v874
        %v1123 = vpack.c.b16 %v879, %v877
        %v1124 = vpack.c.b16 %v880, %v878
        %v1125 = vpack.c.b16 %v883, %v881
        %v1126 = vpack.c.b16 %v884, %v882
        %v1127 = vpack.c.b16 %v887, %v885
        %v1128 = vpack.c.b16 %v888, %v886
        %v1129 = vpack.c.b16 %v891, %v889
        %v1130 = vpack.c.b16 %v892, %v890
        %v1131 = vpack.c.b16 %v895, %v893
        %v1132 = vpack.c.b16 %v896, %v894
        %v1133 = vpack.c.b16 %v899, %v897
        %v1134 = vpack.c.b16 %v900, %v898
        %v1135 = vpack.c.b16 %v903, %v901
        %v1136 = vpack.c.b16 %v904, %v902
        %v1137 = vpack.c.b16 %v907, %v905
        %v1138 = vpack.c.b16 %v908, %v906
        %v1139 = vpack.c.b16 %v911, %v909
        %v1140 = vpack.c.b16 %v912, %v910
        %v1141 = vpack.c.b16 %v915, %v913
        %v1142 = vpack.c.b16 %v916, %v914
        %v1143 = vpack.c.b16 %v919, %v917
        %v1144 = vpack.c.b16 %v920, %v918
        %v1145 = vpack.c.b16 %v923, %v921
        %v1146 = vpack.c.b16 %v924, %v922
        %v1147 = vpack.c.b16 %v927, %v925
        %v1148 = vpack.c.b16 %v928, %v926
        %v1149 = vpack.c.b16 %v931, %v929
        %v1150 = vpack.c.b16 %v932, %v930
        %v1151 = vpack.c.b16 %v935, %v933
        %v1152 = vpack.c.b16 %v936, %v934
        %v1153 = vpack.c.b16 %v939, %v937
        %v1154 = vpack.c.b16 %v940, %v938
        %v1155 = vpack.c.b16 %v943, %v941
        %v1156 = vpack.c.b16 %v944, %v942
        %v1157 = vpack.c.b16 %v947, %v945
        %v1158 = vpack.c.b16 %v948, %v946
        %v1159 = vpack.c.b16 %v951, %v949
        %v1160 = vpack.c.b16 %v952, %v950
        %v1161 = vpack.c.b16 %v955, %v953
        %v1162 = vpack.c.b16 %v956, %v954
        %v1163 = vpack.c.b16 %v959, %v957
        %v1164 = vpack.c.b16 %v960, %v958
        %v1165 = vpack.c.b16 %v963, %v961
        %v1166 = vpack.c.b16 %v964, %v962
        %v1167 = vpack.c.b16 %v967, %v965
        %v1168 = vpack.c.b16 %v968, %v966
        %v1169 = vpack.c.b16 %v971, %v969
        %v1170 = vpack.c.b16 %v972, %v970
        %v1171 = vpack.c.b16 %v975, %v973
        %v1172 = vpack.c.b16 %v976, %v974
        %v1173 = vpack.c.b16 %v979, %v977
        %v1174 = vpack.c.b16 %v980, %v978
        %v1175 = vpack.c.b16 %v983, %v981
        %v1176 = vpack.c.b16 %v984, %v982
        %v1177 = vpack.c.b16 %v987, %v985
        %v1178 = vpack.c.b16 %v988, %v986
        %v1179 = vpack.c.b16 %v991, %v989
        %v1180 = vpack.c.b16 %v992, %v990
        %v1181 = vpack.c.b16 %v995, %v993
        %v1182 = vpack.c.b16 %v996, %v994
        %v1183 = vpack.c.b16 %v999, %v997
        %v1184 = vpack.c.b16 %v1000, %v998
        %v1185 = vpack.c.b16 %v1003, %v1001
        %v1186 = vpack.c.b16 %v1004, %v1002
        %v1187 = vpack.c.b16 %v1007, %v1005
        %v1188 = vpack.c.b16 %v1008, %v1006
        %v1189 = vpack.c.b16 %v1011, %v1009
        %v1190 = vpack.c.b16 %v1012, %v1010
        %v1191 = vpack.c.b16 %v1015, %v1013
        %v1192 = vpack.c.b16 %v1016, %v1014
        %v1193 = vpack.c.b16 %v1019, %v1017
        %v1194 = vpack.c.b16 %v1020, %v1018
        %v1195 = vpack.c.b16 %v1023, %v1021
        %v1196 = vpack.c.b16 %v1024, %v1022
        %v1197 = vpack.c.b16 %v1027, %v1025
        %v1198 = vpack.c.b16 %v1028, %v1026
        %v1199 = vpack.c.b16 %v1031, %v1029
        %v1200 = vpack.c.b16 %v1032, %v1030
        %v1201 = vpack.c.b16 %v1035, %v1033
        %v1202 = vpack.c.b16 %v1036, %v1034
        %v1203 = vpack.c.b16 %v1039, %v1037
        %v1204 = vpack.c.b16 %v1040, %v1038
        %v1205 = vpack.c.b16 %v1043, %v1041
        %v1206 = vpack.c.b16 %v1044, %v1042
        %v1207 = vpack.c.b16 %v1047, %v1045
        %v1208 = vpack.c.b16 %v1048, %v1046
        %v1209 = vpack.c.b16 %v1051, %v1049
        %v1210 = vpack.c.b16 %v1052, %v1050
        %v1211 = vpack.c.b16 %v1055, %v1053
        %v1212 = vpack.c.b16 %v1056, %v1054
        %v1213 = vpack.c.b16 %v1059, %v1057
        %v1214 = vpack.c.b16 %v1060, %v1058
        %v1215 = vpack.c.b16 %v1063, %v1061
        %v1216 = vpack.c.b16 %v1064, %v1062
        %v1217 = vpack.c.b16 %v1067, %v1065
        %v1218 = vpack.c.b16 %v1068, %v1066
        %v1219 = vpack.c.b16 %v1071, %v1069
        %v1220 = vpack.c.b16 %v1072, %v1070
        %v1221 = vpack.c.b16 %v1075, %v1073
        %v1222 = vpack.c.b16 %v1076, %v1074
        %v1223 = vpack.c.b16 %v1079, %v1077
        %v1224 = vpack.c.b16 %v1080, %v1078
        %v1225 = vpack.c.b16 %v1083, %v1081
        %v1226 = vpack.c.b16 %v1084, %v1082
        %v1227 = vpack.c.b16 %v1087, %v1085
        %v1228 = vpack.c.b16 %v1088, %v1086
        %v1229 = vpack.c.b16 %v1091, %v1089
        %v1230 = vpack.c.b16 %v1092, %v1090
        %v1231 = vpack.c.b16 %v1095, %v1093
        %v1232 = vpack.c.b16 %v1096, %v1094
        %v1233 = vpack.c.b16 %v1099, %v1097
        %v1234 = vpack.c.b16 %v1100, %v1098
        %v1235 = vpack.c.b16 %v1103, %v1101
        %v1236 = vpack.c.b16 %v1104, %v1102
        %v1237 = vpack.c.b16 %v1107, %v1105
        %v1238 = vpack.c.b16 %v1108, %v1106
        %v1239 = vpack.c.b16 %v1111, %v1109
        %v1240 = vpack.c.b16 %v1112, %v1110
        %v1401 = vunpack.c.l.b16 %v697
        %v1402 = vunpack.c.l.b16 %v698
        %v1403 = vunpack.c.l.b16 %v699
        %v1404 = vunpack.c.l.b16 %v700
        %v1405 = vunpack.c.l.b16 %v701
        %v1406 = vunpack.c.l.b16 %v702
        %v1407 = vunpack.c.l.b16 %v703
        %v1408 = vunpack.c.l.b16 %v704
        %v1409 = vunpack.c.l.b16 %v705
        %v1410 = vunpack.c.l.b16 %v706
        %v1411 = vunpack.c.l.b16 %v707
        %v1412 = vunpack.c.l.b16 %v708
        %v1413 = vunpack.c.l.b16 %v709
        %v1414 = vunpack.c.l.b16 %v710
        %v1415 = vunpack.c.l.b16 %v711
        %v1416 = vunpack.c.l.b16 %v712
        %v1417 = vunpack.c.l.b16 %v713
        %v1418 = vunpack.c.l.b16 %v714
        %v1419 = vunpack.c.l.b16 %v715
        %v1420 = vunpack.c.l.b16 %v716
        %v1421 = vunpack.c.l.b16 %v717
        %v1422 = vunpack.c.l.b16 %v718
        %v1423 = vunpack.c.l.b16 %v719
        %v1424 = vunpack.c.l.b16 %v720
        %v1425 = vunpack.c.l.b16 %v721
        %v1426 = vunpack.c.l.b16 %v722
        %v1427 = vunpack.c.l.b16 %v723
        %v1428 = vunpack.c.l.b16 %v724
        %v1429 = vunpack.c.l.b16 %v725
        %v1430 = vunpack.c.l.b16 %v726
        %v1431 = vunpack.c.l.b16 %v727
        %v1432 = vunpack.c.l.b16 %v728
        %v1433 = vpack.c.b16 %v1402, %v1401
        %v1434 = vpack.c.b16 %v1404, %v1403
        %v1435 = vpack.c.b16 %v1406, %v1405
        %v1436 = vpack.c.b16 %v1408, %v1407
        %v1437 = vpack.c.b16 %v1410, %v1409
        %v1438 = vpack.c.b16 %v1412, %v1411
        %v1439 = vpack.c.b16 %v1414, %v1413
        %v1440 = vpack.c.b16 %v1416, %v1415
        %v1441 = vpack.c.b16 %v1418, %v1417
        %v1442 = vpack.c.b16 %v1420, %v1419
        %v1443 = vpack.c.b16 %v1422, %v1421
        %v1444 = vpack.c.b16 %v1424, %v1423
        %v1445 = vpack.c.b16 %v1426, %v1425
        %v1446 = vpack.c.b16 %v1428, %v1427
        %v1447 = vpack.c.b16 %v1430, %v1429
        %v1448 = vpack.c.b16 %v1432, %v1431
        %1465 = vmatprep.subr.bf16.mxu0 0
        %1466 = vmatpush1.bf16.msra.mxu0 %v1433
        %1467 = vmatprep.subr.bf16.mxu0 0
        %1468 = vmatpush1.bf16.msra.mxu0 %v1434
        %1469 = vmatprep.subr.bf16.mxu0 0
        %1470 = vmatpush1.bf16.msra.mxu0 %v1435
        %1471 = vmatprep.subr.bf16.mxu0 0
        %1472 = vmatpush1.bf16.msra.mxu0 %v1436
        %1473 = vmatprep.subr.bf16.mxu0 0
        %1474 = vmatpush1.bf16.msra.mxu0 %v1437
        %1475 = vmatprep.subr.bf16.mxu0 0
        %1476 = vmatpush1.bf16.msra.mxu0 %v1438
        %1477 = vmatprep.subr.bf16.mxu0 0
        %1478 = vmatpush1.bf16.msra.mxu0 %v1439
        %1479 = vmatprep.subr.bf16.mxu0 0
        %1480 = vmatpush1.bf16.msra.mxu0 %v1440
        %1481 = vmatprep.subr.bf16.mxu0 0
        %1482 = vmatpush1.bf16.msra.mxu0 %v1441
        %1483 = vmatprep.subr.bf16.mxu0 0
        %1484 = vmatpush1.bf16.msra.mxu0 %v1442
        %1485 = vmatprep.subr.bf16.mxu0 0
        %1486 = vmatpush1.bf16.msra.mxu0 %v1443
        %1487 = vmatprep.subr.bf16.mxu0 0
        %1488 = vmatpush1.bf16.msra.mxu0 %v1444
        %1489 = vmatprep.subr.bf16.mxu0 0
        %1490 = vmatpush1.bf16.msra.mxu0 %v1445
        %1491 = vmatprep.subr.bf16.mxu0 0
        %1492 = vmatpush1.bf16.msra.mxu0 %v1446
        %1493 = vmatprep.subr.bf16.mxu0 0
        %1494 = vmatpush1.bf16.msra.mxu0 %v1447
        %1495 = vmatprep.subr.bf16.mxu0 0
        %1496 = vmatpush1.bf16.msra.mxu0 %v1448
        %1497 = vmatprep.mubr.bf16.mxu0 %v1114
        %1498 = vmatmul.mubr.bf16.gmra.mrb[0].mxu0 %v1113
        %v1499 = vpop.f32.mrb[0].mxu0
        %v1500 = vadd.f32 0.0, %v1499
        %v1501 = vpop.f32.mrb[0].mxu0
        %v1502 = vpop.f32.mrb[0].mxu0
        %v1503 = vadd.f32 0.0, %v1502
        %v1504 = vpop.f32.mrb[0].mxu0
        %1505 = vmatprep.mubr.bf16.mxu0 %v1116
        %1506 = vmatmul.mubr.bf16.gmra.mrb[0].mxu0 %v1115
        %v1507 = vpop.f32.mrb[0].mxu0
        %v1508 = vadd.f32 0.0, %v1507
        %v1509 = vpop.f32.mrb[0].mxu0
        %v1510 = vpop.f32.mrb[0].mxu0
        %v1511 = vadd.f32 0.0, %v1510
        %v1512 = vpop.f32.mrb[0].mxu0
        %1513 = vmatprep.mubr.bf16.mxu0 %v1118
        %1514 = vmatmul.mubr.bf16.gmra.mrb[0].mxu0 %v1117
        %v1515 = vpop.f32.mrb[0].mxu0
        %v1516 = vadd.f32 0.0, %v1515
        %v1517 = vpop.f32.mrb[0].mxu0
        %v1518 = vpop.f32.mrb[0].mxu0
        %v1519 = vadd.f32 0.0, %v1518
        %v1520 = vpop.f32.mrb[0].mxu0
        %1521 = vmatprep.mubr.bf16.mxu0 %v1120
        %1522 = vmatmul.mubr.bf16.gmra.mrb[0].mxu0 %v1119
        %v1523 = vpop.f32.mrb[0].mxu0
        %v1524 = vadd.f32 0.0, %v1523
        %v1525 = vpop.f32.mrb[0].mxu0
        %v1526 = vpop.f32.mrb[0].mxu0
        %v1527 = vadd.f32 0.0, %v1526
        %v1528 = vpop.f32.mrb[0].mxu0
        %1529 = vmatprep.mubr.bf16.mxu0 %v1122
        %1530 = vmatmul.mubr.bf16.gmra.mrb[0].mxu0 %v1121
        %v1531 = vpop.f32.mrb[0].mxu0
        %v1532 = vadd.f32 0.0, %v1531
        %v1533 = vpop.f32.mrb[0].mxu0
        %v1534 = vpop.f32.mrb[0].mxu0
        %v1535 = vadd.f32 0.0, %v1534
        %v1536 = vpop.f32.mrb[0].mxu0
        %1537 = vmatprep.mubr.bf16.mxu0 %v1124
        %1538 = vmatmul.mubr.bf16.gmra.mrb[0].mxu0 %v1123
        %v1539 = vpop.f32.mrb[0].mxu0
        %v1540 = vadd.f32 0.0, %v1539
        %v1541 = vpop.f32.mrb[0].mxu0
        %v1542 = vpop.f32.mrb[0].mxu0
        %v1543 = vadd.f32 0.0, %v1542
        %v1544 = vpop.f32.mrb[0].mxu0
        %1545 = vmatprep.mubr.bf16.mxu0 %v1126
        %1546 = vmatmul.mubr.bf16.gmra.mrb[0].mxu0 %v1125
        %v1547 = vpop.f32.mrb[0].mxu0
        %v1548 = vadd.f32 0.0, %v1547
        %v1549 = vpop.f32.mrb[0].mxu0
        %v1550 = vpop.f32.mrb[0].mxu0
        %v1551 = vadd.f32 0.0, %v1550
        %v1552 = vpop.f32.mrb[0].mxu0
        %1553 = vmatprep.mubr.bf16.mxu0 %v1128
        %1554 = vmatmul.mubr.bf16.gmra.mrb[0].mxu0 %v1127
        %v1555 = vpop.f32.mrb[0].mxu0
        %v1556 = vadd.f32 0.0, %v1555
        %v1557 = vpop.f32.mrb[0].mxu0
        %v1558 = vpop.f32.mrb[0].mxu0
        %v1559 = vadd.f32 0.0, %v1558
        %v1560 = vpop.f32.mrb[0].mxu0
        %1561 = vmatprep.mubr.bf16.mxu0 %v1130
        %1562 = vmatmul.mubr.bf16.gmra.mrb[0].mxu0 %v1129
        %v1563 = vpop.f32.mrb[0].mxu0
        %v1564 = vadd.f32 0.0, %v1563
        %v1565 = vpop.f32.mrb[0].mxu0
        %v1566 = vpop.f32.mrb[0].mxu0
        %v1567 = vadd.f32 0.0, %v1566
        %v1568 = vpop.f32.mrb[0].mxu0
        %1569 = vmatprep.mubr.bf16.mxu0 %v1132
        %1570 = vmatmul.mubr.bf16.gmra.mrb[0].mxu0 %v1131
        %v1571 = vpop.f32.mrb[0].mxu0
        %v1572 = vadd.f32 0.0, %v1571
        %v1573 = vpop.f32.mrb[0].mxu0
        %v1574 = vpop.f32.mrb[0].mxu0
        %v1575 = vadd.f32 0.0, %v1574
        %v1576 = vpop.f32.mrb[0].mxu0
        %1577 = vmatprep.mubr.bf16.mxu0 %v1134
        %1578 = vmatmul.mubr.bf16.gmra.mrb[0].mxu0 %v1133
        %v1579 = vpop.f32.mrb[0].mxu0
        %v1580 = vadd.f32 0.0, %v1579
        %v1581 = vpop.f32.mrb[0].mxu0
        %v1582 = vpop.f32.mrb[0].mxu0
        %v1583 = vadd.f32 0.0, %v1582
        %v1584 = vpop.f32.mrb[0].mxu0
        %1585 = vmatprep.mubr.bf16.mxu0 %v1136
        %1586 = vmatmul.mubr.bf16.gmra.mrb[0].mxu0 %v1135
        %v1587 = vpop.f32.mrb[0].mxu0
        %v1588 = vadd.f32 0.0, %v1587
        %v1589 = vpop.f32.mrb[0].mxu0
        %v1590 = vpop.f32.mrb[0].mxu0
        %v1591 = vadd.f32 0.0, %v1590
        %v1592 = vpop.f32.mrb[0].mxu0
        %1593 = vmatprep.mubr.bf16.mxu0 %v1138
        %1594 = vmatmul.mubr.bf16.gmra.mrb[0].mxu0 %v1137
        %v1595 = vpop.f32.mrb[0].mxu0
        %v1596 = vadd.f32 0.0, %v1595
        %v1597 = vpop.f32.mrb[0].mxu0
        %v1598 = vpop.f32.mrb[0].mxu0
        %v1599 = vadd.f32 0.0, %v1598
        %v1600 = vpop.f32.mrb[0].mxu0
        %1601 = vmatprep.mubr.bf16.mxu0 %v1140
        %1602 = vmatmul.mubr.bf16.gmra.mrb[0].mxu0 %v1139
        %v1603 = vpop.f32.mrb[0].mxu0
        %v1604 = vadd.f32 0.0, %v1603
        %v1605 = vpop.f32.mrb[0].mxu0
        %v1606 = vpop.f32.mrb[0].mxu0
        %v1607 = vadd.f32 0.0, %v1606
        %v1608 = vpop.f32.mrb[0].mxu0
        %1609 = vmatprep.mubr.bf16.mxu0 %v1142
        %1610 = vmatmul.mubr.bf16.gmra.mrb[0].mxu0 %v1141
        %v1611 = vpop.f32.mrb[0].mxu0
        %v1612 = vadd.f32 0.0, %v1611
        %v1613 = vpop.f32.mrb[0].mxu0
        %v1614 = vpop.f32.mrb[0].mxu0
        %v1615 = vadd.f32 0.0, %v1614
        %v1616 = vpop.f32.mrb[0].mxu0
        %1617 = vmatprep.mubr.bf16.mxu0 %v1144
        %1618 = vmatmul.mubr.bf16.gmra.mrb[0].mxu0 %v1143
        %v1619 = vpop.f32.mrb[0].mxu0
        %v1620 = vadd.f32 0.0, %v1619
        %v1621 = vpop.f32.mrb[0].mxu0
        %v1622 = vpop.f32.mrb[0].mxu0
        %v1623 = vadd.f32 0.0, %v1622
        %v1624 = vpop.f32.mrb[0].mxu0
        %1625 = vmatprep.mubr.bf16.mxu0 %v1146
        %1626 = vmatmul.mubr.bf16.gmra.mrb[0].mxu0 %v1145
        %v1627 = vpop.f32.mrb[0].mxu0
        %v1628 = vadd.f32 0.0, %v1627
        %v1629 = vpop.f32.mrb[0].mxu0
        %v1630 = vpop.f32.mrb[0].mxu0
        %v1631 = vadd.f32 0.0, %v1630
        %v1632 = vpop.f32.mrb[0].mxu0
        %1633 = vmatprep.mubr.bf16.mxu0 %v1148
        %1634 = vmatmul.mubr.bf16.gmra.mrb[0].mxu0 %v1147
        %v1635 = vpop.f32.mrb[0].mxu0
        %v1636 = vadd.f32 0.0, %v1635
        %v1637 = vpop.f32.mrb[0].mxu0
        %v1638 = vpop.f32.mrb[0].mxu0
        %v1639 = vadd.f32 0.0, %v1638
        %v1640 = vpop.f32.mrb[0].mxu0
        %1641 = vmatprep.mubr.bf16.mxu0 %v1150
        %1642 = vmatmul.mubr.bf16.gmra.mrb[0].mxu0 %v1149
        %v1643 = vpop.f32.mrb[0].mxu0
        %v1644 = vadd.f32 0.0, %v1643
        %v1645 = vpop.f32.mrb[0].mxu0
        %v1646 = vpop.f32.mrb[0].mxu0
        %v1647 = vadd.f32 0.0, %v1646
        %v1648 = vpop.f32.mrb[0].mxu0
        %1649 = vmatprep.mubr.bf16.mxu0 %v1152
        %1650 = vmatmul.mubr.bf16.gmra.mrb[0].mxu0 %v1151
        %v1651 = vpop.f32.mrb[0].mxu0
        %v1652 = vadd.f32 0.0, %v1651
        %v1653 = vpop.f32.mrb[0].mxu0
        %v1654 = vpop.f32.mrb[0].mxu0
        %v1655 = vadd.f32 0.0, %v1654
        %v1656 = vpop.f32.mrb[0].mxu0
        %1657 = vmatprep.mubr.bf16.mxu0 %v1154
        %1658 = vmatmul.mubr.bf16.gmra.mrb[0].mxu0 %v1153
        %v1659 = vpop.f32.mrb[0].mxu0
        %v1660 = vadd.f32 0.0, %v1659
        %v1661 = vpop.f32.mrb[0].mxu0
        %v1662 = vpop.f32.mrb[0].mxu0
        %v1663 = vadd.f32 0.0, %v1662
        %v1664 = vpop.f32.mrb[0].mxu0
        %1665 = vmatprep.mubr.bf16.mxu0 %v1156
        %1666 = vmatmul.mubr.bf16.gmra.mrb[0].mxu0 %v1155
        %v1667 = vpop.f32.mrb[0].mxu0
        %v1668 = vadd.f32 0.0, %v1667
        %v1669 = vpop.f32.mrb[0].mxu0
        %v1670 = vpop.f32.mrb[0].mxu0
        %v1671 = vadd.f32 0.0, %v1670
        %v1672 = vpop.f32.mrb[0].mxu0
        %1673 = vmatprep.mubr.bf16.mxu0 %v1158
        %1674 = vmatmul.mubr.bf16.gmra.mrb[0].mxu0 %v1157
        %v1675 = vpop.f32.mrb[0].mxu0
        %v1676 = vadd.f32 0.0, %v1675
        %v1677 = vpop.f32.mrb[0].mxu0
        %v1678 = vpop.f32.mrb[0].mxu0
        %v1679 = vadd.f32 0.0, %v1678
        %v1680 = vpop.f32.mrb[0].mxu0
        %1681 = vmatprep.mubr.bf16.mxu0 %v1160
        %1682 = vmatmul.mubr.bf16.gmra.mrb[0].mxu0 %v1159
        %v1683 = vpop.f32.mrb[0].mxu0
        %v1684 = vadd.f32 0.0, %v1683
        %v1685 = vpop.f32.mrb[0].mxu0
        %v1686 = vpop.f32.mrb[0].mxu0
        %v1687 = vadd.f32 0.0, %v1686
        %v1688 = vpop.f32.mrb[0].mxu0
        %1689 = vmatprep.mubr.bf16.mxu0 %v1162
        %1690 = vmatmul.mubr.bf16.gmra.mrb[0].mxu0 %v1161
        %v1691 = vpop.f32.mrb[0].mxu0
        %v1692 = vadd.f32 0.0, %v1691
        %v1693 = vpop.f32.mrb[0].mxu0
        %v1694 = vpop.f32.mrb[0].mxu0
        %v1695 = vadd.f32 0.0, %v1694
        %v1696 = vpop.f32.mrb[0].mxu0
        %1697 = vmatprep.mubr.bf16.mxu0 %v1164
        %1698 = vmatmul.mubr.bf16.gmra.mrb[0].mxu0 %v1163
        %v1699 = vpop.f32.mrb[0].mxu0
        %v1700 = vadd.f32 0.0, %v1699
        %v1701 = vpop.f32.mrb[0].mxu0
        %v1702 = vpop.f32.mrb[0].mxu0
        %v1703 = vadd.f32 0.0, %v1702
        %v1704 = vpop.f32.mrb[0].mxu0
        %1705 = vmatprep.mubr.bf16.mxu0 %v1166
        %1706 = vmatmul.mubr.bf16.gmra.mrb[0].mxu0 %v1165
        %v1707 = vpop.f32.mrb[0].mxu0
        %v1708 = vadd.f32 0.0, %v1707
        %v1709 = vpop.f32.mrb[0].mxu0
        %v1710 = vpop.f32.mrb[0].mxu0
        %v1711 = vadd.f32 0.0, %v1710
        %v1712 = vpop.f32.mrb[0].mxu0
        %1713 = vmatprep.mubr.bf16.mxu0 %v1168
        %1714 = vmatmul.mubr.bf16.gmra.mrb[0].mxu0 %v1167
        %v1715 = vpop.f32.mrb[0].mxu0
        %v1716 = vadd.f32 0.0, %v1715
        %v1717 = vpop.f32.mrb[0].mxu0
        %v1718 = vpop.f32.mrb[0].mxu0
        %v1719 = vadd.f32 0.0, %v1718
        %v1720 = vpop.f32.mrb[0].mxu0
        %1721 = vmatprep.mubr.bf16.mxu0 %v1170
        %1722 = vmatmul.mubr.bf16.gmra.mrb[0].mxu0 %v1169
        %v1723 = vpop.f32.mrb[0].mxu0
        %v1724 = vadd.f32 0.0, %v1723
        %v1725 = vpop.f32.mrb[0].mxu0
        %v1726 = vpop.f32.mrb[0].mxu0
        %v1727 = vadd.f32 0.0, %v1726
        %v1728 = vpop.f32.mrb[0].mxu0
        %1729 = vmatprep.mubr.bf16.mxu0 %v1172
        %1730 = vmatmul.mubr.bf16.gmra.mrb[0].mxu0 %v1171
        %v1731 = vpop.f32.mrb[0].mxu0
        %v1732 = vadd.f32 0.0, %v1731
        %v1733 = vpop.f32.mrb[0].mxu0
        %v1734 = vpop.f32.mrb[0].mxu0
        %v1735 = vadd.f32 0.0, %v1734
        %v1736 = vpop.f32.mrb[0].mxu0
        %1737 = vmatprep.mubr.bf16.mxu0 %v1174
        %1738 = vmatmul.mubr.bf16.gmra.mrb[0].mxu0 %v1173
        %v1739 = vpop.f32.mrb[0].mxu0
        %v1740 = vadd.f32 0.0, %v1739
        %v1741 = vpop.f32.mrb[0].mxu0
        %v1742 = vpop.f32.mrb[0].mxu0
        %v1743 = vadd.f32 0.0, %v1742
        %v1744 = vpop.f32.mrb[0].mxu0
        %1745 = vmatprep.mubr.bf16.mxu0 %v1176
        %1746 = vmatmul.mubr.bf16.gmra.mrb[0].mxu0 %v1175
        %v1747 = vpop.f32.mrb[0].mxu0
        %v1748 = vadd.f32 0.0, %v1747
        %v1749 = vpop.f32.mrb[0].mxu0
        %v1750 = vpop.f32.mrb[0].mxu0
        %v1751 = vadd.f32 0.0, %v1750
        %v1752 = vpop.f32.mrb[0].mxu0
        %1753 = vmatprep.mubr.bf16.mxu0 %v1178
        %1754 = vmatmul.mubr.bf16.gmra.mrb[0].mxu0 %v1177
        %v1755 = vpop.f32.mrb[0].mxu0
        %v1756 = vadd.f32 0.0, %v1755
        %v1757 = vpop.f32.mrb[0].mxu0
        %v1758 = vpop.f32.mrb[0].mxu0
        %v1759 = vadd.f32 0.0, %v1758
        %v1760 = vpop.f32.mrb[0].mxu0
        %1761 = vmatprep.mubr.bf16.mxu0 %v1180
        %1762 = vmatmul.mubr.bf16.gmra.mrb[0].mxu0 %v1179
        %v1763 = vpop.f32.mrb[0].mxu0
        %v1764 = vadd.f32 0.0, %v1763
        %v1765 = vpop.f32.mrb[0].mxu0
        %v1766 = vpop.f32.mrb[0].mxu0
        %v1767 = vadd.f32 0.0, %v1766
        %v1768 = vpop.f32.mrb[0].mxu0
        %1769 = vmatprep.mubr.bf16.mxu0 %v1182
        %1770 = vmatmul.mubr.bf16.gmra.mrb[0].mxu0 %v1181
        %v1771 = vpop.f32.mrb[0].mxu0
        %v1772 = vadd.f32 0.0, %v1771
        %v1773 = vpop.f32.mrb[0].mxu0
        %v1774 = vpop.f32.mrb[0].mxu0
        %v1775 = vadd.f32 0.0, %v1774
        %v1776 = vpop.f32.mrb[0].mxu0
        %1777 = vmatprep.mubr.bf16.mxu0 %v1184
        %1778 = vmatmul.mubr.bf16.gmra.mrb[0].mxu0 %v1183
        %v1779 = vpop.f32.mrb[0].mxu0
        %v1780 = vadd.f32 0.0, %v1779
        %v1781 = vpop.f32.mrb[0].mxu0
        %v1782 = vpop.f32.mrb[0].mxu0
        %v1783 = vadd.f32 0.0, %v1782
        %v1784 = vpop.f32.mrb[0].mxu0
        %1785 = vmatprep.mubr.bf16.mxu0 %v1186
        %1786 = vmatmul.mubr.bf16.gmra.mrb[0].mxu0 %v1185
        %v1787 = vpop.f32.mrb[0].mxu0
        %v1788 = vadd.f32 0.0, %v1787
        %v1789 = vpop.f32.mrb[0].mxu0
        %v1790 = vpop.f32.mrb[0].mxu0
        %v1791 = vadd.f32 0.0, %v1790
        %v1792 = vpop.f32.mrb[0].mxu0
        %1793 = vmatprep.mubr.bf16.mxu0 %v1188
        %1794 = vmatmul.mubr.bf16.gmra.mrb[0].mxu0 %v1187
        %v1795 = vpop.f32.mrb[0].mxu0
        %v1796 = vadd.f32 0.0, %v1795
        %v1797 = vpop.f32.mrb[0].mxu0
        %v1798 = vpop.f32.mrb[0].mxu0
        %v1799 = vadd.f32 0.0, %v1798
        %v1800 = vpop.f32.mrb[0].mxu0
        %1801 = vmatprep.mubr.bf16.mxu0 %v1190
        %1802 = vmatmul.mubr.bf16.gmra.mrb[0].mxu0 %v1189
        %v1803 = vpop.f32.mrb[0].mxu0
        %v1804 = vadd.f32 0.0, %v1803
        %v1805 = vpop.f32.mrb[0].mxu0
        %v1806 = vpop.f32.mrb[0].mxu0
        %v1807 = vadd.f32 0.0, %v1806
        %v1808 = vpop.f32.mrb[0].mxu0
        %1809 = vmatprep.mubr.bf16.mxu0 %v1192
        %1810 = vmatmul.mubr.bf16.gmra.mrb[0].mxu0 %v1191
        %v1811 = vpop.f32.mrb[0].mxu0
        %v1812 = vadd.f32 0.0, %v1811
        %v1813 = vpop.f32.mrb[0].mxu0
        %v1814 = vpop.f32.mrb[0].mxu0
        %v1815 = vadd.f32 0.0, %v1814
        %v1816 = vpop.f32.mrb[0].mxu0
        %1817 = vmatprep.mubr.bf16.mxu0 %v1194
        %1818 = vmatmul.mubr.bf16.gmra.mrb[0].mxu0 %v1193
        %v1819 = vpop.f32.mrb[0].mxu0
        %v1820 = vadd.f32 0.0, %v1819
        %v1821 = vpop.f32.mrb[0].mxu0
        %v1822 = vpop.f32.mrb[0].mxu0
        %v1823 = vadd.f32 0.0, %v1822
        %v1824 = vpop.f32.mrb[0].mxu0
        %1825 = vmatprep.mubr.bf16.mxu0 %v1196
        %1826 = vmatmul.mubr.bf16.gmra.mrb[0].mxu0 %v1195
        %v1827 = vpop.f32.mrb[0].mxu0
        %v1828 = vadd.f32 0.0, %v1827
        %v1829 = vpop.f32.mrb[0].mxu0
        %v1830 = vpop.f32.mrb[0].mxu0
        %v1831 = vadd.f32 0.0, %v1830
        %v1832 = vpop.f32.mrb[0].mxu0
        %1833 = vmatprep.mubr.bf16.mxu0 %v1198
        %1834 = vmatmul.mubr.bf16.gmra.mrb[0].mxu0 %v1197
        %v1835 = vpop.f32.mrb[0].mxu0
        %v1836 = vadd.f32 0.0, %v1835
        %v1837 = vpop.f32.mrb[0].mxu0
        %v1838 = vpop.f32.mrb[0].mxu0
        %v1839 = vadd.f32 0.0, %v1838
        %v1840 = vpop.f32.mrb[0].mxu0
        %1841 = vmatprep.mubr.bf16.mxu0 %v1200
        %1842 = vmatmul.mubr.bf16.gmra.mrb[0].mxu0 %v1199
        %v1843 = vpop.f32.mrb[0].mxu0
        %v1844 = vadd.f32 0.0, %v1843
        %v1845 = vpop.f32.mrb[0].mxu0
        %v1846 = vpop.f32.mrb[0].mxu0
        %v1847 = vadd.f32 0.0, %v1846
        %v1848 = vpop.f32.mrb[0].mxu0
        %1849 = vmatprep.mubr.bf16.mxu0 %v1202
        %1850 = vmatmul.mubr.bf16.gmra.mrb[0].mxu0 %v1201
        %v1851 = vpop.f32.mrb[0].mxu0
        %v1852 = vadd.f32 0.0, %v1851
        %v1853 = vpop.f32.mrb[0].mxu0
        %v1854 = vpop.f32.mrb[0].mxu0
        %v1855 = vadd.f32 0.0, %v1854
        %v1856 = vpop.f32.mrb[0].mxu0
        %1857 = vmatprep.mubr.bf16.mxu0 %v1204
        %1858 = vmatmul.mubr.bf16.gmra.mrb[0].mxu0 %v1203
        %v1859 = vpop.f32.mrb[0].mxu0
        %v1860 = vadd.f32 0.0, %v1859
        %v1861 = vpop.f32.mrb[0].mxu0
        %v1862 = vpop.f32.mrb[0].mxu0
        %v1863 = vadd.f32 0.0, %v1862
        %v1864 = vpop.f32.mrb[0].mxu0
        %1865 = vmatprep.mubr.bf16.mxu0 %v1206
        %1866 = vmatmul.mubr.bf16.gmra.mrb[0].mxu0 %v1205
        %v1867 = vpop.f32.mrb[0].mxu0
        %v1868 = vadd.f32 0.0, %v1867
        %v1869 = vpop.f32.mrb[0].mxu0
        %v1870 = vpop.f32.mrb[0].mxu0
        %v1871 = vadd.f32 0.0, %v1870
        %v1872 = vpop.f32.mrb[0].mxu0
        %1873 = vmatprep.mubr.bf16.mxu0 %v1208
        %1874 = vmatmul.mubr.bf16.gmra.mrb[0].mxu0 %v1207
        %v1875 = vpop.f32.mrb[0].mxu0
        %v1876 = vadd.f32 0.0, %v1875
        %v1877 = vpop.f32.mrb[0].mxu0
        %v1878 = vpop.f32.mrb[0].mxu0
        %v1879 = vadd.f32 0.0, %v1878
        %v1880 = vpop.f32.mrb[0].mxu0
        %1881 = vmatprep.mubr.bf16.mxu0 %v1210
        %1882 = vmatmul.mubr.bf16.gmra.mrb[0].mxu0 %v1209
        %v1883 = vpop.f32.mrb[0].mxu0
        %v1884 = vadd.f32 0.0, %v1883
        %v1885 = vpop.f32.mrb[0].mxu0
        %v1886 = vpop.f32.mrb[0].mxu0
        %v1887 = vadd.f32 0.0, %v1886
        %v1888 = vpop.f32.mrb[0].mxu0
        %1889 = vmatprep.mubr.bf16.mxu0 %v1212
        %1890 = vmatmul.mubr.bf16.gmra.mrb[0].mxu0 %v1211
        %v1891 = vpop.f32.mrb[0].mxu0
        %v1892 = vadd.f32 0.0, %v1891
        %v1893 = vpop.f32.mrb[0].mxu0
        %v1894 = vpop.f32.mrb[0].mxu0
        %v1895 = vadd.f32 0.0, %v1894
        %v1896 = vpop.f32.mrb[0].mxu0
        %1897 = vmatprep.mubr.bf16.mxu0 %v1214
        %1898 = vmatmul.mubr.bf16.gmra.mrb[0].mxu0 %v1213
        %v1899 = vpop.f32.mrb[0].mxu0
        %v1900 = vadd.f32 0.0, %v1899
        %v1901 = vpop.f32.mrb[0].mxu0
        %v1902 = vpop.f32.mrb[0].mxu0
        %v1903 = vadd.f32 0.0, %v1902
        %v1904 = vpop.f32.mrb[0].mxu0
        %1905 = vmatprep.mubr.bf16.mxu0 %v1216
        %1906 = vmatmul.mubr.bf16.gmra.mrb[0].mxu0 %v1215
        %v1907 = vpop.f32.mrb[0].mxu0
        %v1908 = vadd.f32 0.0, %v1907
        %v1909 = vpop.f32.mrb[0].mxu0
        %v1910 = vpop.f32.mrb[0].mxu0
        %v1911 = vadd.f32 0.0, %v1910
        %v1912 = vpop.f32.mrb[0].mxu0
        %1913 = vmatprep.mubr.bf16.mxu0 %v1218
        %1914 = vmatmul.mubr.bf16.gmra.mrb[0].mxu0 %v1217
        %v1915 = vpop.f32.mrb[0].mxu0
        %v1916 = vadd.f32 0.0, %v1915
        %v1917 = vpop.f32.mrb[0].mxu0
        %v1918 = vpop.f32.mrb[0].mxu0
        %v1919 = vadd.f32 0.0, %v1918
        %v1920 = vpop.f32.mrb[0].mxu0
        %1921 = vmatprep.mubr.bf16.mxu0 %v1220
        %1922 = vmatmul.mubr.bf16.gmra.mrb[0].mxu0 %v1219
        %v1923 = vpop.f32.mrb[0].mxu0
        %v1924 = vadd.f32 0.0, %v1923
        %v1925 = vpop.f32.mrb[0].mxu0
        %v1926 = vpop.f32.mrb[0].mxu0
        %v1927 = vadd.f32 0.0, %v1926
        %v1928 = vpop.f32.mrb[0].mxu0
        %1929 = vmatprep.mubr.bf16.mxu0 %v1222
        %1930 = vmatmul.mubr.bf16.gmra.mrb[0].mxu0 %v1221
        %v1931 = vpop.f32.mrb[0].mxu0
        %v1932 = vadd.f32 0.0, %v1931
        %v1933 = vpop.f32.mrb[0].mxu0
        %v1934 = vpop.f32.mrb[0].mxu0
        %v1935 = vadd.f32 0.0, %v1934
        %v1936 = vpop.f32.mrb[0].mxu0
        %1937 = vmatprep.mubr.bf16.mxu0 %v1224
        %1938 = vmatmul.mubr.bf16.gmra.mrb[0].mxu0 %v1223
        %v1939 = vpop.f32.mrb[0].mxu0
        %v1940 = vadd.f32 0.0, %v1939
        %v1941 = vpop.f32.mrb[0].mxu0
        %v1942 = vpop.f32.mrb[0].mxu0
        %v1943 = vadd.f32 0.0, %v1942
        %v1944 = vpop.f32.mrb[0].mxu0
        %1945 = vmatprep.mubr.bf16.mxu0 %v1226
        %1946 = vmatmul.mubr.bf16.gmra.mrb[0].mxu0 %v1225
        %v1947 = vpop.f32.mrb[0].mxu0
        %v1948 = vadd.f32 0.0, %v1947
        %v1949 = vpop.f32.mrb[0].mxu0
        %v1950 = vpop.f32.mrb[0].mxu0
        %v1951 = vadd.f32 0.0, %v1950
        %v1952 = vpop.f32.mrb[0].mxu0
        %1953 = vmatprep.mubr.bf16.mxu0 %v1228
        %1954 = vmatmul.mubr.bf16.gmra.mrb[0].mxu0 %v1227
        %v1955 = vpop.f32.mrb[0].mxu0
        %v1956 = vadd.f32 0.0, %v1955
        %v1957 = vpop.f32.mrb[0].mxu0
        %v1958 = vpop.f32.mrb[0].mxu0
        %v1959 = vadd.f32 0.0, %v1958
        %v1960 = vpop.f32.mrb[0].mxu0
        %1961 = vmatprep.mubr.bf16.mxu0 %v1230
        %1962 = vmatmul.mubr.bf16.gmra.mrb[0].mxu0 %v1229
        %v1963 = vpop.f32.mrb[0].mxu0
        %v1964 = vadd.f32 0.0, %v1963
        %v1965 = vpop.f32.mrb[0].mxu0
        %v1966 = vpop.f32.mrb[0].mxu0
        %v1967 = vadd.f32 0.0, %v1966
        %v1968 = vpop.f32.mrb[0].mxu0
        %1969 = vmatprep.mubr.bf16.mxu0 %v1232
        %1970 = vmatmul.mubr.bf16.gmra.mrb[0].mxu0 %v1231
        %v1971 = vpop.f32.mrb[0].mxu0
        %v1972 = vadd.f32 0.0, %v1971
        %v1973 = vpop.f32.mrb[0].mxu0
        %v1974 = vpop.f32.mrb[0].mxu0
        %v1975 = vadd.f32 0.0, %v1974
        %v1976 = vpop.f32.mrb[0].mxu0
        %1977 = vmatprep.mubr.bf16.mxu0 %v1234
        %1978 = vmatmul.mubr.bf16.gmra.mrb[0].mxu0 %v1233
        %v1979 = vpop.f32.mrb[0].mxu0
        %v1980 = vadd.f32 0.0, %v1979
        %v1981 = vpop.f32.mrb[0].mxu0
        %v1982 = vpop.f32.mrb[0].mxu0
        %v1983 = vadd.f32 0.0, %v1982
        %v1984 = vpop.f32.mrb[0].mxu0
        %1985 = vmatprep.mubr.bf16.mxu0 %v1236
        %1986 = vmatmul.mubr.bf16.gmra.mrb[0].mxu0 %v1235
        %v1987 = vpop.f32.mrb[0].mxu0
        %v1988 = vadd.f32 0.0, %v1987
        %v1989 = vpop.f32.mrb[0].mxu0
        %v1990 = vpop.f32.mrb[0].mxu0
        %v1991 = vadd.f32 0.0, %v1990
        %v1992 = vpop.f32.mrb[0].mxu0
        %1993 = vmatprep.mubr.bf16.mxu0 %v1238
        %1994 = vmatmul.mubr.bf16.gmra.mrb[0].mxu0 %v1237
        %v1995 = vpop.f32.mrb[0].mxu0
        %v1996 = vadd.f32 0.0, %v1995
        %v1997 = vpop.f32.mrb[0].mxu0
        %v1998 = vpop.f32.mrb[0].mxu0
        %v1999 = vadd.f32 0.0, %v1998
        %v2000 = vpop.f32.mrb[0].mxu0
        %2001 = vmatprep.mubr.bf16.mxu0 %v1240
        %2002 = vmatmul.mubr.bf16.gmra.mrb[0].mxu0 %v1239
        %v2003 = vpop.f32.mrb[0].mxu0
        %v2004 = vadd.f32 0.0, %v2003
        %v2005 = vpop.f32.mrb[0].mxu0
        %v2006 = vpop.f32.mrb[0].mxu0
        %v2007 = vadd.f32 0.0, %v2006
        %v2008 = vpop.f32.mrb[0].mxu0
        %2009 = vdwg.mxu0
        %v2010 = vmax.f32 %v1500, %v1628
        %v2011 = vmax.f32 %v1503, %v1631
        %v2012 = vmax.f32 %v1508, %v1636
        %v2013 = vmax.f32 %v1511, %v1639
        %v2014 = vmax.f32 %v1516, %v1644
        %v2015 = vmax.f32 %v1519, %v1647
        %v2016 = vmax.f32 %v1524, %v1652
        %v2017 = vmax.f32 %v1527, %v1655
        %v2018 = vmax.f32 %v1532, %v1660
        %v2019 = vmax.f32 %v1535, %v1663
        %v2020 = vmax.f32 %v1540, %v1668
        %v2021 = vmax.f32 %v1543, %v1671
        %v2022 = vmax.f32 %v1548, %v1676
        %v2023 = vmax.f32 %v1551, %v1679
        %v2024 = vmax.f32 %v1556, %v1684
        %v2025 = vmax.f32 %v1559, %v1687
        %v2026 = vmax.f32 %v1564, %v1692
        %v2027 = vmax.f32 %v1567, %v1695
        %v2028 = vmax.f32 %v1572, %v1700
        %v2029 = vmax.f32 %v1575, %v1703
        %v2030 = vmax.f32 %v1580, %v1708
        %v2031 = vmax.f32 %v1583, %v1711
        %v2032 = vmax.f32 %v1588, %v1716
        %v2033 = vmax.f32 %v1591, %v1719
        %v2034 = vmax.f32 %v1596, %v1724
        %v2035 = vmax.f32 %v1599, %v1727
        %v2036 = vmax.f32 %v1604, %v1732
        %v2037 = vmax.f32 %v1607, %v1735
        %v2038 = vmax.f32 %v1612, %v1740
        %v2039 = vmax.f32 %v1615, %v1743
        %v2040 = vmax.f32 %v1620, %v1748
        %v2041 = vmax.f32 %v1623, %v1751
        %v2042 = vmax.f32 %v2010, %v1756
        %v2043 = vmax.f32 %v2011, %v1759
        %v2044 = vmax.f32 %v2012, %v1764
        %v2045 = vmax.f32 %v2013, %v1767
        %v2046 = vmax.f32 %v2014, %v1772
        %v2047 = vmax.f32 %v2015, %v1775
        %v2048 = vmax.f32 %v2016, %v1780
        %v2049 = vmax.f32 %v2017, %v1783
        %v2050 = vmax.f32 %v2018, %v1788
        %v2051 = vmax.f32 %v2019, %v1791
        %v2052 = vmax.f32 %v2020, %v1796
        %v2053 = vmax.f32 %v2021, %v1799
        %v2054 = vmax.f32 %v2022, %v1804
        %v2055 = vmax.f32 %v2023, %v1807
        %v2056 = vmax.f32 %v2024, %v1812
        %v2057 = vmax.f32 %v2025, %v1815
        %v2058 = vmax.f32 %v2026, %v1820
        %v2059 = vmax.f32 %v2027, %v1823
        %v2060 = vmax.f32 %v2028, %v1828
        %v2061 = vmax.f32 %v2029, %v1831
        %v2062 = vmax.f32 %v2030, %v1836
        %v2063 = vmax.f32 %v2031, %v1839
        %v2064 = vmax.f32 %v2032, %v1844
        %v2065 = vmax.f32 %v2033, %v1847
        %v2066 = vmax.f32 %v2034, %v1852
        %v2067 = vmax.f32 %v2035, %v1855
        %v2068 = vmax.f32 %v2036, %v1860
        %v2069 = vmax.f32 %v2037, %v1863
        %v2070 = vmax.f32 %v2038, %v1868
        %v2071 = vmax.f32 %v2039, %v1871
        %v2072 = vmax.f32 %v2040, %v1876
        %v2073 = vmax.f32 %v2041, %v1879
        %v2074 = vmax.f32 %v2042, %v1884
        %v2075 = vmax.f32 %v2043, %v1887
        %v2076 = vmax.f32 %v2044, %v1892
        %v2077 = vmax.f32 %v2045, %v1895
        %v2078 = vmax.f32 %v2046, %v1900
        %v2079 = vmax.f32 %v2047, %v1903
        %v2080 = vmax.f32 %v2048, %v1908
        %v2081 = vmax.f32 %v2049, %v1911
        %v2082 = vmax.f32 %v2050, %v1916
        %v2083 = vmax.f32 %v2051, %v1919
        %v2084 = vmax.f32 %v2052, %v1924
        %v2085 = vmax.f32 %v2053, %v1927
        %v2086 = vmax.f32 %v2054, %v1932
        %v2087 = vmax.f32 %v2055, %v1935
        %v2088 = vmax.f32 %v2056, %v1940
        %v2089 = vmax.f32 %v2057, %v1943
        %v2090 = vmax.f32 %v2058, %v1948
        %v2091 = vmax.f32 %v2059, %v1951
        %v2092 = vmax.f32 %v2060, %v1956
        %v2093 = vmax.f32 %v2061, %v1959
        %v2094 = vmax.f32 %v2062, %v1964
        %v2095 = vmax.f32 %v2063, %v1967
        %v2096 = vmax.f32 %v2064, %v1972
        %v2097 = vmax.f32 %v2065, %v1975
        %v2098 = vmax.f32 %v2066, %v1980
        %v2099 = vmax.f32 %v2067, %v1983
        %v2100 = vmax.f32 %v2068, %v1988
        %v2101 = vmax.f32 %v2069, %v1991
        %v2102 = vmax.f32 %v2070, %v1996
        %v2103 = vmax.f32 %v2071, %v1999
        %v2104 = vmax.f32 %v2072, %v2004
        %v2105 = vmax.f32 %v2073, %v2007
        %v2106 = vld [vmem:[#allocation7] sm:$0x1]
        %v2108 = vlaneseq
        %v2109 = vshrl.u32 %v2108, 7
        %v2110 = vsub.s32 0, %v2109
        %v2111 = vrot.slane %v2106, %v2110
        %v2113 = vadd.f32 %v2074, %v2111
        %v2114 = vadd.f32 %v2075, %v2111
        %v2115 = vadd.f32 %v2076, %v2111
        %v2116 = vadd.f32 %v2077, %v2111
        %v2117 = vadd.f32 %v2078, %v2111
        %v2118 = vadd.f32 %v2079, %v2111
        %v2119 = vadd.f32 %v2080, %v2111
        %v2120 = vadd.f32 %v2081, %v2111
        %v2121 = vadd.f32 %v2082, %v2111
        %v2122 = vadd.f32 %v2083, %v2111
        %v2123 = vadd.f32 %v2084, %v2111
        %v2124 = vadd.f32 %v2085, %v2111
        %v2125 = vadd.f32 %v2086, %v2111
        %v2126 = vadd.f32 %v2087, %v2111
        %v2127 = vadd.f32 %v2088, %v2111
        %v2128 = vadd.f32 %v2089, %v2111
        %v2129 = vadd.f32 %v2090, %v2111
        %v2130 = vadd.f32 %v2091, %v2111
        %v2131 = vadd.f32 %v2092, %v2111
        %v2132 = vadd.f32 %v2093, %v2111
        %v2133 = vadd.f32 %v2094, %v2111
        %v2134 = vadd.f32 %v2095, %v2111
        %v2135 = vadd.f32 %v2096, %v2111
        %v2136 = vadd.f32 %v2097, %v2111
        %v2137 = vadd.f32 %v2098, %v2111
        %v2138 = vadd.f32 %v2099, %v2111
        %v2139 = vadd.f32 %v2100, %v2111
        %v2140 = vadd.f32 %v2101, %v2111
        %v2141 = vadd.f32 %v2102, %v2111
        %v2142 = vadd.f32 %v2103, %v2111
        %v2143 = vadd.f32 %v2104, %v2111
        %v2144 = vadd.f32 %v2105, %v2111
        %v2145 = vmax.f32 %v2113, 0.0
        %v2146 = vmax.f32 %v2114, 0.0
        %v2147 = vmax.f32 %v2115, 0.0
        %v2148 = vmax.f32 %v2116, 0.0
        %v2149 = vmax.f32 %v2117, 0.0
        %v2150 = vmax.f32 %v2118, 0.0
        %v2151 = vmax.f32 %v2119, 0.0
        %v2152 = vmax.f32 %v2120, 0.0
        %v2153 = vmax.f32 %v2121, 0.0
        %v2154 = vmax.f32 %v2122, 0.0
        %v2155 = vmax.f32 %v2123, 0.0
        %v2156 = vmax.f32 %v2124, 0.0
        %v2157 = vmax.f32 %v2125, 0.0
        %v2158 = vmax.f32 %v2126, 0.0
        %v2159 = vmax.f32 %v2127, 0.0
        %v2160 = vmax.f32 %v2128, 0.0
        %v2161 = vmax.f32 %v2129, 0.0
        %v2162 = vmax.f32 %v2130, 0.0
        %v2163 = vmax.f32 %v2131, 0.0
        %v2164 = vmax.f32 %v2132, 0.0
        %v2165 = vmax.f32 %v2133, 0.0
        %v2166 = vmax.f32 %v2134, 0.0
        %v2167 = vmax.f32 %v2135, 0.0
        %v2168 = vmax.f32 %v2136, 0.0
        %v2169 = vmax.f32 %v2137, 0.0
        %v2170 = vmax.f32 %v2138, 0.0
        %v2171 = vmax.f32 %v2139, 0.0
        %v2172 = vmax.f32 %v2140, 0.0
        %v2173 = vmax.f32 %v2141, 0.0
        %v2174 = vmax.f32 %v2142, 0.0
        %v2175 = vmax.f32 %v2143, 0.0
        %v2176 = vmax.f32 %v2144, 0.0
        %v2177 = vld [vmem:[#allocation8] sm:$0xff]
        %v2178 = vld [vmem:[#allocation8 + $0x8] sm:$0xff]
        %v2179 = vld [vmem:[#allocation8 + $0x10] sm:$0xff]
        %v2180 = vld [vmem:[#allocation8 + $0x18] sm:$0xff]
        %v2181 = vld [vmem:[#allocation8 + $0x20] sm:$0xff]
        %v2182 = vld [vmem:[#allocation8 + $0x28] sm:$0xff]
        %v2183 = vld [vmem:[#allocation8 + $0x30] sm:$0xff]
        %v2184 = vld [vmem:[#allocation8 + $0x38] sm:$0xff]
        %v2185 = vld [vmem:[#allocation8 + $0x40] sm:$0xff]
        %v2186 = vld [vmem:[#allocation8 + $0x48] sm:$0xff]
        %v2187 = vld [vmem:[#allocation8 + $0x50] sm:$0xff]
        %v2188 = vld [vmem:[#allocation8 + $0x58] sm:$0xff]
        %v2189 = vld [vmem:[#allocation8 + $0x60] sm:$0xff]
        %v2190 = vld [vmem:[#allocation8 + $0x68] sm:$0xff]
        %v2191 = vld [vmem:[#allocation8 + $0x70] sm:$0xff]
        %v2192 = vld [vmem:[#allocation8 + $0x78] sm:$0xff]
        %v2193 = vld [vmem:[#allocation8 + $0x80] sm:$0xff]
        %v2194 = vld [vmem:[#allocation8 + $0x88] sm:$0xff]
        %v2195 = vld [vmem:[#allocation8 + $0x90] sm:$0xff]
        %v2196 = vld [vmem:[#allocation8 + $0x98] sm:$0xff]
        %v2197 = vld [vmem:[#allocation8 + $0xa0] sm:$0xff]
        %v2198 = vld [vmem:[#allocation8 + $0xa8] sm:$0xff]
        %v2199 = vld [vmem:[#allocation8 + $0xb0] sm:$0xff]
        %v2200 = vld [vmem:[#allocation8 + $0xb8] sm:$0xff]
        %v2201 = vld [vmem:[#allocation8 + $0xc0] sm:$0xff]
        %v2202 = vld [vmem:[#allocation8 + $0xc8] sm:$0xff]
        %v2203 = vld [vmem:[#allocation8 + $0xd0] sm:$0xff]
        %v2204 = vld [vmem:[#allocation8 + $0xd8] sm:$0xff]
        %v2205 = vld [vmem:[#allocation8 + $0xe0] sm:$0xff]
        %v2206 = vld [vmem:[#allocation8 + $0xe8] sm:$0xff]
        %v2207 = vld [vmem:[#allocation8 + $0xf0] sm:$0xff]
        %v2208 = vld [vmem:[#allocation8 + $0xf8] sm:$0xff]
        %v2209 = vld [vmem:[#allocation8 + $0x100] sm:$0xff]
        %v2210 = vld [vmem:[#allocation8 + $0x108] sm:$0xff]
        %v2211 = vld [vmem:[#allocation8 + $0x110] sm:$0xff]
        %v2212 = vld [vmem:[#allocation8 + $0x118] sm:$0xff]
        %v2213 = vld [vmem:[#allocation8 + $0x120] sm:$0xff]
        %v2214 = vld [vmem:[#allocation8 + $0x128] sm:$0xff]
        %v2215 = vld [vmem:[#allocation8 + $0x130] sm:$0xff]
        %v2216 = vld [vmem:[#allocation8 + $0x138] sm:$0xff]
        %v2217 = vld [vmem:[#allocation8 + $0x140] sm:$0xff]
        %v2218 = vld [vmem:[#allocation8 + $0x148] sm:$0xff]
        %v2219 = vld [vmem:[#allocation8 + $0x150] sm:$0xff]
        %v2220 = vld [vmem:[#allocation8 + $0x158] sm:$0xff]
        %v2221 = vld [vmem:[#allocation8 + $0x160] sm:$0xff]
        %v2222 = vld [vmem:[#allocation8 + $0x168] sm:$0xff]
        %v2223 = vld [vmem:[#allocation8 + $0x170] sm:$0xff]
        %v2224 = vld [vmem:[#allocation8 + $0x178] sm:$0xff]
        %v2225 = vld [vmem:[#allocation8 + $0x180] sm:$0xff]
        %v2226 = vld [vmem:[#allocation8 + $0x188] sm:$0xff]
        %v2227 = vld [vmem:[#allocation8 + $0x190] sm:$0xff]
        %v2228 = vld [vmem:[#allocation8 + $0x198] sm:$0xff]
        %v2229 = vld [vmem:[#allocation8 + $0x1a0] sm:$0xff]
        %v2230 = vld [vmem:[#allocation8 + $0x1a8] sm:$0xff]
        %v2231 = vld [vmem:[#allocation8 + $0x1b0] sm:$0xff]
        %v2232 = vld [vmem:[#allocation8 + $0x1b8] sm:$0xff]
        %v2233 = vld [vmem:[#allocation8 + $0x1c0] sm:$0xff]
        %v2234 = vld [vmem:[#allocation8 + $0x1c8] sm:$0xff]
        %v2235 = vld [vmem:[#allocation8 + $0x1d0] sm:$0xff]
        %v2236 = vld [vmem:[#allocation8 + $0x1d8] sm:$0xff]
        %v2237 = vld [vmem:[#allocation8 + $0x1e0] sm:$0xff]
        %v2238 = vld [vmem:[#allocation8 + $0x1e8] sm:$0xff]
        %v2239 = vld [vmem:[#allocation8 + $0x1f0] sm:$0xff]
        %v2240 = vld [vmem:[#allocation8 + $0x1f8] sm:$0xff]
        %v2241 = vld [vmem:[#allocation8 + $0x200] sm:$0xff]
        %v2242 = vld [vmem:[#allocation8 + $0x208] sm:$0xff]
        %v2243 = vld [vmem:[#allocation8 + $0x210] sm:$0xff]
        %v2244 = vld [vmem:[#allocation8 + $0x218] sm:$0xff]
        %v2245 = vld [vmem:[#allocation8 + $0x220] sm:$0xff]
        %v2246 = vld [vmem:[#allocation8 + $0x228] sm:$0xff]
        %v2247 = vld [vmem:[#allocation8 + $0x230] sm:$0xff]
        %v2248 = vld [vmem:[#allocation8 + $0x238] sm:$0xff]
        %vm2249 = vcmask 523264
        %v2251 = vsel %vm2249, %v2147, 0
        %v2254 = vsel %vm2249, %v2148, 0
        %2256 = vmatprep.subr.mxu0 0.0
        %2257 = vmatpush1.msra.mxu0 %v2185
        %2258 = vmatprep.subr.mxu0 0.0
        %2259 = vmatpush1.msra.mxu0 %v2186
        %2260 = vmatprep.subr.mxu0 0.0
        %2261 = vmatpush1.msra.mxu0 %v2187
        %2262 = vmatprep.subr.mxu0 0.0
        %2263 = vmatpush1.msra.mxu0 %v2188
        %2264 = vmatprep.subr.mxu0 0.0
        %2265 = vmatpush1.msra.mxu0 %v2189
        %2266 = vmatprep.subr.mxu0 0.0
        %2267 = vmatpush1.msra.mxu0 %v2190
        %2268 = vmatprep.subr.mxu0 0.0
        %2269 = vmatpush1.msra.mxu0 %v2191
        %2270 = vmatprep.subr.mxu0 0.0
        %2271 = vmatpush1.msra.mxu0 %v2192
        %2272 = vmatprep.subr.mxu0 0.0
        %2273 = vmatpush1.msra.mxu0 0.0
        %2274 = vmatprep.subr.mxu0 0.0
        %2275 = vmatpush1.msra.mxu0 0.0
        %2276 = vmatprep.subr.mxu0 0.0
        %2277 = vmatpush1.msra.mxu0 0.0
        %2278 = vmatprep.subr.mxu0 0.0
        %2279 = vmatpush1.msra.mxu0 0.0
        %2280 = vmatprep.subr.mxu0 0.0
        %2281 = vmatpush1.msra.mxu0 0.0
        %2282 = vmatprep.subr.mxu0 0.0
        %2283 = vmatpush1.msra.mxu0 0.0
        %2284 = vmatprep.subr.mxu0 0.0
        %2285 = vmatpush1.msra.mxu0 0.0
        %2286 = vmatprep.subr.mxu0 0.0
        %2287 = vmatpush1.msra.mxu0 0.0
        %2288 = vmatprep.subr.mxu0 0.0
        %2289 = vmatpush1.msra.mxu0 0.0
        %2290 = vmatprep.subr.mxu0 0.0
        %2291 = vmatpush1.msra.mxu0 0.0
        %2292 = vmatprep.subr.mxu0 0.0
        %2293 = vmatpush1.msra.mxu0 0.0
        %2294 = vmatprep.subr.mxu0 0.0
        %2295 = vmatpush1.msra.mxu0 0.0
        %2296 = vmatprep.subr.mxu0 0.0
        %2297 = vmatpush1.msra.mxu0 0.0
        %2298 = vmatprep.subr.mxu0 0.0
        %2299 = vmatpush1.msra.mxu0 0.0
        %2300 = vmatprep.subr.mxu0 0.0
        %2301 = vmatpush1.msra.mxu0 0.0
        %2302 = vmatprep.subr.mxu0 0.0
        %2303 = vmatpush1.msra.mxu0 0.0
        %2304 = vmatprep.subr.mxu0 0.0
        %2305 = vmatpush1.msra.mxu0 0.0
        %2306 = vmatprep.subr.mxu0 0.0
        %2307 = vmatpush1.msra.mxu0 0.0
        %2308 = vmatprep.subr.mxu0 0.0
        %2309 = vmatpush1.msra.mxu0 0.0
        %2310 = vmatprep.subr.mxu0 0.0
        %2311 = vmatpush1.msra.mxu0 0.0
        %2312 = vmatprep.subr.mxu0 0.0
        %2313 = vmatpush1.msra.mxu0 0.0
        %2314 = vmatprep.subr.mxu0 0.0
        %2315 = vmatpush1.msra.mxu0 0.0
        %2316 = vmatprep.subr.mxu0 0.0
        %2317 = vmatpush1.msra.mxu0 0.0
        %2318 = vmatprep.subr.mxu0 0.0
        %2319 = vmatpush1.msra.mxu0 0.0
        %2320 = vmatprep.mubr.f32.mxu0 0.0
        %2321 = vmatmul.mubr.f32.gmra.mrb[0].mxu0 %v2251
        %v2322 = vpop.f32.mrb[0].mxu0
        %v2323 = vadd.f32 0.0, %v2322
        %v2324 = vpop.f32.mrb[0].mxu0
        %2325 = vmatprep.mubr.f32.mxu0 0.0
        %2326 = vmatmul.mubr.f32.gmra.mrb[0].mxu0 %v2254
        %v2327 = vpop.f32.mrb[0].mxu0
        %v2328 = vadd.f32 0.0, %v2327
        %v2329 = vpop.f32.mrb[0].mxu0
        %2330 = vdwg.mxu0
        %v2332 = vsel %vm2249, %v2145, 0
        %v2335 = vsel %vm2249, %v2146, 0
        %2337 = vmatprep.subr.mxu0 0.0
        %2338 = vmatpush1.msra.mxu0 %v2177
        %2339 = vmatprep.subr.mxu0 0.0
        %2340 = vmatpush1.msra.mxu0 %v2178
        %2341 = vmatprep.subr.mxu0 0.0
        %2342 = vmatpush1.msra.mxu0 %v2179
        %2343 = vmatprep.subr.mxu0 0.0
        %2344 = vmatpush1.msra.mxu0 %v2180
        %2345 = vmatprep.subr.mxu0 0.0
        %2346 = vmatpush1.msra.mxu0 %v2181
        %2347 = vmatprep.subr.mxu0 0.0
        %2348 = vmatpush1.msra.mxu0 %v2182
        %2349 = vmatprep.subr.mxu0 0.0
        %2350 = vmatpush1.msra.mxu0 %v2183
        %2351 = vmatprep.subr.mxu0 0.0
        %2352 = vmatpush1.msra.mxu0 %v2184
        %2353 = vmatprep.subr.mxu0 0.0
        %2354 = vmatpush1.msra.mxu0 0.0
        %2355 = vmatprep.subr.mxu0 0.0
        %2356 = vmatpush1.msra.mxu0 0.0
        %2357 = vmatprep.subr.mxu0 0.0
        %2358 = vmatpush1.msra.mxu0 0.0
        %2359 = vmatprep.subr.mxu0 0.0
        %2360 = vmatpush1.msra.mxu0 0.0
        %2361 = vmatprep.subr.mxu0 0.0
        %2362 = vmatpush1.msra.mxu0 0.0
        %2363 = vmatprep.subr.mxu0 0.0
        %2364 = vmatpush1.msra.mxu0 0.0
        %2365 = vmatprep.subr.mxu0 0.0
        %2366 = vmatpush1.msra.mxu0 0.0
        %2367 = vmatprep.subr.mxu0 0.0
        %2368 = vmatpush1.msra.mxu0 0.0
        %2369 = vmatprep.subr.mxu0 0.0
        %2370 = vmatpush1.msra.mxu0 0.0
        %2371 = vmatprep.subr.mxu0 0.0
        %2372 = vmatpush1.msra.mxu0 0.0
        %2373 = vmatprep.subr.mxu0 0.0
        %2374 = vmatpush1.msra.mxu0 0.0
        %2375 = vmatprep.subr.mxu0 0.0
        %2376 = vmatpush1.msra.mxu0 0.0
        %2377 = vmatprep.subr.mxu0 0.0
        %2378 = vmatpush1.msra.mxu0 0.0
        %2379 = vmatprep.subr.mxu0 0.0
        %2380 = vmatpush1.msra.mxu0 0.0
        %2381 = vmatprep.subr.mxu0 0.0
        %2382 = vmatpush1.msra.mxu0 0.0
        %2383 = vmatprep.subr.mxu0 0.0
        %2384 = vmatpush1.msra.mxu0 0.0
        %2385 = vmatprep.subr.mxu0 0.0
        %2386 = vmatpush1.msra.mxu0 0.0
        %2387 = vmatprep.subr.mxu0 0.0
        %2388 = vmatpush1.msra.mxu0 0.0
        %2389 = vmatprep.subr.mxu0 0.0
        %2390 = vmatpush1.msra.mxu0 0.0
        %2391 = vmatprep.subr.mxu0 0.0
        %2392 = vmatpush1.msra.mxu0 0.0
        %2393 = vmatprep.subr.mxu0 0.0
        %2394 = vmatpush1.msra.mxu0 0.0
        %2395 = vmatprep.subr.mxu0 0.0
        %2396 = vmatpush1.msra.mxu0 0.0
        %2397 = vmatprep.subr.mxu0 0.0
        %2398 = vmatpush1.msra.mxu0 0.0
        %2399 = vmatprep.subr.mxu0 0.0
        %2400 = vmatpush1.msra.mxu0 0.0
        %2401 = vmatprep.mubr.f32.mxu0 0.0
        %2402 = vmatmul.mubr.f32.gmra.mrb[0].mxu0 %v2332
        %v2403 = vpop.f32.mrb[0].mxu0
        %v2404 = vadd.f32 %v2323, %v2403
        %v2405 = vpop.f32.mrb[0].mxu0
        %2406 = vmatprep.mubr.f32.mxu0 0.0
        %2407 = vmatmul.mubr.f32.gmra.mrb[0].mxu0 %v2335
        %v2408 = vpop.f32.mrb[0].mxu0
        %v2409 = vadd.f32 %v2328, %v2408
        %v2410 = vpop.f32.mrb[0].mxu0
        %2411 = vdwg.mxu0
        %v2413 = vsel %vm2249, %v2149, 0
        %v2416 = vsel %vm2249, %v2150, 0
        %2418 = vmatprep.subr.mxu0 0.0
        %2419 = vmatpush1.msra.mxu0 %v2193
        %2420 = vmatprep.subr.mxu0 0.0
        %2421 = vmatpush1.msra.mxu0 %v2194
        %2422 = vmatprep.subr.mxu0 0.0
        %2423 = vmatpush1.msra.mxu0 %v2195
        %2424 = vmatprep.subr.mxu0 0.0
        %2425 = vmatpush1.msra.mxu0 %v2196
        %2426 = vmatprep.subr.mxu0 0.0
        %2427 = vmatpush1.msra.mxu0 %v2197
        %2428 = vmatprep.subr.mxu0 0.0
        %2429 = vmatpush1.msra.mxu0 %v2198
        %2430 = vmatprep.subr.mxu0 0.0
        %2431 = vmatpush1.msra.mxu0 %v2199
        %2432 = vmatprep.subr.mxu0 0.0
        %2433 = vmatpush1.msra.mxu0 %v2200
        %2434 = vmatprep.subr.mxu0 0.0
        %2435 = vmatpush1.msra.mxu0 0.0
        %2436 = vmatprep.subr.mxu0 0.0
        %2437 = vmatpush1.msra.mxu0 0.0
        %2438 = vmatprep.subr.mxu0 0.0
        %2439 = vmatpush1.msra.mxu0 0.0
        %2440 = vmatprep.subr.mxu0 0.0
        %2441 = vmatpush1.msra.mxu0 0.0
        %2442 = vmatprep.subr.mxu0 0.0
        %2443 = vmatpush1.msra.mxu0 0.0
        %2444 = vmatprep.subr.mxu0 0.0
        %2445 = vmatpush1.msra.mxu0 0.0
        %2446 = vmatprep.subr.mxu0 0.0
        %2447 = vmatpush1.msra.mxu0 0.0
        %2448 = vmatprep.subr.mxu0 0.0
        %2449 = vmatpush1.msra.mxu0 0.0
        %2450 = vmatprep.subr.mxu0 0.0
        %2451 = vmatpush1.msra.mxu0 0.0
        %2452 = vmatprep.subr.mxu0 0.0
        %2453 = vmatpush1.msra.mxu0 0.0
        %2454 = vmatprep.subr.mxu0 0.0
        %2455 = vmatpush1.msra.mxu0 0.0
        %2456 = vmatprep.subr.mxu0 0.0
        %2457 = vmatpush1.msra.mxu0 0.0
        %2458 = vmatprep.subr.mxu0 0.0
        %2459 = vmatpush1.msra.mxu0 0.0
        %2460 = vmatprep.subr.mxu0 0.0
        %2461 = vmatpush1.msra.mxu0 0.0
        %2462 = vmatprep.subr.mxu0 0.0
        %2463 = vmatpush1.msra.mxu0 0.0
        %2464 = vmatprep.subr.mxu0 0.0
        %2465 = vmatpush1.msra.mxu0 0.0
        %2466 = vmatprep.subr.mxu0 0.0
        %2467 = vmatpush1.msra.mxu0 0.0
        %2468 = vmatprep.subr.mxu0 0.0
        %2469 = vmatpush1.msra.mxu0 0.0
        %2470 = vmatprep.subr.mxu0 0.0
        %2471 = vmatpush1.msra.mxu0 0.0
        %2472 = vmatprep.subr.mxu0 0.0
        %2473 = vmatpush1.msra.mxu0 0.0
        %2474 = vmatprep.subr.mxu0 0.0
        %2475 = vmatpush1.msra.mxu0 0.0
        %2476 = vmatprep.subr.mxu0 0.0
        %2477 = vmatpush1.msra.mxu0 0.0
        %2478 = vmatprep.subr.mxu0 0.0
        %2479 = vmatpush1.msra.mxu0 0.0
        %2480 = vmatprep.subr.mxu0 0.0
        %2481 = vmatpush1.msra.mxu0 0.0
        %2482 = vmatprep.mubr.f32.mxu0 0.0
        %2483 = vmatmul.mubr.f32.gmra.mrb[0].mxu0 %v2413
        %v2484 = vpop.f32.mrb[0].mxu0
        %v2485 = vadd.f32 0.0, %v2484
        %v2486 = vpop.f32.mrb[0].mxu0
        %2487 = vmatprep.mubr.f32.mxu0 0.0
        %2488 = vmatmul.mubr.f32.gmra.mrb[0].mxu0 %v2416
        %v2489 = vpop.f32.mrb[0].mxu0
        %v2490 = vadd.f32 0.0, %v2489
        %v2491 = vpop.f32.mrb[0].mxu0
        %2492 = vdwg.mxu0
        %v2493 = vadd.f32 %v2404, %v2485
        %v2494 = vadd.f32 %v2409, %v2490
        %v2496 = vsel %vm2249, %v2153, 0
        %v2499 = vsel %vm2249, %v2154, 0
        %2501 = vmatprep.subr.mxu0 0.0
        %2502 = vmatpush1.msra.mxu0 %v2201
        %2503 = vmatprep.subr.mxu0 0.0
        %2504 = vmatpush1.msra.mxu0 %v2202
        %2505 = vmatprep.subr.mxu0 0.0
        %2506 = vmatpush1.msra.mxu0 %v2203
        %2507 = vmatprep.subr.mxu0 0.0
        %2508 = vmatpush1.msra.mxu0 %v2204
        %2509 = vmatprep.subr.mxu0 0.0
        %2510 = vmatpush1.msra.mxu0 %v2205
        %2511 = vmatprep.subr.mxu0 0.0
        %2512 = vmatpush1.msra.mxu0 %v2206
        %2513 = vmatprep.subr.mxu0 0.0
        %2514 = vmatpush1.msra.mxu0 %v2207
        %2515 = vmatprep.subr.mxu0 0.0
        %2516 = vmatpush1.msra.mxu0 %v2208
        %2517 = vmatprep.subr.mxu0 0.0
        %2518 = vmatpush1.msra.mxu0 0.0
        %2519 = vmatprep.subr.mxu0 0.0
        %2520 = vmatpush1.msra.mxu0 0.0
        %2521 = vmatprep.subr.mxu0 0.0
        %2522 = vmatpush1.msra.mxu0 0.0
        %2523 = vmatprep.subr.mxu0 0.0
        %2524 = vmatpush1.msra.mxu0 0.0
        %2525 = vmatprep.subr.mxu0 0.0
        %2526 = vmatpush1.msra.mxu0 0.0
        %2527 = vmatprep.subr.mxu0 0.0
        %2528 = vmatpush1.msra.mxu0 0.0
        %2529 = vmatprep.subr.mxu0 0.0
        %2530 = vmatpush1.msra.mxu0 0.0
        %2531 = vmatprep.subr.mxu0 0.0
        %2532 = vmatpush1.msra.mxu0 0.0
        %2533 = vmatprep.subr.mxu0 0.0
        %2534 = vmatpush1.msra.mxu0 0.0
        %2535 = vmatprep.subr.mxu0 0.0
        %2536 = vmatpush1.msra.mxu0 0.0
        %2537 = vmatprep.subr.mxu0 0.0
        %2538 = vmatpush1.msra.mxu0 0.0
        %2539 = vmatprep.subr.mxu0 0.0
        %2540 = vmatpush1.msra.mxu0 0.0
        %2541 = vmatprep.subr.mxu0 0.0
        %2542 = vmatpush1.msra.mxu0 0.0
        %2543 = vmatprep.subr.mxu0 0.0
        %2544 = vmatpush1.msra.mxu0 0.0
        %2545 = vmatprep.subr.mxu0 0.0
        %2546 = vmatpush1.msra.mxu0 0.0
        %2547 = vmatprep.subr.mxu0 0.0
        %2548 = vmatpush1.msra.mxu0 0.0
        %2549 = vmatprep.subr.mxu0 0.0
        %2550 = vmatpush1.msra.mxu0 0.0
        %2551 = vmatprep.subr.mxu0 0.0
        %2552 = vmatpush1.msra.mxu0 0.0
        %2553 = vmatprep.subr.mxu0 0.0
        %2554 = vmatpush1.msra.mxu0 0.0
        %2555 = vmatprep.subr.mxu0 0.0
        %2556 = vmatpush1.msra.mxu0 0.0
        %2557 = vmatprep.subr.mxu0 0.0
        %2558 = vmatpush1.msra.mxu0 0.0
        %2559 = vmatprep.subr.mxu0 0.0
        %2560 = vmatpush1.msra.mxu0 0.0
        %2561 = vmatprep.subr.mxu0 0.0
        %2562 = vmatpush1.msra.mxu0 0.0
        %2563 = vmatprep.subr.mxu0 0.0
        %2564 = vmatpush1.msra.mxu0 0.0
        %2565 = vmatprep.mubr.f32.mxu0 0.0
        %2566 = vmatmul.mubr.f32.gmra.mrb[0].mxu0 %v2496
        %v2567 = vpop.f32.mrb[0].mxu0
        %v2568 = vadd.f32 0.0, %v2567
        %v2569 = vpop.f32.mrb[0].mxu0
        %2570 = vmatprep.mubr.f32.mxu0 0.0
        %2571 = vmatmul.mubr.f32.gmra.mrb[0].mxu0 %v2499
        %v2572 = vpop.f32.mrb[0].mxu0
        %v2573 = vadd.f32 0.0, %v2572
        %v2574 = vpop.f32.mrb[0].mxu0
        %2575 = vdwg.mxu0
        %v2576 = vadd.f32 %v2493, %v2568
        %v2577 = vadd.f32 %v2494, %v2573
        %v2579 = vsel %vm2249, %v2155, 0
        %v2582 = vsel %vm2249, %v2156, 0
        %2584 = vmatprep.subr.mxu0 0.0
        %2585 = vmatpush1.msra.mxu0 %v2209
        %2586 = vmatprep.subr.mxu0 0.0
        %2587 = vmatpush1.msra.mxu0 %v2210
        %2588 = vmatprep.subr.mxu0 0.0
        %2589 = vmatpush1.msra.mxu0 %v2211
        %2590 = vmatprep.subr.mxu0 0.0
        %2591 = vmatpush1.msra.mxu0 %v2212
        %2592 = vmatprep.subr.mxu0 0.0
        %2593 = vmatpush1.msra.mxu0 %v2213
        %2594 = vmatprep.subr.mxu0 0.0
        %2595 = vmatpush1.msra.mxu0 %v2214
        %2596 = vmatprep.subr.mxu0 0.0
        %2597 = vmatpush1.msra.mxu0 %v2215
        %2598 = vmatprep.subr.mxu0 0.0
        %2599 = vmatpush1.msra.mxu0 %v2216
        %2600 = vmatprep.subr.mxu0 0.0
        %2601 = vmatpush1.msra.mxu0 0.0
        %2602 = vmatprep.subr.mxu0 0.0
        %2603 = vmatpush1.msra.mxu0 0.0
        %2604 = vmatprep.subr.mxu0 0.0
        %2605 = vmatpush1.msra.mxu0 0.0
        %2606 = vmatprep.subr.mxu0 0.0
        %2607 = vmatpush1.msra.mxu0 0.0
        %2608 = vmatprep.subr.mxu0 0.0
        %2609 = vmatpush1.msra.mxu0 0.0
        %2610 = vmatprep.subr.mxu0 0.0
        %2611 = vmatpush1.msra.mxu0 0.0
        %2612 = vmatprep.subr.mxu0 0.0
        %2613 = vmatpush1.msra.mxu0 0.0
        %2614 = vmatprep.subr.mxu0 0.0
        %2615 = vmatpush1.msra.mxu0 0.0
        %2616 = vmatprep.subr.mxu0 0.0
        %2617 = vmatpush1.msra.mxu0 0.0
        %2618 = vmatprep.subr.mxu0 0.0
        %2619 = vmatpush1.msra.mxu0 0.0
        %2620 = vmatprep.subr.mxu0 0.0
        %2621 = vmatpush1.msra.mxu0 0.0
        %2622 = vmatprep.subr.mxu0 0.0
        %2623 = vmatpush1.msra.mxu0 0.0
        %2624 = vmatprep.subr.mxu0 0.0
        %2625 = vmatpush1.msra.mxu0 0.0
        %2626 = vmatprep.subr.mxu0 0.0
        %2627 = vmatpush1.msra.mxu0 0.0
        %2628 = vmatprep.subr.mxu0 0.0
        %2629 = vmatpush1.msra.mxu0 0.0
        %2630 = vmatprep.subr.mxu0 0.0
        %2631 = vmatpush1.msra.mxu0 0.0
        %2632 = vmatprep.subr.mxu0 0.0
        %2633 = vmatpush1.msra.mxu0 0.0
        %2634 = vmatprep.subr.mxu0 0.0
        %2635 = vmatpush1.msra.mxu0 0.0
        %2636 = vmatprep.subr.mxu0 0.0
        %2637 = vmatpush1.msra.mxu0 0.0
        %2638 = vmatprep.subr.mxu0 0.0
        %2639 = vmatpush1.msra.mxu0 0.0
        %2640 = vmatprep.subr.mxu0 0.0
        %2641 = vmatpush1.msra.mxu0 0.0
        %2642 = vmatprep.subr.mxu0 0.0
        %2643 = vmatpush1.msra.mxu0 0.0
        %2644 = vmatprep.subr.mxu0 0.0
        %2645 = vmatpush1.msra.mxu0 0.0
        %2646 = vmatprep.subr.mxu0 0.0
        %2647 = vmatpush1.msra.mxu0 0.0
        %2648 = vmatprep.mubr.f32.mxu0 0.0
        %2649 = vmatmul.mubr.f32.gmra.mrb[0].mxu0 %v2579
        %v2650 = vpop.f32.mrb[0].mxu0
        %v2651 = vadd.f32 0.0, %v2650
        %v2652 = vpop.f32.mrb[0].mxu0
        %2653 = vmatprep.mubr.f32.mxu0 0.0
        %2654 = vmatmul.mubr.f32.gmra.mrb[0].mxu0 %v2582
        %v2655 = vpop.f32.mrb[0].mxu0
        %v2656 = vadd.f32 0.0, %v2655
        %v2657 = vpop.f32.mrb[0].mxu0
        %2658 = vdwg.mxu0
        %v2659 = vadd.f32 %v2576, %v2651
        %v2660 = vadd.f32 %v2577, %v2656
        %v2662 = vsel %vm2249, %v2157, 0
        %v2665 = vsel %vm2249, %v2158, 0
        %2667 = vmatprep.subr.mxu0 0.0
        %2668 = vmatpush1.msra.mxu0 %v2217
        %2669 = vmatprep.subr.mxu0 0.0
        %2670 = vmatpush1.msra.mxu0 %v2218
        %2671 = vmatprep.subr.mxu0 0.0
        %2672 = vmatpush1.msra.mxu0 %v2219
        %2673 = vmatprep.subr.mxu0 0.0
        %2674 = vmatpush1.msra.mxu0 %v2220
        %2675 = vmatprep.subr.mxu0 0.0
        %2676 = vmatpush1.msra.mxu0 %v2221
        %2677 = vmatprep.subr.mxu0 0.0
        %2678 = vmatpush1.msra.mxu0 %v2222
        %2679 = vmatprep.subr.mxu0 0.0
        %2680 = vmatpush1.msra.mxu0 %v2223
        %2681 = vmatprep.subr.mxu0 0.0
        %2682 = vmatpush1.msra.mxu0 %v2224
        %2683 = vmatprep.subr.mxu0 0.0
        %2684 = vmatpush1.msra.mxu0 0.0
        %2685 = vmatprep.subr.mxu0 0.0
        %2686 = vmatpush1.msra.mxu0 0.0
        %2687 = vmatprep.subr.mxu0 0.0
        %2688 = vmatpush1.msra.mxu0 0.0
        %2689 = vmatprep.subr.mxu0 0.0
        %2690 = vmatpush1.msra.mxu0 0.0
        %2691 = vmatprep.subr.mxu0 0.0
        %2692 = vmatpush1.msra.mxu0 0.0
        %2693 = vmatprep.subr.mxu0 0.0
        %2694 = vmatpush1.msra.mxu0 0.0
        %2695 = vmatprep.subr.mxu0 0.0
        %2696 = vmatpush1.msra.mxu0 0.0
        %2697 = vmatprep.subr.mxu0 0.0
        %2698 = vmatpush1.msra.mxu0 0.0
        %2699 = vmatprep.subr.mxu0 0.0
        %2700 = vmatpush1.msra.mxu0 0.0
        %2701 = vmatprep.subr.mxu0 0.0
        %2702 = vmatpush1.msra.mxu0 0.0
        %2703 = vmatprep.subr.mxu0 0.0
        %2704 = vmatpush1.msra.mxu0 0.0
        %2705 = vmatprep.subr.mxu0 0.0
        %2706 = vmatpush1.msra.mxu0 0.0
        %2707 = vmatprep.subr.mxu0 0.0
        %2708 = vmatpush1.msra.mxu0 0.0
        %2709 = vmatprep.subr.mxu0 0.0
        %2710 = vmatpush1.msra.mxu0 0.0
        %2711 = vmatprep.subr.mxu0 0.0
        %2712 = vmatpush1.msra.mxu0 0.0
        %2713 = vmatprep.subr.mxu0 0.0
        %2714 = vmatpush1.msra.mxu0 0.0
        %2715 = vmatprep.subr.mxu0 0.0
        %2716 = vmatpush1.msra.mxu0 0.0
        %2717 = vmatprep.subr.mxu0 0.0
        %2718 = vmatpush1.msra.mxu0 0.0
        %2719 = vmatprep.subr.mxu0 0.0
        %2720 = vmatpush1.msra.mxu0 0.0
        %2721 = vmatprep.subr.mxu0 0.0
        %2722 = vmatpush1.msra.mxu0 0.0
        %2723 = vmatprep.subr.mxu0 0.0
        %2724 = vmatpush1.msra.mxu0 0.0
        %2725 = vmatprep.subr.mxu0 0.0
        %2726 = vmatpush1.msra.mxu0 0.0
        %2727 = vmatprep.subr.mxu0 0.0
        %2728 = vmatpush1.msra.mxu0 0.0
        %2729 = vmatprep.subr.mxu0 0.0
        %2730 = vmatpush1.msra.mxu0 0.0
        %2731 = vmatprep.mubr.f32.mxu0 0.0
        %2732 = vmatmul.mubr.f32.gmra.mrb[0].mxu0 %v2662
        %v2733 = vpop.f32.mrb[0].mxu0
        %v2734 = vadd.f32 0.0, %v2733
        %v2735 = vpop.f32.mrb[0].mxu0
        %2736 = vmatprep.mubr.f32.mxu0 0.0
        %2737 = vmatmul.mubr.f32.gmra.mrb[0].mxu0 %v2665
        %v2738 = vpop.f32.mrb[0].mxu0
        %v2739 = vadd.f32 0.0, %v2738
        %v2740 = vpop.f32.mrb[0].mxu0
        %2741 = vdwg.mxu0
        %v2742 = vadd.f32 %v2659, %v2734
        %v2743 = vadd.f32 %v2660, %v2739
        %v2745 = vsel %vm2249, %v2161, 0
        %v2748 = vsel %vm2249, %v2162, 0
        %2750 = vmatprep.subr.mxu0 0.0
        %2751 = vmatpush1.msra.mxu0 %v2225
        %2752 = vmatprep.subr.mxu0 0.0
        %2753 = vmatpush1.msra.mxu0 %v2226
        %2754 = vmatprep.subr.mxu0 0.0
        %2755 = vmatpush1.msra.mxu0 %v2227
        %2756 = vmatprep.subr.mxu0 0.0
        %2757 = vmatpush1.msra.mxu0 %v2228
        %2758 = vmatprep.subr.mxu0 0.0
        %2759 = vmatpush1.msra.mxu0 %v2229
        %2760 = vmatprep.subr.mxu0 0.0
        %2761 = vmatpush1.msra.mxu0 %v2230
        %2762 = vmatprep.subr.mxu0 0.0
        %2763 = vmatpush1.msra.mxu0 %v2231
        %2764 = vmatprep.subr.mxu0 0.0
        %2765 = vmatpush1.msra.mxu0 %v2232
        %2766 = vmatprep.subr.mxu0 0.0
        %2767 = vmatpush1.msra.mxu0 0.0
        %2768 = vmatprep.subr.mxu0 0.0
        %2769 = vmatpush1.msra.mxu0 0.0
        %2770 = vmatprep.subr.mxu0 0.0
        %2771 = vmatpush1.msra.mxu0 0.0
        %2772 = vmatprep.subr.mxu0 0.0
        %2773 = vmatpush1.msra.mxu0 0.0
        %2774 = vmatprep.subr.mxu0 0.0
        %2775 = vmatpush1.msra.mxu0 0.0
        %2776 = vmatprep.subr.mxu0 0.0
        %2777 = vmatpush1.msra.mxu0 0.0
        %2778 = vmatprep.subr.mxu0 0.0
        %2779 = vmatpush1.msra.mxu0 0.0
        %2780 = vmatprep.subr.mxu0 0.0
        %2781 = vmatpush1.msra.mxu0 0.0
        %2782 = vmatprep.subr.mxu0 0.0
        %2783 = vmatpush1.msra.mxu0 0.0
        %2784 = vmatprep.subr.mxu0 0.0
        %2785 = vmatpush1.msra.mxu0 0.0
        %2786 = vmatprep.subr.mxu0 0.0
        %2787 = vmatpush1.msra.mxu0 0.0
        %2788 = vmatprep.subr.mxu0 0.0
        %2789 = vmatpush1.msra.mxu0 0.0
        %2790 = vmatprep.subr.mxu0 0.0
        %2791 = vmatpush1.msra.mxu0 0.0
        %2792 = vmatprep.subr.mxu0 0.0
        %2793 = vmatpush1.msra.mxu0 0.0
        %2794 = vmatprep.subr.mxu0 0.0
        %2795 = vmatpush1.msra.mxu0 0.0
        %2796 = vmatprep.subr.mxu0 0.0
        %2797 = vmatpush1.msra.mxu0 0.0
        %2798 = vmatprep.subr.mxu0 0.0
        %2799 = vmatpush1.msra.mxu0 0.0
        %2800 = vmatprep.subr.mxu0 0.0
        %2801 = vmatpush1.msra.mxu0 0.0
        %2802 = vmatprep.subr.mxu0 0.0
        %2803 = vmatpush1.msra.mxu0 0.0
        %2804 = vmatprep.subr.mxu0 0.0
        %2805 = vmatpush1.msra.mxu0 0.0
        %2806 = vmatprep.subr.mxu0 0.0
        %2807 = vmatpush1.msra.mxu0 0.0
        %2808 = vmatprep.subr.mxu0 0.0
        %2809 = vmatpush1.msra.mxu0 0.0
        %2810 = vmatprep.subr.mxu0 0.0
        %2811 = vmatpush1.msra.mxu0 0.0
        %2812 = vmatprep.subr.mxu0 0.0
        %2813 = vmatpush1.msra.mxu0 0.0
        %2814 = vmatprep.mubr.f32.mxu0 0.0
        %2815 = vmatmul.mubr.f32.gmra.mrb[0].mxu0 %v2745
        %v2816 = vpop.f32.mrb[0].mxu0
        %v2817 = vadd.f32 0.0, %v2816
        %v2818 = vpop.f32.mrb[0].mxu0
        %2819 = vmatprep.mubr.f32.mxu0 0.0
        %2820 = vmatmul.mubr.f32.gmra.mrb[0].mxu0 %v2748
        %v2821 = vpop.f32.mrb[0].mxu0
        %v2822 = vadd.f32 0.0, %v2821
        %v2823 = vpop.f32.mrb[0].mxu0
        %2824 = vdwg.mxu0
        %v2825 = vadd.f32 %v2742, %v2817
        %v2826 = vadd.f32 %v2743, %v2822
        %v2828 = vsel %vm2249, %v2163, 0
        %v2831 = vsel %vm2249, %v2164, 0
        %2833 = vmatprep.subr.mxu0 0.0
        %2834 = vmatpush1.msra.mxu0 %v2233
        %2835 = vmatprep.subr.mxu0 0.0
        %2836 = vmatpush1.msra.mxu0 %v2234
        %2837 = vmatprep.subr.mxu0 0.0
        %2838 = vmatpush1.msra.mxu0 %v2235
        %2839 = vmatprep.subr.mxu0 0.0
        %2840 = vmatpush1.msra.mxu0 %v2236
        %2841 = vmatprep.subr.mxu0 0.0
        %2842 = vmatpush1.msra.mxu0 %v2237
        %2843 = vmatprep.subr.mxu0 0.0
        %2844 = vmatpush1.msra.mxu0 %v2238
        %2845 = vmatprep.subr.mxu0 0.0
        %2846 = vmatpush1.msra.mxu0 %v2239
        %2847 = vmatprep.subr.mxu0 0.0
        %2848 = vmatpush1.msra.mxu0 %v2240
        %2849 = vmatprep.subr.mxu0 0.0
        %2850 = vmatpush1.msra.mxu0 0.0
        %2851 = vmatprep.subr.mxu0 0.0
        %2852 = vmatpush1.msra.mxu0 0.0
        %2853 = vmatprep.subr.mxu0 0.0
        %2854 = vmatpush1.msra.mxu0 0.0
        %2855 = vmatprep.subr.mxu0 0.0
        %2856 = vmatpush1.msra.mxu0 0.0
        %2857 = vmatprep.subr.mxu0 0.0
        %2858 = vmatpush1.msra.mxu0 0.0
        %2859 = vmatprep.subr.mxu0 0.0
        %2860 = vmatpush1.msra.mxu0 0.0
        %2861 = vmatprep.subr.mxu0 0.0
        %2862 = vmatpush1.msra.mxu0 0.0
        %2863 = vmatprep.subr.mxu0 0.0
        %2864 = vmatpush1.msra.mxu0 0.0
        %2865 = vmatprep.subr.mxu0 0.0
        %2866 = vmatpush1.msra.mxu0 0.0
        %2867 = vmatprep.subr.mxu0 0.0
        %2868 = vmatpush1.msra.mxu0 0.0
        %2869 = vmatprep.subr.mxu0 0.0
        %2870 = vmatpush1.msra.mxu0 0.0
        %2871 = vmatprep.subr.mxu0 0.0
        %2872 = vmatpush1.msra.mxu0 0.0
        %2873 = vmatprep.subr.mxu0 0.0
        %2874 = vmatpush1.msra.mxu0 0.0
        %2875 = vmatprep.subr.mxu0 0.0
        %2876 = vmatpush1.msra.mxu0 0.0
        %2877 = vmatprep.subr.mxu0 0.0
        %2878 = vmatpush1.msra.mxu0 0.0
        %2879 = vmatprep.subr.mxu0 0.0
        %2880 = vmatpush1.msra.mxu0 0.0
        %2881 = vmatprep.subr.mxu0 0.0
        %2882 = vmatpush1.msra.mxu0 0.0
        %2883 = vmatprep.subr.mxu0 0.0
        %2884 = vmatpush1.msra.mxu0 0.0
        %2885 = vmatprep.subr.mxu0 0.0
        %2886 = vmatpush1.msra.mxu0 0.0
        %2887 = vmatprep.subr.mxu0 0.0
        %2888 = vmatpush1.msra.mxu0 0.0
        %2889 = vmatprep.subr.mxu0 0.0
        %2890 = vmatpush1.msra.mxu0 0.0
        %2891 = vmatprep.subr.mxu0 0.0
        %2892 = vmatpush1.msra.mxu0 0.0
        %2893 = vmatprep.subr.mxu0 0.0
        %2894 = vmatpush1.msra.mxu0 0.0
        %2895 = vmatprep.subr.mxu0 0.0
        %2896 = vmatpush1.msra.mxu0 0.0
        %2897 = vmatprep.mubr.f32.mxu0 0.0
        %2898 = vmatmul.mubr.f32.gmra.mrb[0].mxu0 %v2828
        %v2899 = vpop.f32.mrb[0].mxu0
        %v2900 = vadd.f32 0.0, %v2899
        %v2901 = vpop.f32.mrb[0].mxu0
        %2902 = vmatprep.mubr.f32.mxu0 0.0
        %2903 = vmatmul.mubr.f32.gmra.mrb[0].mxu0 %v2831
        %v2904 = vpop.f32.mrb[0].mxu0
        %v2905 = vadd.f32 0.0, %v2904
        %v2906 = vpop.f32.mrb[0].mxu0
        %2907 = vdwg.mxu0
        %v2908 = vadd.f32 %v2825, %v2900
        %v2909 = vadd.f32 %v2826, %v2905
        %v2911 = vsel %vm2249, %v2165, 0
        %v2914 = vsel %vm2249, %v2166, 0
        %2916 = vmatprep.subr.mxu0 0.0
        %2917 = vmatpush1.msra.mxu0 %v2241
        %2918 = vmatprep.subr.mxu0 0.0
        %2919 = vmatpush1.msra.mxu0 %v2242
        %2920 = vmatprep.subr.mxu0 0.0
        %2921 = vmatpush1.msra.mxu0 %v2243
        %2922 = vmatprep.subr.mxu0 0.0
        %2923 = vmatpush1.msra.mxu0 %v2244
        %2924 = vmatprep.subr.mxu0 0.0
        %2925 = vmatpush1.msra.mxu0 %v2245
        %2926 = vmatprep.subr.mxu0 0.0
        %2927 = vmatpush1.msra.mxu0 %v2246
        %2928 = vmatprep.subr.mxu0 0.0
        %2929 = vmatpush1.msra.mxu0 %v2247
        %2930 = vmatprep.subr.mxu0 0.0
        %2931 = vmatpush1.msra.mxu0 %v2248
        %2932 = vmatprep.subr.mxu0 0.0
        %2933 = vmatpush1.msra.mxu0 0.0
        %2934 = vmatprep.subr.mxu0 0.0
        %2935 = vmatpush1.msra.mxu0 0.0
        %2936 = vmatprep.subr.mxu0 0.0
        %2937 = vmatpush1.msra.mxu0 0.0
        %2938 = vmatprep.subr.mxu0 0.0
        %2939 = vmatpush1.msra.mxu0 0.0
        %2940 = vmatprep.subr.mxu0 0.0
        %2941 = vmatpush1.msra.mxu0 0.0
        %2942 = vmatprep.subr.mxu0 0.0
        %2943 = vmatpush1.msra.mxu0 0.0
        %2944 = vmatprep.subr.mxu0 0.0
        %2945 = vmatpush1.msra.mxu0 0.0
        %2946 = vmatprep.subr.mxu0 0.0
        %2947 = vmatpush1.msra.mxu0 0.0
        %2948 = vmatprep.subr.mxu0 0.0
        %2949 = vmatpush1.msra.mxu0 0.0
        %2950 = vmatprep.subr.mxu0 0.0
        %2951 = vmatpush1.msra.mxu0 0.0
        %2952 = vmatprep.subr.mxu0 0.0
        %2953 = vmatpush1.msra.mxu0 0.0
        %2954 = vmatprep.subr.mxu0 0.0
        %2955 = vmatpush1.msra.mxu0 0.0
        %2956 = vmatprep.subr.mxu0 0.0
        %2957 = vmatpush1.msra.mxu0 0.0
        %2958 = vmatprep.subr.mxu0 0.0
        %2959 = vmatpush1.msra.mxu0 0.0
        %2960 = vmatprep.subr.mxu0 0.0
        %2961 = vmatpush1.msra.mxu0 0.0
        %2962 = vmatprep.subr.mxu0 0.0
        %2963 = vmatpush1.msra.mxu0 0.0
        %2964 = vmatprep.subr.mxu0 0.0
        %2965 = vmatpush1.msra.mxu0 0.0
        %2966 = vmatprep.subr.mxu0 0.0
        %2967 = vmatpush1.msra.mxu0 0.0
        %2968 = vmatprep.subr.mxu0 0.0
        %2969 = vmatpush1.msra.mxu0 0.0
        %2970 = vmatprep.subr.mxu0 0.0
        %2971 = vmatpush1.msra.mxu0 0.0
        %2972 = vmatprep.subr.mxu0 0.0
        %2973 = vmatpush1.msra.mxu0 0.0
        %2974 = vmatprep.subr.mxu0 0.0
        %2975 = vmatpush1.msra.mxu0 0.0
        %2976 = vmatprep.subr.mxu0 0.0
        %2977 = vmatpush1.msra.mxu0 0.0
        %2978 = vmatprep.subr.mxu0 0.0
        %2979 = vmatpush1.msra.mxu0 0.0
        %2980 = vmatprep.mubr.f32.mxu0 0.0
        %2981 = vmatmul.mubr.f32.gmra.mrb[0].mxu0 %v2911
        %v2982 = vpop.f32.mrb[0].mxu0
        %v2983 = vadd.f32 0.0, %v2982
        %v2984 = vpop.f32.mrb[0].mxu0
        %2985 = vmatprep.mubr.f32.mxu0 0.0
        %2986 = vmatmul.mubr.f32.gmra.mrb[0].mxu0 %v2914
        %v2987 = vpop.f32.mrb[0].mxu0
        %v2988 = vadd.f32 0.0, %v2987
        %v2989 = vpop.f32.mrb[0].mxu0
        %2990 = vdwg.mxu0
        %v2991 = vadd.f32 %v2908, %v2983
        %v2992 = vadd.f32 %v2909, %v2988
        %2993 = vmatprep.subr.mxu0 0.0
        %2994 = vmatpush1.msra.mxu0 %v2185
        %2995 = vmatprep.subr.mxu0 0.0
        %2996 = vmatpush1.msra.mxu0 %v2186
        %2997 = vmatprep.subr.mxu0 0.0
        %2998 = vmatpush1.msra.mxu0 %v2187
        %2999 = vmatprep.subr.mxu0 0.0
        %3000 = vmatpush1.msra.mxu0 %v2188
        %3001 = vmatprep.subr.mxu0 0.0
        %3002 = vmatpush1.msra.mxu0 %v2189
        %3003 = vmatprep.subr.mxu0 0.0
        %3004 = vmatpush1.msra.mxu0 %v2190
        %3005 = vmatprep.subr.mxu0 0.0
        %3006 = vmatpush1.msra.mxu0 %v2191
        %3007 = vmatprep.subr.mxu0 0.0
        %3008 = vmatpush1.msra.mxu0 %v2192
        %3009 = vmatprep.subr.mxu0 0.0
        %3010 = vmatpush1.msra.mxu0 0.0
        %3011 = vmatprep.subr.mxu0 0.0
        %3012 = vmatpush1.msra.mxu0 0.0
        %3013 = vmatprep.subr.mxu0 0.0
        %3014 = vmatpush1.msra.mxu0 0.0
        %3015 = vmatprep.subr.mxu0 0.0
        %3016 = vmatpush1.msra.mxu0 0.0
        %3017 = vmatprep.subr.mxu0 0.0
        %3018 = vmatpush1.msra.mxu0 0.0
        %3019 = vmatprep.subr.mxu0 0.0
        %3020 = vmatpush1.msra.mxu0 0.0
        %3021 = vmatprep.subr.mxu0 0.0
        %3022 = vmatpush1.msra.mxu0 0.0
        %3023 = vmatprep.subr.mxu0 0.0
        %3024 = vmatpush1.msra.mxu0 0.0
        %3025 = vmatprep.subr.mxu0 0.0
        %3026 = vmatpush1.msra.mxu0 0.0
        %3027 = vmatprep.subr.mxu0 0.0
        %3028 = vmatpush1.msra.mxu0 0.0
        %3029 = vmatprep.subr.mxu0 0.0
        %3030 = vmatpush1.msra.mxu0 0.0
        %3031 = vmatprep.subr.mxu0 0.0
        %3032 = vmatpush1.msra.mxu0 0.0
        %3033 = vmatprep.subr.mxu0 0.0
        %3034 = vmatpush1.msra.mxu0 0.0
        %3035 = vmatprep.subr.mxu0 0.0
        %3036 = vmatpush1.msra.mxu0 0.0
        %3037 = vmatprep.subr.mxu0 0.0
        %3038 = vmatpush1.msra.mxu0 0.0
        %3039 = vmatprep.subr.mxu0 0.0
        %3040 = vmatpush1.msra.mxu0 0.0
        %3041 = vmatprep.subr.mxu0 0.0
        %3042 = vmatpush1.msra.mxu0 0.0
        %3043 = vmatprep.subr.mxu0 0.0
        %3044 = vmatpush1.msra.mxu0 0.0
        %3045 = vmatprep.subr.mxu0 0.0
        %3046 = vmatpush1.msra.mxu0 0.0
        %3047 = vmatprep.subr.mxu0 0.0
        %3048 = vmatpush1.msra.mxu0 0.0
        %3049 = vmatprep.subr.mxu0 0.0
        %3050 = vmatpush1.msra.mxu0 0.0
        %3051 = vmatprep.subr.mxu0 0.0
        %3052 = vmatpush1.msra.mxu0 0.0
        %3053 = vmatprep.subr.mxu0 0.0
        %3054 = vmatpush1.msra.mxu0 0.0
        %3055 = vmatprep.subr.mxu0 0.0
        %3056 = vmatpush1.msra.mxu0 0.0
        %3057 = vmatprep.mubr.f32.mxu0 0.0
        %3058 = vmatmul.mubr.f32.gmra.mrb[0].mxu0 %v2413
        %v3059 = vpop.f32.mrb[0].mxu0
        %v3060 = vadd.f32 0.0, %v3059
        %v3061 = vpop.f32.mrb[0].mxu0
        %3062 = vmatprep.mubr.f32.mxu0 0.0
        %3063 = vmatmul.mubr.f32.gmra.mrb[0].mxu0 %v2416
        %v3064 = vpop.f32.mrb[0].mxu0
        %v3065 = vadd.f32 0.0, %v3064
        %v3066 = vpop.f32.mrb[0].mxu0
        %3067 = vdwg.mxu0
        %3068 = vmatprep.subr.mxu0 0.0
        %3069 = vmatpush1.msra.mxu0 %v2177
        %3070 = vmatprep.subr.mxu0 0.0
        %3071 = vmatpush1.msra.mxu0 %v2178
        %3072 = vmatprep.subr.mxu0 0.0
        %3073 = vmatpush1.msra.mxu0 %v2179
        %3074 = vmatprep.subr.mxu0 0.0
        %3075 = vmatpush1.msra.mxu0 %v2180
        %3076 = vmatprep.subr.mxu0 0.0
        %3077 = vmatpush1.msra.mxu0 %v2181
        %3078 = vmatprep.subr.mxu0 0.0
        %3079 = vmatpush1.msra.mxu0 %v2182
        %3080 = vmatprep.subr.mxu0 0.0
        %3081 = vmatpush1.msra.mxu0 %v2183
        %3082 = vmatprep.subr.mxu0 0.0
        %3083 = vmatpush1.msra.mxu0 %v2184
        %3084 = vmatprep.subr.mxu0 0.0
        %3085 = vmatpush1.msra.mxu0 0.0
        %3086 = vmatprep.subr.mxu0 0.0
        %3087 = vmatpush1.msra.mxu0 0.0
        %3088 = vmatprep.subr.mxu0 0.0
        %3089 = vmatpush1.msra.mxu0 0.0
        %3090 = vmatprep.subr.mxu0 0.0
        %3091 = vmatpush1.msra.mxu0 0.0
        %3092 = vmatprep.subr.mxu0 0.0
        %3093 = vmatpush1.msra.mxu0 0.0
        %3094 = vmatprep.subr.mxu0 0.0
        %3095 = vmatpush1.msra.mxu0 0.0
        %3096 = vmatprep.subr.mxu0 0.0
        %3097 = vmatpush1.msra.mxu0 0.0
        %3098 = vmatprep.subr.mxu0 0.0
        %3099 = vmatpush1.msra.mxu0 0.0
        %3100 = vmatprep.subr.mxu0 0.0
        %3101 = vmatpush1.msra.mxu0 0.0
        %3102 = vmatprep.subr.mxu0 0.0
        %3103 = vmatpush1.msra.mxu0 0.0
        %3104 = vmatprep.subr.mxu0 0.0
        %3105 = vmatpush1.msra.mxu0 0.0
        %3106 = vmatprep.subr.mxu0 0.0
        %3107 = vmatpush1.msra.mxu0 0.0
        %3108 = vmatprep.subr.mxu0 0.0
        %3109 = vmatpush1.msra.mxu0 0.0
        %3110 = vmatprep.subr.mxu0 0.0
        %3111 = vmatpush1.msra.mxu0 0.0
        %3112 = vmatprep.subr.mxu0 0.0
        %3113 = vmatpush1.msra.mxu0 0.0
        %3114 = vmatprep.subr.mxu0 0.0
        %3115 = vmatpush1.msra.mxu0 0.0
        %3116 = vmatprep.subr.mxu0 0.0
        %3117 = vmatpush1.msra.mxu0 0.0
        %3118 = vmatprep.subr.mxu0 0.0
        %3119 = vmatpush1.msra.mxu0 0.0
        %3120 = vmatprep.subr.mxu0 0.0
        %3121 = vmatpush1.msra.mxu0 0.0
        %3122 = vmatprep.subr.mxu0 0.0
        %3123 = vmatpush1.msra.mxu0 0.0
        %3124 = vmatprep.subr.mxu0 0.0
        %3125 = vmatpush1.msra.mxu0 0.0
        %3126 = vmatprep.subr.mxu0 0.0
        %3127 = vmatpush1.msra.mxu0 0.0
        %3128 = vmatprep.subr.mxu0 0.0
        %3129 = vmatpush1.msra.mxu0 0.0
        %3130 = vmatprep.subr.mxu0 0.0
        %3131 = vmatpush1.msra.mxu0 0.0
        %3132 = vmatprep.mubr.f32.mxu0 0.0
        %3133 = vmatmul.mubr.f32.gmra.mrb[0].mxu0 %v2251
        %v3134 = vpop.f32.mrb[0].mxu0
        %v3135 = vadd.f32 %v3060, %v3134
        %v3136 = vpop.f32.mrb[0].mxu0
        %3137 = vmatprep.mubr.f32.mxu0 0.0
        %3138 = vmatmul.mubr.f32.gmra.mrb[0].mxu0 %v2254
        %v3139 = vpop.f32.mrb[0].mxu0
        %v3140 = vadd.f32 %v3065, %v3139
        %v3141 = vpop.f32.mrb[0].mxu0
        %3142 = vdwg.mxu0
        %v3144 = vsel %vm2249, %v2151, 0
        %v3147 = vsel %vm2249, %v2152, 0
        %3149 = vmatprep.subr.mxu0 0.0
        %3150 = vmatpush1.msra.mxu0 %v2193
        %3151 = vmatprep.subr.mxu0 0.0
        %3152 = vmatpush1.msra.mxu0 %v2194
        %3153 = vmatprep.subr.mxu0 0.0
        %3154 = vmatpush1.msra.mxu0 %v2195
        %3155 = vmatprep.subr.mxu0 0.0
        %3156 = vmatpush1.msra.mxu0 %v2196
        %3157 = vmatprep.subr.mxu0 0.0
        %3158 = vmatpush1.msra.mxu0 %v2197
        %3159 = vmatprep.subr.mxu0 0.0
        %3160 = vmatpush1.msra.mxu0 %v2198
        %3161 = vmatprep.subr.mxu0 0.0
        %3162 = vmatpush1.msra.mxu0 %v2199
        %3163 = vmatprep.subr.mxu0 0.0
        %3164 = vmatpush1.msra.mxu0 %v2200
        %3165 = vmatprep.subr.mxu0 0.0
        %3166 = vmatpush1.msra.mxu0 0.0
        %3167 = vmatprep.subr.mxu0 0.0
        %3168 = vmatpush1.msra.mxu0 0.0
        %3169 = vmatprep.subr.mxu0 0.0
        %3170 = vmatpush1.msra.mxu0 0.0
        %3171 = vmatprep.subr.mxu0 0.0
        %3172 = vmatpush1.msra.mxu0 0.0
        %3173 = vmatprep.subr.mxu0 0.0
        %3174 = vmatpush1.msra.mxu0 0.0
        %3175 = vmatprep.subr.mxu0 0.0
        %3176 = vmatpush1.msra.mxu0 0.0
        %3177 = vmatprep.subr.mxu0 0.0
        %3178 = vmatpush1.msra.mxu0 0.0
        %3179 = vmatprep.subr.mxu0 0.0
        %3180 = vmatpush1.msra.mxu0 0.0
        %3181 = vmatprep.subr.mxu0 0.0
        %3182 = vmatpush1.msra.mxu0 0.0
        %3183 = vmatprep.subr.mxu0 0.0
        %3184 = vmatpush1.msra.mxu0 0.0
        %3185 = vmatprep.subr.mxu0 0.0
        %3186 = vmatpush1.msra.mxu0 0.0
        %3187 = vmatprep.subr.mxu0 0.0
        %3188 = vmatpush1.msra.mxu0 0.0
        %3189 = vmatprep.subr.mxu0 0.0
        %3190 = vmatpush1.msra.mxu0 0.0
        %3191 = vmatprep.subr.mxu0 0.0
        %3192 = vmatpush1.msra.mxu0 0.0
        %3193 = vmatprep.subr.mxu0 0.0
        %3194 = vmatpush1.msra.mxu0 0.0
        %3195 = vmatprep.subr.mxu0 0.0
        %3196 = vmatpush1.msra.mxu0 0.0
        %3197 = vmatprep.subr.mxu0 0.0
        %3198 = vmatpush1.msra.mxu0 0.0
        %3199 = vmatprep.subr.mxu0 0.0
        %3200 = vmatpush1.msra.mxu0 0.0
        %3201 = vmatprep.subr.mxu0 0.0
        %3202 = vmatpush1.msra.mxu0 0.0
        %3203 = vmatprep.subr.mxu0 0.0
        %3204 = vmatpush1.msra.mxu0 0.0
        %3205 = vmatprep.subr.mxu0 0.0
        %3206 = vmatpush1.msra.mxu0 0.0
        %3207 = vmatprep.subr.mxu0 0.0
        %3208 = vmatpush1.msra.mxu0 0.0
        %3209 = vmatprep.subr.mxu0 0.0
        %3210 = vmatpush1.msra.mxu0 0.0
        %3211 = vmatprep.subr.mxu0 0.0
        %3212 = vmatpush1.msra.mxu0 0.0
        %3213 = vmatprep.mubr.f32.mxu0 0.0
        %3214 = vmatmul.mubr.f32.gmra.mrb[0].mxu0 %v3144
        %v3215 = vpop.f32.mrb[0].mxu0
        %v3216 = vadd.f32 0.0, %v3215
        %v3217 = vpop.f32.mrb[0].mxu0
        %3218 = vmatprep.mubr.f32.mxu0 0.0
        %3219 = vmatmul.mubr.f32.gmra.mrb[0].mxu0 %v3147
        %v3220 = vpop.f32.mrb[0].mxu0
        %v3221 = vadd.f32 0.0, %v3220
        %v3222 = vpop.f32.mrb[0].mxu0
        %3223 = vdwg.mxu0
        %v3224 = vadd.f32 %v3135, %v3216
        %v3225 = vadd.f32 %v3140, %v3221
        %3226 = vmatprep.subr.mxu0 0.0
        %3227 = vmatpush1.msra.mxu0 %v2201
        %3228 = vmatprep.subr.mxu0 0.0
        %3229 = vmatpush1.msra.mxu0 %v2202
        %3230 = vmatprep.subr.mxu0 0.0
        %3231 = vmatpush1.msra.mxu0 %v2203
        %3232 = vmatprep.subr.mxu0 0.0
        %3233 = vmatpush1.msra.mxu0 %v2204
        %3234 = vmatprep.subr.mxu0 0.0
        %3235 = vmatpush1.msra.mxu0 %v2205
        %3236 = vmatprep.subr.mxu0 0.0
        %3237 = vmatpush1.msra.mxu0 %v2206
        %3238 = vmatprep.subr.mxu0 0.0
        %3239 = vmatpush1.msra.mxu0 %v2207
        %3240 = vmatprep.subr.mxu0 0.0
        %3241 = vmatpush1.msra.mxu0 %v2208
        %3242 = vmatprep.subr.mxu0 0.0
        %3243 = vmatpush1.msra.mxu0 0.0
        %3244 = vmatprep.subr.mxu0 0.0
        %3245 = vmatpush1.msra.mxu0 0.0
        %3246 = vmatprep.subr.mxu0 0.0
        %3247 = vmatpush1.msra.mxu0 0.0
        %3248 = vmatprep.subr.mxu0 0.0
        %3249 = vmatpush1.msra.mxu0 0.0
        %3250 = vmatprep.subr.mxu0 0.0
        %3251 = vmatpush1.msra.mxu0 0.0
        %3252 = vmatprep.subr.mxu0 0.0
        %3253 = vmatpush1.msra.mxu0 0.0
        %3254 = vmatprep.subr.mxu0 0.0
        %3255 = vmatpush1.msra.mxu0 0.0
        %3256 = vmatprep.subr.mxu0 0.0
        %3257 = vmatpush1.msra.mxu0 0.0
        %3258 = vmatprep.subr.mxu0 0.0
        %3259 = vmatpush1.msra.mxu0 0.0
        %3260 = vmatprep.subr.mxu0 0.0
        %3261 = vmatpush1.msra.mxu0 0.0
        %3262 = vmatprep.subr.mxu0 0.0
        %3263 = vmatpush1.msra.mxu0 0.0
        %3264 = vmatprep.subr.mxu0 0.0
        %3265 = vmatpush1.msra.mxu0 0.0
        %3266 = vmatprep.subr.mxu0 0.0
        %3267 = vmatpush1.msra.mxu0 0.0
        %3268 = vmatprep.subr.mxu0 0.0
        %3269 = vmatpush1.msra.mxu0 0.0
        %3270 = vmatprep.subr.mxu0 0.0
        %3271 = vmatpush1.msra.mxu0 0.0
        %3272 = vmatprep.subr.mxu0 0.0
        %3273 = vmatpush1.msra.mxu0 0.0
        %3274 = vmatprep.subr.mxu0 0.0
        %3275 = vmatpush1.msra.mxu0 0.0
        %3276 = vmatprep.subr.mxu0 0.0
        %3277 = vmatpush1.msra.mxu0 0.0
        %3278 = vmatprep.subr.mxu0 0.0
        %3279 = vmatpush1.msra.mxu0 0.0
        %3280 = vmatprep.subr.mxu0 0.0
        %3281 = vmatpush1.msra.mxu0 0.0
        %3282 = vmatprep.subr.mxu0 0.0
        %3283 = vmatpush1.msra.mxu0 0.0
        %3284 = vmatprep.subr.mxu0 0.0
        %3285 = vmatpush1.msra.mxu0 0.0
        %3286 = vmatprep.subr.mxu0 0.0
        %3287 = vmatpush1.msra.mxu0 0.0
        %3288 = vmatprep.subr.mxu0 0.0
        %3289 = vmatpush1.msra.mxu0 0.0
        %3290 = vmatprep.mubr.f32.mxu0 0.0
        %3291 = vmatmul.mubr.f32.gmra.mrb[0].mxu0 %v2579
        %v3292 = vpop.f32.mrb[0].mxu0
        %v3293 = vadd.f32 0.0, %v3292
        %v3294 = vpop.f32.mrb[0].mxu0
        %3295 = vmatprep.mubr.f32.mxu0 0.0
        %3296 = vmatmul.mubr.f32.gmra.mrb[0].mxu0 %v2582
        %v3297 = vpop.f32.mrb[0].mxu0
        %v3298 = vadd.f32 0.0, %v3297
        %v3299 = vpop.f32.mrb[0].mxu0
        %3300 = vdwg.mxu0
        %v3301 = vadd.f32 %v3224, %v3293
        %v3302 = vadd.f32 %v3225, %v3298
        %3303 = vmatprep.subr.mxu0 0.0
        %3304 = vmatpush1.msra.mxu0 %v2209
        %3305 = vmatprep.subr.mxu0 0.0
        %3306 = vmatpush1.msra.mxu0 %v2210
        %3307 = vmatprep.subr.mxu0 0.0
        %3308 = vmatpush1.msra.mxu0 %v2211
        %3309 = vmatprep.subr.mxu0 0.0
        %3310 = vmatpush1.msra.mxu0 %v2212
        %3311 = vmatprep.subr.mxu0 0.0
        %3312 = vmatpush1.msra.mxu0 %v2213
        %3313 = vmatprep.subr.mxu0 0.0
        %3314 = vmatpush1.msra.mxu0 %v2214
        %3315 = vmatprep.subr.mxu0 0.0
        %3316 = vmatpush1.msra.mxu0 %v2215
        %3317 = vmatprep.subr.mxu0 0.0
        %3318 = vmatpush1.msra.mxu0 %v2216
        %3319 = vmatprep.subr.mxu0 0.0
        %3320 = vmatpush1.msra.mxu0 0.0
        %3321 = vmatprep.subr.mxu0 0.0
        %3322 = vmatpush1.msra.mxu0 0.0
        %3323 = vmatprep.subr.mxu0 0.0
        %3324 = vmatpush1.msra.mxu0 0.0
        %3325 = vmatprep.subr.mxu0 0.0
        %3326 = vmatpush1.msra.mxu0 0.0
        %3327 = vmatprep.subr.mxu0 0.0
        %3328 = vmatpush1.msra.mxu0 0.0
        %3329 = vmatprep.subr.mxu0 0.0
        %3330 = vmatpush1.msra.mxu0 0.0
        %3331 = vmatprep.subr.mxu0 0.0
        %3332 = vmatpush1.msra.mxu0 0.0
        %3333 = vmatprep.subr.mxu0 0.0
        %3334 = vmatpush1.msra.mxu0 0.0
        %3335 = vmatprep.subr.mxu0 0.0
        %3336 = vmatpush1.msra.mxu0 0.0
        %3337 = vmatprep.subr.mxu0 0.0
        %3338 = vmatpush1.msra.mxu0 0.0
        %3339 = vmatprep.subr.mxu0 0.0
        %3340 = vmatpush1.msra.mxu0 0.0
        %3341 = vmatprep.subr.mxu0 0.0
        %3342 = vmatpush1.msra.mxu0 0.0
        %3343 = vmatprep.subr.mxu0 0.0
        %3344 = vmatpush1.msra.mxu0 0.0
        %3345 = vmatprep.subr.mxu0 0.0
        %3346 = vmatpush1.msra.mxu0 0.0
        %3347 = vmatprep.subr.mxu0 0.0
        %3348 = vmatpush1.msra.mxu0 0.0
        %3349 = vmatprep.subr.mxu0 0.0
        %3350 = vmatpush1.msra.mxu0 0.0
        %3351 = vmatprep.subr.mxu0 0.0
        %3352 = vmatpush1.msra.mxu0 0.0
        %3353 = vmatprep.subr.mxu0 0.0
        %3354 = vmatpush1.msra.mxu0 0.0
        %3355 = vmatprep.subr.mxu0 0.0
        %3356 = vmatpush1.msra.mxu0 0.0
        %3357 = vmatprep.subr.mxu0 0.0
        %3358 = vmatpush1.msra.mxu0 0.0
        %3359 = vmatprep.subr.mxu0 0.0
        %3360 = vmatpush1.msra.mxu0 0.0
        %3361 = vmatprep.subr.mxu0 0.0
        %3362 = vmatpush1.msra.mxu0 0.0
        %3363 = vmatprep.subr.mxu0 0.0
        %3364 = vmatpush1.msra.mxu0 0.0
        %3365 = vmatprep.subr.mxu0 0.0
        %3366 = vmatpush1.msra.mxu0 0.0
        %3367 = vmatprep.mubr.f32.mxu0 0.0
        %3368 = vmatmul.mubr.f32.gmra.mrb[0].mxu0 %v2662
        %v3369 = vpop.f32.mrb[0].mxu0
        %v3370 = vadd.f32 0.0, %v3369
        %v3371 = vpop.f32.mrb[0].mxu0
        %3372 = vmatprep.mubr.f32.mxu0 0.0
        %3373 = vmatmul.mubr.f32.gmra.mrb[0].mxu0 %v2665
        %v3374 = vpop.f32.mrb[0].mxu0
        %v3375 = vadd.f32 0.0, %v3374
        %v3376 = vpop.f32.mrb[0].mxu0
        %3377 = vdwg.mxu0
        %v3378 = vadd.f32 %v3301, %v3370
        %v3379 = vadd.f32 %v3302, %v3375
        %v3381 = vsel %vm2249, %v2159, 0
        %v3384 = vsel %vm2249, %v2160, 0
        %3386 = vmatprep.subr.mxu0 0.0
        %3387 = vmatpush1.msra.mxu0 %v2217
        %3388 = vmatprep.subr.mxu0 0.0
        %3389 = vmatpush1.msra.mxu0 %v2218
        %3390 = vmatprep.subr.mxu0 0.0
        %3391 = vmatpush1.msra.mxu0 %v2219
        %3392 = vmatprep.subr.mxu0 0.0
        %3393 = vmatpush1.msra.mxu0 %v2220
        %3394 = vmatprep.subr.mxu0 0.0
        %3395 = vmatpush1.msra.mxu0 %v2221
        %3396 = vmatprep.subr.mxu0 0.0
        %3397 = vmatpush1.msra.mxu0 %v2222
        %3398 = vmatprep.subr.mxu0 0.0
        %3399 = vmatpush1.msra.mxu0 %v2223
        %3400 = vmatprep.subr.mxu0 0.0
        %3401 = vmatpush1.msra.mxu0 %v2224
        %3402 = vmatprep.subr.mxu0 0.0
        %3403 = vmatpush1.msra.mxu0 0.0
        %3404 = vmatprep.subr.mxu0 0.0
        %3405 = vmatpush1.msra.mxu0 0.0
        %3406 = vmatprep.subr.mxu0 0.0
        %3407 = vmatpush1.msra.mxu0 0.0
        %3408 = vmatprep.subr.mxu0 0.0
        %3409 = vmatpush1.msra.mxu0 0.0
        %3410 = vmatprep.subr.mxu0 0.0
        %3411 = vmatpush1.msra.mxu0 0.0
        %3412 = vmatprep.subr.mxu0 0.0
        %3413 = vmatpush1.msra.mxu0 0.0
        %3414 = vmatprep.subr.mxu0 0.0
        %3415 = vmatpush1.msra.mxu0 0.0
        %3416 = vmatprep.subr.mxu0 0.0
        %3417 = vmatpush1.msra.mxu0 0.0
        %3418 = vmatprep.subr.mxu0 0.0
        %3419 = vmatpush1.msra.mxu0 0.0
        %3420 = vmatprep.subr.mxu0 0.0
        %3421 = vmatpush1.msra.mxu0 0.0
        %3422 = vmatprep.subr.mxu0 0.0
        %3423 = vmatpush1.msra.mxu0 0.0
        %3424 = vmatprep.subr.mxu0 0.0
        %3425 = vmatpush1.msra.mxu0 0.0
        %3426 = vmatprep.subr.mxu0 0.0
        %3427 = vmatpush1.msra.mxu0 0.0
        %3428 = vmatprep.subr.mxu0 0.0
        %3429 = vmatpush1.msra.mxu0 0.0
        %3430 = vmatprep.subr.mxu0 0.0
        %3431 = vmatpush1.msra.mxu0 0.0
        %3432 = vmatprep.subr.mxu0 0.0
        %3433 = vmatpush1.msra.mxu0 0.0
        %3434 = vmatprep.subr.mxu0 0.0
        %3435 = vmatpush1.msra.mxu0 0.0
        %3436 = vmatprep.subr.mxu0 0.0
        %3437 = vmatpush1.msra.mxu0 0.0
        %3438 = vmatprep.subr.mxu0 0.0
        %3439 = vmatpush1.msra.mxu0 0.0
        %3440 = vmatprep.subr.mxu0 0.0
        %3441 = vmatpush1.msra.mxu0 0.0
        %3442 = vmatprep.subr.mxu0 0.0
        %3443 = vmatpush1.msra.mxu0 0.0
        %3444 = vmatprep.subr.mxu0 0.0
        %3445 = vmatpush1.msra.mxu0 0.0
        %3446 = vmatprep.subr.mxu0 0.0
        %3447 = vmatpush1.msra.mxu0 0.0
        %3448 = vmatprep.subr.mxu0 0.0
        %3449 = vmatpush1.msra.mxu0 0.0
        %3450 = vmatprep.mubr.f32.mxu0 0.0
        %3451 = vmatmul.mubr.f32.gmra.mrb[0].mxu0 %v3381
        %v3452 = vpop.f32.mrb[0].mxu0
        %v3453 = vadd.f32 0.0, %v3452
        %v3454 = vpop.f32.mrb[0].mxu0
        %3455 = vmatprep.mubr.f32.mxu0 0.0
        %3456 = vmatmul.mubr.f32.gmra.mrb[0].mxu0 %v3384
        %v3457 = vpop.f32.mrb[0].mxu0
        %v3458 = vadd.f32 0.0, %v3457
        %v3459 = vpop.f32.mrb[0].mxu0
        %3460 = vdwg.mxu0
        %v3461 = vadd.f32 %v3378, %v3453
        %v3462 = vadd.f32 %v3379, %v3458
        %3463 = vmatprep.subr.mxu0 0.0
        %3464 = vmatpush1.msra.mxu0 %v2225
        %3465 = vmatprep.subr.mxu0 0.0
        %3466 = vmatpush1.msra.mxu0 %v2226
        %3467 = vmatprep.subr.mxu0 0.0
        %3468 = vmatpush1.msra.mxu0 %v2227
        %3469 = vmatprep.subr.mxu0 0.0
        %3470 = vmatpush1.msra.mxu0 %v2228
        %3471 = vmatprep.subr.mxu0 0.0
        %3472 = vmatpush1.msra.mxu0 %v2229
        %3473 = vmatprep.subr.mxu0 0.0
        %3474 = vmatpush1.msra.mxu0 %v2230
        %3475 = vmatprep.subr.mxu0 0.0
        %3476 = vmatpush1.msra.mxu0 %v2231
        %3477 = vmatprep.subr.mxu0 0.0
        %3478 = vmatpush1.msra.mxu0 %v2232
        %3479 = vmatprep.subr.mxu0 0.0
        %3480 = vmatpush1.msra.mxu0 0.0
        %3481 = vmatprep.subr.mxu0 0.0
        %3482 = vmatpush1.msra.mxu0 0.0
        %3483 = vmatprep.subr.mxu0 0.0
        %3484 = vmatpush1.msra.mxu0 0.0
        %3485 = vmatprep.subr.mxu0 0.0
        %3486 = vmatpush1.msra.mxu0 0.0
        %3487 = vmatprep.subr.mxu0 0.0
        %3488 = vmatpush1.msra.mxu0 0.0
        %3489 = vmatprep.subr.mxu0 0.0
        %3490 = vmatpush1.msra.mxu0 0.0
        %3491 = vmatprep.subr.mxu0 0.0
        %3492 = vmatpush1.msra.mxu0 0.0
        %3493 = vmatprep.subr.mxu0 0.0
        %3494 = vmatpush1.msra.mxu0 0.0
        %3495 = vmatprep.subr.mxu0 0.0
        %3496 = vmatpush1.msra.mxu0 0.0
        %3497 = vmatprep.subr.mxu0 0.0
        %3498 = vmatpush1.msra.mxu0 0.0
        %3499 = vmatprep.subr.mxu0 0.0
        %3500 = vmatpush1.msra.mxu0 0.0
        %3501 = vmatprep.subr.mxu0 0.0
        %3502 = vmatpush1.msra.mxu0 0.0
        %3503 = vmatprep.subr.mxu0 0.0
        %3504 = vmatpush1.msra.mxu0 0.0
        %3505 = vmatprep.subr.mxu0 0.0
        %3506 = vmatpush1.msra.mxu0 0.0
        %3507 = vmatprep.subr.mxu0 0.0
        %3508 = vmatpush1.msra.mxu0 0.0
        %3509 = vmatprep.subr.mxu0 0.0
        %3510 = vmatpush1.msra.mxu0 0.0
        %3511 = vmatprep.subr.mxu0 0.0
        %3512 = vmatpush1.msra.mxu0 0.0
        %3513 = vmatprep.subr.mxu0 0.0
        %3514 = vmatpush1.msra.mxu0 0.0
        %3515 = vmatprep.subr.mxu0 0.0
        %3516 = vmatpush1.msra.mxu0 0.0
        %3517 = vmatprep.subr.mxu0 0.0
        %3518 = vmatpush1.msra.mxu0 0.0
        %3519 = vmatprep.subr.mxu0 0.0
        %3520 = vmatpush1.msra.mxu0 0.0
        %3521 = vmatprep.subr.mxu0 0.0
        %3522 = vmatpush1.msra.mxu0 0.0
        %3523 = vmatprep.subr.mxu0 0.0
        %3524 = vmatpush1.msra.mxu0 0.0
        %3525 = vmatprep.subr.mxu0 0.0
        %3526 = vmatpush1.msra.mxu0 0.0
        %3527 = vmatprep.mubr.f32.mxu0 0.0
        %3528 = vmatmul.mubr.f32.gmra.mrb[0].mxu0 %v2828
        %v3529 = vpop.f32.mrb[0].mxu0
        %v3530 = vadd.f32 0.0, %v3529
        %v3531 = vpop.f32.mrb[0].mxu0
        %3532 = vmatprep.mubr.f32.mxu0 0.0
        %3533 = vmatmul.mubr.f32.gmra.mrb[0].mxu0 %v2831
        %v3534 = vpop.f32.mrb[0].mxu0
        %v3535 = vadd.f32 0.0, %v3534
        %v3536 = vpop.f32.mrb[0].mxu0
        %3537 = vdwg.mxu0
        %v3538 = vadd.f32 %v3461, %v3530
        %v3539 = vadd.f32 %v3462, %v3535
        %3540 = vmatprep.subr.mxu0 0.0
        %3541 = vmatpush1.msra.mxu0 %v2233
        %3542 = vmatprep.subr.mxu0 0.0
        %3543 = vmatpush1.msra.mxu0 %v2234
        %3544 = vmatprep.subr.mxu0 0.0
        %3545 = vmatpush1.msra.mxu0 %v2235
        %3546 = vmatprep.subr.mxu0 0.0
        %3547 = vmatpush1.msra.mxu0 %v2236
        %3548 = vmatprep.subr.mxu0 0.0
        %3549 = vmatpush1.msra.mxu0 %v2237
        %3550 = vmatprep.subr.mxu0 0.0
        %3551 = vmatpush1.msra.mxu0 %v2238
        %3552 = vmatprep.subr.mxu0 0.0
        %3553 = vmatpush1.msra.mxu0 %v2239
        %3554 = vmatprep.subr.mxu0 0.0
        %3555 = vmatpush1.msra.mxu0 %v2240
        %3556 = vmatprep.subr.mxu0 0.0
        %3557 = vmatpush1.msra.mxu0 0.0
        %3558 = vmatprep.subr.mxu0 0.0
        %3559 = vmatpush1.msra.mxu0 0.0
        %3560 = vmatprep.subr.mxu0 0.0
        %3561 = vmatpush1.msra.mxu0 0.0
        %3562 = vmatprep.subr.mxu0 0.0
        %3563 = vmatpush1.msra.mxu0 0.0
        %3564 = vmatprep.subr.mxu0 0.0
        %3565 = vmatpush1.msra.mxu0 0.0
        %3566 = vmatprep.subr.mxu0 0.0
        %3567 = vmatpush1.msra.mxu0 0.0
        %3568 = vmatprep.subr.mxu0 0.0
        %3569 = vmatpush1.msra.mxu0 0.0
        %3570 = vmatprep.subr.mxu0 0.0
        %3571 = vmatpush1.msra.mxu0 0.0
        %3572 = vmatprep.subr.mxu0 0.0
        %3573 = vmatpush1.msra.mxu0 0.0
        %3574 = vmatprep.subr.mxu0 0.0
        %3575 = vmatpush1.msra.mxu0 0.0
        %3576 = vmatprep.subr.mxu0 0.0
        %3577 = vmatpush1.msra.mxu0 0.0
        %3578 = vmatprep.subr.mxu0 0.0
        %3579 = vmatpush1.msra.mxu0 0.0
        %3580 = vmatprep.subr.mxu0 0.0
        %3581 = vmatpush1.msra.mxu0 0.0
        %3582 = vmatprep.subr.mxu0 0.0
        %3583 = vmatpush1.msra.mxu0 0.0
        %3584 = vmatprep.subr.mxu0 0.0
        %3585 = vmatpush1.msra.mxu0 0.0
        %3586 = vmatprep.subr.mxu0 0.0
        %3587 = vmatpush1.msra.mxu0 0.0
        %3588 = vmatprep.subr.mxu0 0.0
        %3589 = vmatpush1.msra.mxu0 0.0
        %3590 = vmatprep.subr.mxu0 0.0
        %3591 = vmatpush1.msra.mxu0 0.0
        %3592 = vmatprep.subr.mxu0 0.0
        %3593 = vmatpush1.msra.mxu0 0.0
        %3594 = vmatprep.subr.mxu0 0.0
        %3595 = vmatpush1.msra.mxu0 0.0
        %3596 = vmatprep.subr.mxu0 0.0
        %3597 = vmatpush1.msra.mxu0 0.0
        %3598 = vmatprep.subr.mxu0 0.0
        %3599 = vmatpush1.msra.mxu0 0.0
        %3600 = vmatprep.subr.mxu0 0.0
        %3601 = vmatpush1.msra.mxu0 0.0
        %3602 = vmatprep.subr.mxu0 0.0
        %3603 = vmatpush1.msra.mxu0 0.0
        %3604 = vmatprep.mubr.f32.mxu0 0.0
        %3605 = vmatmul.mubr.f32.gmra.mrb[0].mxu0 %v2911
        %v3606 = vpop.f32.mrb[0].mxu0
        %v3607 = vadd.f32 0.0, %v3606
        %v3608 = vpop.f32.mrb[0].mxu0
        %3609 = vmatprep.mubr.f32.mxu0 0.0
        %3610 = vmatmul.mubr.f32.gmra.mrb[0].mxu0 %v2914
        %v3611 = vpop.f32.mrb[0].mxu0
        %v3612 = vadd.f32 0.0, %v3611
        %v3613 = vpop.f32.mrb[0].mxu0
        %3614 = vdwg.mxu0
        %v3615 = vadd.f32 %v3538, %v3607
        %v3616 = vadd.f32 %v3539, %v3612
        %v3618 = vsel %vm2249, %v2167, 0
        %v3621 = vsel %vm2249, %v2168, 0
        %3623 = vmatprep.subr.mxu0 0.0
        %3624 = vmatpush1.msra.mxu0 %v2241
        %3625 = vmatprep.subr.mxu0 0.0
        %3626 = vmatpush1.msra.mxu0 %v2242
        %3627 = vmatprep.subr.mxu0 0.0
        %3628 = vmatpush1.msra.mxu0 %v2243
        %3629 = vmatprep.subr.mxu0 0.0
        %3630 = vmatpush1.msra.mxu0 %v2244
        %3631 = vmatprep.subr.mxu0 0.0
        %3632 = vmatpush1.msra.mxu0 %v2245
        %3633 = vmatprep.subr.mxu0 0.0
        %3634 = vmatpush1.msra.mxu0 %v2246
        %3635 = vmatprep.subr.mxu0 0.0
        %3636 = vmatpush1.msra.mxu0 %v2247
        %3637 = vmatprep.subr.mxu0 0.0
        %3638 = vmatpush1.msra.mxu0 %v2248
        %3639 = vmatprep.subr.mxu0 0.0
        %3640 = vmatpush1.msra.mxu0 0.0
        %3641 = vmatprep.subr.mxu0 0.0
        %3642 = vmatpush1.msra.mxu0 0.0
        %3643 = vmatprep.subr.mxu0 0.0
        %3644 = vmatpush1.msra.mxu0 0.0
        %3645 = vmatprep.subr.mxu0 0.0
        %3646 = vmatpush1.msra.mxu0 0.0
        %3647 = vmatprep.subr.mxu0 0.0
        %3648 = vmatpush1.msra.mxu0 0.0
        %3649 = vmatprep.subr.mxu0 0.0
        %3650 = vmatpush1.msra.mxu0 0.0
        %3651 = vmatprep.subr.mxu0 0.0
        %3652 = vmatpush1.msra.mxu0 0.0
        %3653 = vmatprep.subr.mxu0 0.0
        %3654 = vmatpush1.msra.mxu0 0.0
        %3655 = vmatprep.subr.mxu0 0.0
        %3656 = vmatpush1.msra.mxu0 0.0
        %3657 = vmatprep.subr.mxu0 0.0
        %3658 = vmatpush1.msra.mxu0 0.0
        %3659 = vmatprep.subr.mxu0 0.0
        %3660 = vmatpush1.msra.mxu0 0.0
        %3661 = vmatprep.subr.mxu0 0.0
        %3662 = vmatpush1.msra.mxu0 0.0
        %3663 = vmatprep.subr.mxu0 0.0
        %3664 = vmatpush1.msra.mxu0 0.0
        %3665 = vmatprep.subr.mxu0 0.0
        %3666 = vmatpush1.msra.mxu0 0.0
        %3667 = vmatprep.subr.mxu0 0.0
        %3668 = vmatpush1.msra.mxu0 0.0
        %3669 = vmatprep.subr.mxu0 0.0
        %3670 = vmatpush1.msra.mxu0 0.0
        %3671 = vmatprep.subr.mxu0 0.0
        %3672 = vmatpush1.msra.mxu0 0.0
        %3673 = vmatprep.subr.mxu0 0.0
        %3674 = vmatpush1.msra.mxu0 0.0
        %3675 = vmatprep.subr.mxu0 0.0
        %3676 = vmatpush1.msra.mxu0 0.0
        %3677 = vmatprep.subr.mxu0 0.0
        %3678 = vmatpush1.msra.mxu0 0.0
        %3679 = vmatprep.subr.mxu0 0.0
        %3680 = vmatpush1.msra.mxu0 0.0
        %3681 = vmatprep.subr.mxu0 0.0
        %3682 = vmatpush1.msra.mxu0 0.0
        %3683 = vmatprep.subr.mxu0 0.0
        %3684 = vmatpush1.msra.mxu0 0.0
        %3685 = vmatprep.subr.mxu0 0.0
        %3686 = vmatpush1.msra.mxu0 0.0
        %3687 = vmatprep.mubr.f32.mxu0 0.0
        %3688 = vmatmul.mubr.f32.gmra.mrb[0].mxu0 %v3618
        %v3689 = vpop.f32.mrb[0].mxu0
        %v3690 = vadd.f32 0.0, %v3689
        %v3691 = vpop.f32.mrb[0].mxu0
        %3692 = vmatprep.mubr.f32.mxu0 0.0
        %3693 = vmatmul.mubr.f32.gmra.mrb[0].mxu0 %v3621
        %v3694 = vpop.f32.mrb[0].mxu0
        %v3695 = vadd.f32 0.0, %v3694
        %v3696 = vpop.f32.mrb[0].mxu0
        %3697 = vdwg.mxu0
        %v3698 = vadd.f32 %v3615, %v3690
        %v3699 = vadd.f32 %v3616, %v3695
        %v3700 = vmax.f32 %v2991, %v3698
        %v3701 = vmax.f32 %v2992, %v3699
        %3702 = vmatprep.subr.mxu0 0.0
        %3703 = vmatpush1.msra.mxu0 %v2185
        %3704 = vmatprep.subr.mxu0 0.0
        %3705 = vmatpush1.msra.mxu0 %v2186
        %3706 = vmatprep.subr.mxu0 0.0
        %3707 = vmatpush1.msra.mxu0 %v2187
        %3708 = vmatprep.subr.mxu0 0.0
        %3709 = vmatpush1.msra.mxu0 %v2188
        %3710 = vmatprep.subr.mxu0 0.0
        %3711 = vmatpush1.msra.mxu0 %v2189
        %3712 = vmatprep.subr.mxu0 0.0
        %3713 = vmatpush1.msra.mxu0 %v2190
        %3714 = vmatprep.subr.mxu0 0.0
        %3715 = vmatpush1.msra.mxu0 %v2191
        %3716 = vmatprep.subr.mxu0 0.0
        %3717 = vmatpush1.msra.mxu0 %v2192
        %3718 = vmatprep.subr.mxu0 0.0
        %3719 = vmatpush1.msra.mxu0 0.0
        %3720 = vmatprep.subr.mxu0 0.0
        %3721 = vmatpush1.msra.mxu0 0.0
        %3722 = vmatprep.subr.mxu0 0.0
        %3723 = vmatpush1.msra.mxu0 0.0
        %3724 = vmatprep.subr.mxu0 0.0
        %3725 = vmatpush1.msra.mxu0 0.0
        %3726 = vmatprep.subr.mxu0 0.0
        %3727 = vmatpush1.msra.mxu0 0.0
        %3728 = vmatprep.subr.mxu0 0.0
        %3729 = vmatpush1.msra.mxu0 0.0
        %3730 = vmatprep.subr.mxu0 0.0
        %3731 = vmatpush1.msra.mxu0 0.0
        %3732 = vmatprep.subr.mxu0 0.0
        %3733 = vmatpush1.msra.mxu0 0.0
        %3734 = vmatprep.subr.mxu0 0.0
        %3735 = vmatpush1.msra.mxu0 0.0
        %3736 = vmatprep.subr.mxu0 0.0
        %3737 = vmatpush1.msra.mxu0 0.0
        %3738 = vmatprep.subr.mxu0 0.0
        %3739 = vmatpush1.msra.mxu0 0.0
        %3740 = vmatprep.subr.mxu0 0.0
        %3741 = vmatpush1.msra.mxu0 0.0
        %3742 = vmatprep.subr.mxu0 0.0
        %3743 = vmatpush1.msra.mxu0 0.0
        %3744 = vmatprep.subr.mxu0 0.0
        %3745 = vmatpush1.msra.mxu0 0.0
        %3746 = vmatprep.subr.mxu0 0.0
        %3747 = vmatpush1.msra.mxu0 0.0
        %3748 = vmatprep.subr.mxu0 0.0
        %3749 = vmatpush1.msra.mxu0 0.0
        %3750 = vmatprep.subr.mxu0 0.0
        %3751 = vmatpush1.msra.mxu0 0.0
        %3752 = vmatprep.subr.mxu0 0.0
        %3753 = vmatpush1.msra.mxu0 0.0
        %3754 = vmatprep.subr.mxu0 0.0
        %3755 = vmatpush1.msra.mxu0 0.0
        %3756 = vmatprep.subr.mxu0 0.0
        %3757 = vmatpush1.msra.mxu0 0.0
        %3758 = vmatprep.subr.mxu0 0.0
        %3759 = vmatpush1.msra.mxu0 0.0
        %3760 = vmatprep.subr.mxu0 0.0
        %3761 = vmatpush1.msra.mxu0 0.0
        %3762 = vmatprep.subr.mxu0 0.0
        %3763 = vmatpush1.msra.mxu0 0.0
        %3764 = vmatprep.subr.mxu0 0.0
        %3765 = vmatpush1.msra.mxu0 0.0
        %3766 = vmatprep.mubr.f32.mxu0 0.0
        %3767 = vmatmul.mubr.f32.gmra.mrb[0].mxu0 %v2579
        %v3768 = vpop.f32.mrb[0].mxu0
        %v3769 = vadd.f32 0.0, %v3768
        %v3770 = vpop.f32.mrb[0].mxu0
        %3771 = vmatprep.mubr.f32.mxu0 0.0
        %3772 = vmatmul.mubr.f32.gmra.mrb[0].mxu0 %v2582
        %v3773 = vpop.f32.mrb[0].mxu0
        %v3774 = vadd.f32 0.0, %v3773
        %v3775 = vpop.f32.mrb[0].mxu0
        %3776 = vdwg.mxu0
        %3777 = vmatprep.subr.mxu0 0.0
        %3778 = vmatpush1.msra.mxu0 %v2177
        %3779 = vmatprep.subr.mxu0 0.0
        %3780 = vmatpush1.msra.mxu0 %v2178
        %3781 = vmatprep.subr.mxu0 0.0
        %3782 = vmatpush1.msra.mxu0 %v2179
        %3783 = vmatprep.subr.mxu0 0.0
        %3784 = vmatpush1.msra.mxu0 %v2180
        %3785 = vmatprep.subr.mxu0 0.0
        %3786 = vmatpush1.msra.mxu0 %v2181
        %3787 = vmatprep.subr.mxu0 0.0
        %3788 = vmatpush1.msra.mxu0 %v2182
        %3789 = vmatprep.subr.mxu0 0.0
        %3790 = vmatpush1.msra.mxu0 %v2183
        %3791 = vmatprep.subr.mxu0 0.0
        %3792 = vmatpush1.msra.mxu0 %v2184
        %3793 = vmatprep.subr.mxu0 0.0
        %3794 = vmatpush1.msra.mxu0 0.0
        %3795 = vmatprep.subr.mxu0 0.0
        %3796 = vmatpush1.msra.mxu0 0.0
        %3797 = vmatprep.subr.mxu0 0.0
        %3798 = vmatpush1.msra.mxu0 0.0
        %3799 = vmatprep.subr.mxu0 0.0
        %3800 = vmatpush1.msra.mxu0 0.0
        %3801 = vmatprep.subr.mxu0 0.0
        %3802 = vmatpush1.msra.mxu0 0.0
        %3803 = vmatprep.subr.mxu0 0.0
        %3804 = vmatpush1.msra.mxu0 0.0
        %3805 = vmatprep.subr.mxu0 0.0
        %3806 = vmatpush1.msra.mxu0 0.0
        %3807 = vmatprep.subr.mxu0 0.0
        %3808 = vmatpush1.msra.mxu0 0.0
        %3809 = vmatprep.subr.mxu0 0.0
        %3810 = vmatpush1.msra.mxu0 0.0
        %3811 = vmatprep.subr.mxu0 0.0
        %3812 = vmatpush1.msra.mxu0 0.0
        %3813 = vmatprep.subr.mxu0 0.0
        %3814 = vmatpush1.msra.mxu0 0.0
        %3815 = vmatprep.subr.mxu0 0.0
        %3816 = vmatpush1.msra.mxu0 0.0
        %3817 = vmatprep.subr.mxu0 0.0
        %3818 = vmatpush1.msra.mxu0 0.0
        %3819 = vmatprep.subr.mxu0 0.0
        %3820 = vmatpush1.msra.mxu0 0.0
        %3821 = vmatprep.subr.mxu0 0.0
        %3822 = vmatpush1.msra.mxu0 0.0
        %3823 = vmatprep.subr.mxu0 0.0
        %3824 = vmatpush1.msra.mxu0 0.0
        %3825 = vmatprep.subr.mxu0 0.0
        %3826 = vmatpush1.msra.mxu0 0.0
        %3827 = vmatprep.subr.mxu0 0.0
        %3828 = vmatpush1.msra.mxu0 0.0
        %3829 = vmatprep.subr.mxu0 0.0
        %3830 = vmatpush1.msra.mxu0 0.0
        %3831 = vmatprep.subr.mxu0 0.0
        %3832 = vmatpush1.msra.mxu0 0.0
        %3833 = vmatprep.subr.mxu0 0.0
        %3834 = vmatpush1.msra.mxu0 0.0
        %3835 = vmatprep.subr.mxu0 0.0
        %3836 = vmatpush1.msra.mxu0 0.0
        %3837 = vmatprep.subr.mxu0 0.0
        %3838 = vmatpush1.msra.mxu0 0.0
        %3839 = vmatprep.subr.mxu0 0.0
        %3840 = vmatpush1.msra.mxu0 0.0
        %3841 = vmatprep.mubr.f32.mxu0 0.0
        %3842 = vmatmul.mubr.f32.gmra.mrb[0].mxu0 %v2496
        %v3843 = vpop.f32.mrb[0].mxu0
        %v3844 = vadd.f32 %v3769, %v3843
        %v3845 = vpop.f32.mrb[0].mxu0
        %3846 = vmatprep.mubr.f32.mxu0 0.0
        %3847 = vmatmul.mubr.f32.gmra.mrb[0].mxu0 %v2499
        %v3848 = vpop.f32.mrb[0].mxu0
        %v3849 = vadd.f32 %v3774, %v3848
        %v3850 = vpop.f32.mrb[0].mxu0
        %3851 = vdwg.mxu0
        %3852 = vmatprep.subr.mxu0 0.0
        %3853 = vmatpush1.msra.mxu0 %v2193
        %3854 = vmatprep.subr.mxu0 0.0
        %3855 = vmatpush1.msra.mxu0 %v2194
        %3856 = vmatprep.subr.mxu0 0.0
        %3857 = vmatpush1.msra.mxu0 %v2195
        %3858 = vmatprep.subr.mxu0 0.0
        %3859 = vmatpush1.msra.mxu0 %v2196
        %3860 = vmatprep.subr.mxu0 0.0
        %3861 = vmatpush1.msra.mxu0 %v2197
        %3862 = vmatprep.subr.mxu0 0.0
        %3863 = vmatpush1.msra.mxu0 %v2198
        %3864 = vmatprep.subr.mxu0 0.0
        %3865 = vmatpush1.msra.mxu0 %v2199
        %3866 = vmatprep.subr.mxu0 0.0
        %3867 = vmatpush1.msra.mxu0 %v2200
        %3868 = vmatprep.subr.mxu0 0.0
        %3869 = vmatpush1.msra.mxu0 0.0
        %3870 = vmatprep.subr.mxu0 0.0
        %3871 = vmatpush1.msra.mxu0 0.0
        %3872 = vmatprep.subr.mxu0 0.0
        %3873 = vmatpush1.msra.mxu0 0.0
        %3874 = vmatprep.subr.mxu0 0.0
        %3875 = vmatpush1.msra.mxu0 0.0
        %3876 = vmatprep.subr.mxu0 0.0
        %3877 = vmatpush1.msra.mxu0 0.0
        %3878 = vmatprep.subr.mxu0 0.0
        %3879 = vmatpush1.msra.mxu0 0.0
        %3880 = vmatprep.subr.mxu0 0.0
        %3881 = vmatpush1.msra.mxu0 0.0
        %3882 = vmatprep.subr.mxu0 0.0
        %3883 = vmatpush1.msra.mxu0 0.0
        %3884 = vmatprep.subr.mxu0 0.0
        %3885 = vmatpush1.msra.mxu0 0.0
        %3886 = vmatprep.subr.mxu0 0.0
        %3887 = vmatpush1.msra.mxu0 0.0
        %3888 = vmatprep.subr.mxu0 0.0
        %3889 = vmatpush1.msra.mxu0 0.0
        %3890 = vmatprep.subr.mxu0 0.0
        %3891 = vmatpush1.msra.mxu0 0.0
        %3892 = vmatprep.subr.mxu0 0.0
        %3893 = vmatpush1.msra.mxu0 0.0
        %3894 = vmatprep.subr.mxu0 0.0
        %3895 = vmatpush1.msra.mxu0 0.0
        %3896 = vmatprep.subr.mxu0 0.0
        %3897 = vmatpush1.msra.mxu0 0.0
        %3898 = vmatprep.subr.mxu0 0.0
        %3899 = vmatpush1.msra.mxu0 0.0
        %3900 = vmatprep.subr.mxu0 0.0
        %3901 = vmatpush1.msra.mxu0 0.0
        %3902 = vmatprep.subr.mxu0 0.0
        %3903 = vmatpush1.msra.mxu0 0.0
        %3904 = vmatprep.subr.mxu0 0.0
        %3905 = vmatpush1.msra.mxu0 0.0
        %3906 = vmatprep.subr.mxu0 0.0
        %3907 = vmatpush1.msra.mxu0 0.0
        %3908 = vmatprep.subr.mxu0 0.0
        %3909 = vmatpush1.msra.mxu0 0.0
        %3910 = vmatprep.subr.mxu0 0.0
        %3911 = vmatpush1.msra.mxu0 0.0
        %3912 = vmatprep.subr.mxu0 0.0
        %3913 = vmatpush1.msra.mxu0 0.0
        %3914 = vmatprep.subr.mxu0 0.0
        %3915 = vmatpush1.msra.mxu0 0.0
        %3916 = vmatprep.mubr.f32.mxu0 0.0
        %3917 = vmatmul.mubr.f32.gmra.mrb[0].mxu0 %v2662
        %v3918 = vpop.f32.mrb[0].mxu0
        %v3919 = vadd.f32 0.0, %v3918
        %v3920 = vpop.f32.mrb[0].mxu0
        %3921 = vmatprep.mubr.f32.mxu0 0.0
        %3922 = vmatmul.mubr.f32.gmra.mrb[0].mxu0 %v2665
        %v3923 = vpop.f32.mrb[0].mxu0
        %v3924 = vadd.f32 0.0, %v3923
        %v3925 = vpop.f32.mrb[0].mxu0
        %3926 = vdwg.mxu0
        %v3927 = vadd.f32 %v3844, %v3919
        %v3928 = vadd.f32 %v3849, %v3924
        %3929 = vmatprep.subr.mxu0 0.0
        %3930 = vmatpush1.msra.mxu0 %v2201
        %3931 = vmatprep.subr.mxu0 0.0
        %3932 = vmatpush1.msra.mxu0 %v2202
        %3933 = vmatprep.subr.mxu0 0.0
        %3934 = vmatpush1.msra.mxu0 %v2203
        %3935 = vmatprep.subr.mxu0 0.0
        %3936 = vmatpush1.msra.mxu0 %v2204
        %3937 = vmatprep.subr.mxu0 0.0
        %3938 = vmatpush1.msra.mxu0 %v2205
        %3939 = vmatprep.subr.mxu0 0.0
        %3940 = vmatpush1.msra.mxu0 %v2206
        %3941 = vmatprep.subr.mxu0 0.0
        %3942 = vmatpush1.msra.mxu0 %v2207
        %3943 = vmatprep.subr.mxu0 0.0
        %3944 = vmatpush1.msra.mxu0 %v2208
        %3945 = vmatprep.subr.mxu0 0.0
        %3946 = vmatpush1.msra.mxu0 0.0
        %3947 = vmatprep.subr.mxu0 0.0
        %3948 = vmatpush1.msra.mxu0 0.0
        %3949 = vmatprep.subr.mxu0 0.0
        %3950 = vmatpush1.msra.mxu0 0.0
        %3951 = vmatprep.subr.mxu0 0.0
        %3952 = vmatpush1.msra.mxu0 0.0
        %3953 = vmatprep.subr.mxu0 0.0
        %3954 = vmatpush1.msra.mxu0 0.0
        %3955 = vmatprep.subr.mxu0 0.0
        %3956 = vmatpush1.msra.mxu0 0.0
        %3957 = vmatprep.subr.mxu0 0.0
        %3958 = vmatpush1.msra.mxu0 0.0
        %3959 = vmatprep.subr.mxu0 0.0
        %3960 = vmatpush1.msra.mxu0 0.0
        %3961 = vmatprep.subr.mxu0 0.0
        %3962 = vmatpush1.msra.mxu0 0.0
        %3963 = vmatprep.subr.mxu0 0.0
        %3964 = vmatpush1.msra.mxu0 0.0
        %3965 = vmatprep.subr.mxu0 0.0
        %3966 = vmatpush1.msra.mxu0 0.0
        %3967 = vmatprep.subr.mxu0 0.0
        %3968 = vmatpush1.msra.mxu0 0.0
        %3969 = vmatprep.subr.mxu0 0.0
        %3970 = vmatpush1.msra.mxu0 0.0
        %3971 = vmatprep.subr.mxu0 0.0
        %3972 = vmatpush1.msra.mxu0 0.0
        %3973 = vmatprep.subr.mxu0 0.0
        %3974 = vmatpush1.msra.mxu0 0.0
        %3975 = vmatprep.subr.mxu0 0.0
        %3976 = vmatpush1.msra.mxu0 0.0
        %3977 = vmatprep.subr.mxu0 0.0
        %3978 = vmatpush1.msra.mxu0 0.0
        %3979 = vmatprep.subr.mxu0 0.0
        %3980 = vmatpush1.msra.mxu0 0.0
        %3981 = vmatprep.subr.mxu0 0.0
        %3982 = vmatpush1.msra.mxu0 0.0
        %3983 = vmatprep.subr.mxu0 0.0
        %3984 = vmatpush1.msra.mxu0 0.0
        %3985 = vmatprep.subr.mxu0 0.0
        %3986 = vmatpush1.msra.mxu0 0.0
        %3987 = vmatprep.subr.mxu0 0.0
        %3988 = vmatpush1.msra.mxu0 0.0
        %3989 = vmatprep.subr.mxu0 0.0
        %3990 = vmatpush1.msra.mxu0 0.0
        %3991 = vmatprep.subr.mxu0 0.0
        %3992 = vmatpush1.msra.mxu0 0.0
        %3993 = vmatprep.mubr.f32.mxu0 0.0
        %3994 = vmatmul.mubr.f32.gmra.mrb[0].mxu0 %v2745
        %v3995 = vpop.f32.mrb[0].mxu0
        %v3996 = vadd.f32 0.0, %v3995
        %v3997 = vpop.f32.mrb[0].mxu0
        %3998 = vmatprep.mubr.f32.mxu0 0.0
        %3999 = vmatmul.mubr.f32.gmra.mrb[0].mxu0 %v2748
        %v4000 = vpop.f32.mrb[0].mxu0
        %v4001 = vadd.f32 0.0, %v4000
        %v4002 = vpop.f32.mrb[0].mxu0
        %4003 = vdwg.mxu0
        %v4004 = vadd.f32 %v3927, %v3996
        %v4005 = vadd.f32 %v3928, %v4001
        %4006 = vmatprep.subr.mxu0 0.0
        %4007 = vmatpush1.msra.mxu0 %v2209
        %4008 = vmatprep.subr.mxu0 0.0
        %4009 = vmatpush1.msra.mxu0 %v2210
        %4010 = vmatprep.subr.mxu0 0.0
        %4011 = vmatpush1.msra.mxu0 %v2211
        %4012 = vmatprep.subr.mxu0 0.0
        %4013 = vmatpush1.msra.mxu0 %v2212
        %4014 = vmatprep.subr.mxu0 0.0
        %4015 = vmatpush1.msra.mxu0 %v2213
        %4016 = vmatprep.subr.mxu0 0.0
        %4017 = vmatpush1.msra.mxu0 %v2214
        %4018 = vmatprep.subr.mxu0 0.0
        %4019 = vmatpush1.msra.mxu0 %v2215
        %4020 = vmatprep.subr.mxu0 0.0
        %4021 = vmatpush1.msra.mxu0 %v2216
        %4022 = vmatprep.subr.mxu0 0.0
        %4023 = vmatpush1.msra.mxu0 0.0
        %4024 = vmatprep.subr.mxu0 0.0
        %4025 = vmatpush1.msra.mxu0 0.0
        %4026 = vmatprep.subr.mxu0 0.0
        %4027 = vmatpush1.msra.mxu0 0.0
        %4028 = vmatprep.subr.mxu0 0.0
        %4029 = vmatpush1.msra.mxu0 0.0
        %4030 = vmatprep.subr.mxu0 0.0
        %4031 = vmatpush1.msra.mxu0 0.0
        %4032 = vmatprep.subr.mxu0 0.0
        %4033 = vmatpush1.msra.mxu0 0.0
        %4034 = vmatprep.subr.mxu0 0.0
        %4035 = vmatpush1.msra.mxu0 0.0
        %4036 = vmatprep.subr.mxu0 0.0
        %4037 = vmatpush1.msra.mxu0 0.0
        %4038 = vmatprep.subr.mxu0 0.0
        %4039 = vmatpush1.msra.mxu0 0.0
        %4040 = vmatprep.subr.mxu0 0.0
        %4041 = vmatpush1.msra.mxu0 0.0
        %4042 = vmatprep.subr.mxu0 0.0
        %4043 = vmatpush1.msra.mxu0 0.0
        %4044 = vmatprep.subr.mxu0 0.0
        %4045 = vmatpush1.msra.mxu0 0.0
        %4046 = vmatprep.subr.mxu0 0.0
        %4047 = vmatpush1.msra.mxu0 0.0
        %4048 = vmatprep.subr.mxu0 0.0
        %4049 = vmatpush1.msra.mxu0 0.0
        %4050 = vmatprep.subr.mxu0 0.0
        %4051 = vmatpush1.msra.mxu0 0.0
        %4052 = vmatprep.subr.mxu0 0.0
        %4053 = vmatpush1.msra.mxu0 0.0
        %4054 = vmatprep.subr.mxu0 0.0
        %4055 = vmatpush1.msra.mxu0 0.0
        %4056 = vmatprep.subr.mxu0 0.0
        %4057 = vmatpush1.msra.mxu0 0.0
        %4058 = vmatprep.subr.mxu0 0.0
        %4059 = vmatpush1.msra.mxu0 0.0
        %4060 = vmatprep.subr.mxu0 0.0
        %4061 = vmatpush1.msra.mxu0 0.0
        %4062 = vmatprep.subr.mxu0 0.0
        %4063 = vmatpush1.msra.mxu0 0.0
        %4064 = vmatprep.subr.mxu0 0.0
        %4065 = vmatpush1.msra.mxu0 0.0
        %4066 = vmatprep.subr.mxu0 0.0
        %4067 = vmatpush1.msra.mxu0 0.0
        %4068 = vmatprep.subr.mxu0 0.0
        %4069 = vmatpush1.msra.mxu0 0.0
        %4070 = vmatprep.mubr.f32.mxu0 0.0
        %4071 = vmatmul.mubr.f32.gmra.mrb[0].mxu0 %v2828
        %v4072 = vpop.f32.mrb[0].mxu0
        %v4073 = vadd.f32 0.0, %v4072
        %v4074 = vpop.f32.mrb[0].mxu0
        %4075 = vmatprep.mubr.f32.mxu0 0.0
        %4076 = vmatmul.mubr.f32.gmra.mrb[0].mxu0 %v2831
        %v4077 = vpop.f32.mrb[0].mxu0
        %v4078 = vadd.f32 0.0, %v4077
        %v4079 = vpop.f32.mrb[0].mxu0
        %4080 = vdwg.mxu0
        %v4081 = vadd.f32 %v4004, %v4073
        %v4082 = vadd.f32 %v4005, %v4078
        %4083 = vmatprep.subr.mxu0 0.0
        %4084 = vmatpush1.msra.mxu0 %v2217
        %4085 = vmatprep.subr.mxu0 0.0
        %4086 = vmatpush1.msra.mxu0 %v2218
        %4087 = vmatprep.subr.mxu0 0.0
        %4088 = vmatpush1.msra.mxu0 %v2219
        %4089 = vmatprep.subr.mxu0 0.0
        %4090 = vmatpush1.msra.mxu0 %v2220
        %4091 = vmatprep.subr.mxu0 0.0
        %4092 = vmatpush1.msra.mxu0 %v2221
        %4093 = vmatprep.subr.mxu0 0.0
        %4094 = vmatpush1.msra.mxu0 %v2222
        %4095 = vmatprep.subr.mxu0 0.0
        %4096 = vmatpush1.msra.mxu0 %v2223
        %4097 = vmatprep.subr.mxu0 0.0
        %4098 = vmatpush1.msra.mxu0 %v2224
        %4099 = vmatprep.subr.mxu0 0.0
        %4100 = vmatpush1.msra.mxu0 0.0
        %4101 = vmatprep.subr.mxu0 0.0
        %4102 = vmatpush1.msra.mxu0 0.0
        %4103 = vmatprep.subr.mxu0 0.0
        %4104 = vmatpush1.msra.mxu0 0.0
        %4105 = vmatprep.subr.mxu0 0.0
        %4106 = vmatpush1.msra.mxu0 0.0
        %4107 = vmatprep.subr.mxu0 0.0
        %4108 = vmatpush1.msra.mxu0 0.0
        %4109 = vmatprep.subr.mxu0 0.0
        %4110 = vmatpush1.msra.mxu0 0.0
        %4111 = vmatprep.subr.mxu0 0.0
        %4112 = vmatpush1.msra.mxu0 0.0
        %4113 = vmatprep.subr.mxu0 0.0
        %4114 = vmatpush1.msra.mxu0 0.0
        %4115 = vmatprep.subr.mxu0 0.0
        %4116 = vmatpush1.msra.mxu0 0.0
        %4117 = vmatprep.subr.mxu0 0.0
        %4118 = vmatpush1.msra.mxu0 0.0
        %4119 = vmatprep.subr.mxu0 0.0
        %4120 = vmatpush1.msra.mxu0 0.0
        %4121 = vmatprep.subr.mxu0 0.0
        %4122 = vmatpush1.msra.mxu0 0.0
        %4123 = vmatprep.subr.mxu0 0.0
        %4124 = vmatpush1.msra.mxu0 0.0
        %4125 = vmatprep.subr.mxu0 0.0
        %4126 = vmatpush1.msra.mxu0 0.0
        %4127 = vmatprep.subr.mxu0 0.0
        %4128 = vmatpush1.msra.mxu0 0.0
        %4129 = vmatprep.subr.mxu0 0.0
        %4130 = vmatpush1.msra.mxu0 0.0
        %4131 = vmatprep.subr.mxu0 0.0
        %4132 = vmatpush1.msra.mxu0 0.0
        %4133 = vmatprep.subr.mxu0 0.0
        %4134 = vmatpush1.msra.mxu0 0.0
        %4135 = vmatprep.subr.mxu0 0.0
        %4136 = vmatpush1.msra.mxu0 0.0
        %4137 = vmatprep.subr.mxu0 0.0
        %4138 = vmatpush1.msra.mxu0 0.0
        %4139 = vmatprep.subr.mxu0 0.0
        %4140 = vmatpush1.msra.mxu0 0.0
        %4141 = vmatprep.subr.mxu0 0.0
        %4142 = vmatpush1.msra.mxu0 0.0
        %4143 = vmatprep.subr.mxu0 0.0
        %4144 = vmatpush1.msra.mxu0 0.0
        %4145 = vmatprep.subr.mxu0 0.0
        %4146 = vmatpush1.msra.mxu0 0.0
        %4147 = vmatprep.mubr.f32.mxu0 0.0
        %4148 = vmatmul.mubr.f32.gmra.mrb[0].mxu0 %v2911
        %v4149 = vpop.f32.mrb[0].mxu0
        %v4150 = vadd.f32 0.0, %v4149
        %v4151 = vpop.f32.mrb[0].mxu0
        %4152 = vmatprep.mubr.f32.mxu0 0.0
        %4153 = vmatmul.mubr.f32.gmra.mrb[0].mxu0 %v2914
        %v4154 = vpop.f32.mrb[0].mxu0
        %v4155 = vadd.f32 0.0, %v4154
        %v4156 = vpop.f32.mrb[0].mxu0
        %4157 = vdwg.mxu0
        %v4158 = vadd.f32 %v4081, %v4150
        %v4159 = vadd.f32 %v4082, %v4155
        %v4161 = vsel %vm2249, %v2169, 0
        %v4164 = vsel %vm2249, %v2170, 0
        %4166 = vmatprep.subr.mxu0 0.0
        %4167 = vmatpush1.msra.mxu0 %v2225
        %4168 = vmatprep.subr.mxu0 0.0
        %4169 = vmatpush1.msra.mxu0 %v2226
        %4170 = vmatprep.subr.mxu0 0.0
        %4171 = vmatpush1.msra.mxu0 %v2227
        %4172 = vmatprep.subr.mxu0 0.0
        %4173 = vmatpush1.msra.mxu0 %v2228
        %4174 = vmatprep.subr.mxu0 0.0
        %4175 = vmatpush1.msra.mxu0 %v2229
        %4176 = vmatprep.subr.mxu0 0.0
        %4177 = vmatpush1.msra.mxu0 %v2230
        %4178 = vmatprep.subr.mxu0 0.0
        %4179 = vmatpush1.msra.mxu0 %v2231
        %4180 = vmatprep.subr.mxu0 0.0
        %4181 = vmatpush1.msra.mxu0 %v2232
        %4182 = vmatprep.subr.mxu0 0.0
        %4183 = vmatpush1.msra.mxu0 0.0
        %4184 = vmatprep.subr.mxu0 0.0
        %4185 = vmatpush1.msra.mxu0 0.0
        %4186 = vmatprep.subr.mxu0 0.0
        %4187 = vmatpush1.msra.mxu0 0.0
        %4188 = vmatprep.subr.mxu0 0.0
        %4189 = vmatpush1.msra.mxu0 0.0
        %4190 = vmatprep.subr.mxu0 0.0
        %4191 = vmatpush1.msra.mxu0 0.0
        %4192 = vmatprep.subr.mxu0 0.0
        %4193 = vmatpush1.msra.mxu0 0.0
        %4194 = vmatprep.subr.mxu0 0.0
        %4195 = vmatpush1.msra.mxu0 0.0
        %4196 = vmatprep.subr.mxu0 0.0
        %4197 = vmatpush1.msra.mxu0 0.0
        %4198 = vmatprep.subr.mxu0 0.0
        %4199 = vmatpush1.msra.mxu0 0.0
        %4200 = vmatprep.subr.mxu0 0.0
        %4201 = vmatpush1.msra.mxu0 0.0
        %4202 = vmatprep.subr.mxu0 0.0
        %4203 = vmatpush1.msra.mxu0 0.0
        %4204 = vmatprep.subr.mxu0 0.0
        %4205 = vmatpush1.msra.mxu0 0.0
        %4206 = vmatprep.subr.mxu0 0.0
        %4207 = vmatpush1.msra.mxu0 0.0
        %4208 = vmatprep.subr.mxu0 0.0
        %4209 = vmatpush1.msra.mxu0 0.0
        %4210 = vmatprep.subr.mxu0 0.0
        %4211 = vmatpush1.msra.mxu0 0.0
        %4212 = vmatprep.subr.mxu0 0.0
        %4213 = vmatpush1.msra.mxu0 0.0
        %4214 = vmatprep.subr.mxu0 0.0
        %4215 = vmatpush1.msra.mxu0 0.0
        %4216 = vmatprep.subr.mxu0 0.0
        %4217 = vmatpush1.msra.mxu0 0.0
        %4218 = vmatprep.subr.mxu0 0.0
        %4219 = vmatpush1.msra.mxu0 0.0
        %4220 = vmatprep.subr.mxu0 0.0
        %4221 = vmatpush1.msra.mxu0 0.0
        %4222 = vmatprep.subr.mxu0 0.0
        %4223 = vmatpush1.msra.mxu0 0.0
        %4224 = vmatprep.subr.mxu0 0.0
        %4225 = vmatpush1.msra.mxu0 0.0
        %4226 = vmatprep.subr.mxu0 0.0
        %4227 = vmatpush1.msra.mxu0 0.0
        %4228 = vmatprep.subr.mxu0 0.0
        %4229 = vmatpush1.msra.mxu0 0.0
        %4230 = vmatprep.mubr.f32.mxu0 0.0
        %4231 = vmatmul.mubr.f32.gmra.mrb[0].mxu0 %v4161
        %v4232 = vpop.f32.mrb[0].mxu0
        %v4233 = vadd.f32 0.0, %v4232
        %v4234 = vpop.f32.mrb[0].mxu0
        %4235 = vmatprep.mubr.f32.mxu0 0.0
        %4236 = vmatmul.mubr.f32.gmra.mrb[0].mxu0 %v4164
        %v4237 = vpop.f32.mrb[0].mxu0
        %v4238 = vadd.f32 0.0, %v4237
        %v4239 = vpop.f32.mrb[0].mxu0
        %4240 = vdwg.mxu0
        %v4241 = vadd.f32 %v4158, %v4233
        %v4242 = vadd.f32 %v4159, %v4238
        %v4244 = vsel %vm2249, %v2171, 0
        %v4247 = vsel %vm2249, %v2172, 0
        %4249 = vmatprep.subr.mxu0 0.0
        %4250 = vmatpush1.msra.mxu0 %v2233
        %4251 = vmatprep.subr.mxu0 0.0
        %4252 = vmatpush1.msra.mxu0 %v2234
        %4253 = vmatprep.subr.mxu0 0.0
        %4254 = vmatpush1.msra.mxu0 %v2235
        %4255 = vmatprep.subr.mxu0 0.0
        %4256 = vmatpush1.msra.mxu0 %v2236
        %4257 = vmatprep.subr.mxu0 0.0
        %4258 = vmatpush1.msra.mxu0 %v2237
        %4259 = vmatprep.subr.mxu0 0.0
        %4260 = vmatpush1.msra.mxu0 %v2238
        %4261 = vmatprep.subr.mxu0 0.0
        %4262 = vmatpush1.msra.mxu0 %v2239
        %4263 = vmatprep.subr.mxu0 0.0
        %4264 = vmatpush1.msra.mxu0 %v2240
        %4265 = vmatprep.subr.mxu0 0.0
        %4266 = vmatpush1.msra.mxu0 0.0
        %4267 = vmatprep.subr.mxu0 0.0
        %4268 = vmatpush1.msra.mxu0 0.0
        %4269 = vmatprep.subr.mxu0 0.0
        %4270 = vmatpush1.msra.mxu0 0.0
        %4271 = vmatprep.subr.mxu0 0.0
        %4272 = vmatpush1.msra.mxu0 0.0
        %4273 = vmatprep.subr.mxu0 0.0
        %4274 = vmatpush1.msra.mxu0 0.0
        %4275 = vmatprep.subr.mxu0 0.0
        %4276 = vmatpush1.msra.mxu0 0.0
        %4277 = vmatprep.subr.mxu0 0.0
        %4278 = vmatpush1.msra.mxu0 0.0
        %4279 = vmatprep.subr.mxu0 0.0
        %4280 = vmatpush1.msra.mxu0 0.0
        %4281 = vmatprep.subr.mxu0 0.0
        %4282 = vmatpush1.msra.mxu0 0.0
        %4283 = vmatprep.subr.mxu0 0.0
        %4284 = vmatpush1.msra.mxu0 0.0
        %4285 = vmatprep.subr.mxu0 0.0
        %4286 = vmatpush1.msra.mxu0 0.0
        %4287 = vmatprep.subr.mxu0 0.0
        %4288 = vmatpush1.msra.mxu0 0.0
        %4289 = vmatprep.subr.mxu0 0.0
        %4290 = vmatpush1.msra.mxu0 0.0
        %4291 = vmatprep.subr.mxu0 0.0
        %4292 = vmatpush1.msra.mxu0 0.0
        %4293 = vmatprep.subr.mxu0 0.0
        %4294 = vmatpush1.msra.mxu0 0.0
        %4295 = vmatprep.subr.mxu0 0.0
        %4296 = vmatpush1.msra.mxu0 0.0
        %4297 = vmatprep.subr.mxu0 0.0
        %4298 = vmatpush1.msra.mxu0 0.0
        %4299 = vmatprep.subr.mxu0 0.0
        %4300 = vmatpush1.msra.mxu0 0.0
        %4301 = vmatprep.subr.mxu0 0.0
        %4302 = vmatpush1.msra.mxu0 0.0
        %4303 = vmatprep.subr.mxu0 0.0
        %4304 = vmatpush1.msra.mxu0 0.0
        %4305 = vmatprep.subr.mxu0 0.0
        %4306 = vmatpush1.msra.mxu0 0.0
        %4307 = vmatprep.subr.mxu0 0.0
        %4308 = vmatpush1.msra.mxu0 0.0
        %4309 = vmatprep.subr.mxu0 0.0
        %4310 = vmatpush1.msra.mxu0 0.0
        %4311 = vmatprep.subr.mxu0 0.0
        %4312 = vmatpush1.msra.mxu0 0.0
        %4313 = vmatprep.mubr.f32.mxu0 0.0
        %4314 = vmatmul.mubr.f32.gmra.mrb[0].mxu0 %v4244
        %v4315 = vpop.f32.mrb[0].mxu0
        %v4316 = vadd.f32 0.0, %v4315
        %v4317 = vpop.f32.mrb[0].mxu0
        %4318 = vmatprep.mubr.f32.mxu0 0.0
        %4319 = vmatmul.mubr.f32.gmra.mrb[0].mxu0 %v4247
        %v4320 = vpop.f32.mrb[0].mxu0
        %v4321 = vadd.f32 0.0, %v4320
        %v4322 = vpop.f32.mrb[0].mxu0
        %4323 = vdwg.mxu0
        %v4324 = vadd.f32 %v4241, %v4316
        %v4325 = vadd.f32 %v4242, %v4321
        %v4327 = vsel %vm2249, %v2173, 0
        %v4330 = vsel %vm2249, %v2174, 0
        %4332 = vmatprep.subr.mxu0 0.0
        %4333 = vmatpush1.msra.mxu0 %v2241
        %4334 = vmatprep.subr.mxu0 0.0
        %4335 = vmatpush1.msra.mxu0 %v2242
        %4336 = vmatprep.subr.mxu0 0.0
        %4337 = vmatpush1.msra.mxu0 %v2243
        %4338 = vmatprep.subr.mxu0 0.0
        %4339 = vmatpush1.msra.mxu0 %v2244
        %4340 = vmatprep.subr.mxu0 0.0
        %4341 = vmatpush1.msra.mxu0 %v2245
        %4342 = vmatprep.subr.mxu0 0.0
        %4343 = vmatpush1.msra.mxu0 %v2246
        %4344 = vmatprep.subr.mxu0 0.0
        %4345 = vmatpush1.msra.mxu0 %v2247
        %4346 = vmatprep.subr.mxu0 0.0
        %4347 = vmatpush1.msra.mxu0 %v2248
        %4348 = vmatprep.subr.mxu0 0.0
        %4349 = vmatpush1.msra.mxu0 0.0
        %4350 = vmatprep.subr.mxu0 0.0
        %4351 = vmatpush1.msra.mxu0 0.0
        %4352 = vmatprep.subr.mxu0 0.0
        %4353 = vmatpush1.msra.mxu0 0.0
        %4354 = vmatprep.subr.mxu0 0.0
        %4355 = vmatpush1.msra.mxu0 0.0
        %4356 = vmatprep.subr.mxu0 0.0
        %4357 = vmatpush1.msra.mxu0 0.0
        %4358 = vmatprep.subr.mxu0 0.0
        %4359 = vmatpush1.msra.mxu0 0.0
        %4360 = vmatprep.subr.mxu0 0.0
        %4361 = vmatpush1.msra.mxu0 0.0
        %4362 = vmatprep.subr.mxu0 0.0
        %4363 = vmatpush1.msra.mxu0 0.0
        %4364 = vmatprep.subr.mxu0 0.0
        %4365 = vmatpush1.msra.mxu0 0.0
        %4366 = vmatprep.subr.mxu0 0.0
        %4367 = vmatpush1.msra.mxu0 0.0
        %4368 = vmatprep.subr.mxu0 0.0
        %4369 = vmatpush1.msra.mxu0 0.0
        %4370 = vmatprep.subr.mxu0 0.0
        %4371 = vmatpush1.msra.mxu0 0.0
        %4372 = vmatprep.subr.mxu0 0.0
        %4373 = vmatpush1.msra.mxu0 0.0
        %4374 = vmatprep.subr.mxu0 0.0
        %4375 = vmatpush1.msra.mxu0 0.0
        %4376 = vmatprep.subr.mxu0 0.0
        %4377 = vmatpush1.msra.mxu0 0.0
        %4378 = vmatprep.subr.mxu0 0.0
        %4379 = vmatpush1.msra.mxu0 0.0
        %4380 = vmatprep.subr.mxu0 0.0
        %4381 = vmatpush1.msra.mxu0 0.0
        %4382 = vmatprep.subr.mxu0 0.0
        %4383 = vmatpush1.msra.mxu0 0.0
        %4384 = vmatprep.subr.mxu0 0.0
        %4385 = vmatpush1.msra.mxu0 0.0
        %4386 = vmatprep.subr.mxu0 0.0
        %4387 = vmatpush1.msra.mxu0 0.0
        %4388 = vmatprep.subr.mxu0 0.0
        %4389 = vmatpush1.msra.mxu0 0.0
        %4390 = vmatprep.subr.mxu0 0.0
        %4391 = vmatpush1.msra.mxu0 0.0
        %4392 = vmatprep.subr.mxu0 0.0
        %4393 = vmatpush1.msra.mxu0 0.0
        %4394 = vmatprep.subr.mxu0 0.0
        %4395 = vmatpush1.msra.mxu0 0.0
        %4396 = vmatprep.mubr.f32.mxu0 0.0
        %4397 = vmatmul.mubr.f32.gmra.mrb[0].mxu0 %v4327
        %v4398 = vpop.f32.mrb[0].mxu0
        %v4399 = vadd.f32 0.0, %v4398
        %v4400 = vpop.f32.mrb[0].mxu0
        %4401 = vmatprep.mubr.f32.mxu0 0.0
        %4402 = vmatmul.mubr.f32.gmra.mrb[0].mxu0 %v4330
        %v4403 = vpop.f32.mrb[0].mxu0
        %v4404 = vadd.f32 0.0, %v4403
        %v4405 = vpop.f32.mrb[0].mxu0
        %4406 = vdwg.mxu0
        %v4407 = vadd.f32 %v4324, %v4399
        %v4408 = vadd.f32 %v4325, %v4404
        %v4409 = vmax.f32 %v3700, %v4407
        %v4410 = vmax.f32 %v3701, %v4408
        %4411 = vmatprep.subr.mxu0 0.0
        %4412 = vmatpush1.msra.mxu0 %v2185
        %4413 = vmatprep.subr.mxu0 0.0
        %4414 = vmatpush1.msra.mxu0 %v2186
        %4415 = vmatprep.subr.mxu0 0.0
        %4416 = vmatpush1.msra.mxu0 %v2187
        %4417 = vmatprep.subr.mxu0 0.0
        %4418 = vmatpush1.msra.mxu0 %v2188
        %4419 = vmatprep.subr.mxu0 0.0
        %4420 = vmatpush1.msra.mxu0 %v2189
        %4421 = vmatprep.subr.mxu0 0.0
        %4422 = vmatpush1.msra.mxu0 %v2190
        %4423 = vmatprep.subr.mxu0 0.0
        %4424 = vmatpush1.msra.mxu0 %v2191
        %4425 = vmatprep.subr.mxu0 0.0
        %4426 = vmatpush1.msra.mxu0 %v2192
        %4427 = vmatprep.subr.mxu0 0.0
        %4428 = vmatpush1.msra.mxu0 0.0
        %4429 = vmatprep.subr.mxu0 0.0
        %4430 = vmatpush1.msra.mxu0 0.0
        %4431 = vmatprep.subr.mxu0 0.0
        %4432 = vmatpush1.msra.mxu0 0.0
        %4433 = vmatprep.subr.mxu0 0.0
        %4434 = vmatpush1.msra.mxu0 0.0
        %4435 = vmatprep.subr.mxu0 0.0
        %4436 = vmatpush1.msra.mxu0 0.0
        %4437 = vmatprep.subr.mxu0 0.0
        %4438 = vmatpush1.msra.mxu0 0.0
        %4439 = vmatprep.subr.mxu0 0.0
        %4440 = vmatpush1.msra.mxu0 0.0
        %4441 = vmatprep.subr.mxu0 0.0
        %4442 = vmatpush1.msra.mxu0 0.0
        %4443 = vmatprep.subr.mxu0 0.0
        %4444 = vmatpush1.msra.mxu0 0.0
        %4445 = vmatprep.subr.mxu0 0.0
        %4446 = vmatpush1.msra.mxu0 0.0
        %4447 = vmatprep.subr.mxu0 0.0
        %4448 = vmatpush1.msra.mxu0 0.0
        %4449 = vmatprep.subr.mxu0 0.0
        %4450 = vmatpush1.msra.mxu0 0.0
        %4451 = vmatprep.subr.mxu0 0.0
        %4452 = vmatpush1.msra.mxu0 0.0
        %4453 = vmatprep.subr.mxu0 0.0
        %4454 = vmatpush1.msra.mxu0 0.0
        %4455 = vmatprep.subr.mxu0 0.0
        %4456 = vmatpush1.msra.mxu0 0.0
        %4457 = vmatprep.subr.mxu0 0.0
        %4458 = vmatpush1.msra.mxu0 0.0
        %4459 = vmatprep.subr.mxu0 0.0
        %4460 = vmatpush1.msra.mxu0 0.0
        %4461 = vmatprep.subr.mxu0 0.0
        %4462 = vmatpush1.msra.mxu0 0.0
        %4463 = vmatprep.subr.mxu0 0.0
        %4464 = vmatpush1.msra.mxu0 0.0
        %4465 = vmatprep.subr.mxu0 0.0
        %4466 = vmatpush1.msra.mxu0 0.0
        %4467 = vmatprep.subr.mxu0 0.0
        %4468 = vmatpush1.msra.mxu0 0.0
        %4469 = vmatprep.subr.mxu0 0.0
        %4470 = vmatpush1.msra.mxu0 0.0
        %4471 = vmatprep.subr.mxu0 0.0
        %4472 = vmatpush1.msra.mxu0 0.0
        %4473 = vmatprep.subr.mxu0 0.0
        %4474 = vmatpush1.msra.mxu0 0.0
        %4475 = vmatprep.mubr.f32.mxu0 0.0
        %4476 = vmatmul.mubr.f32.gmra.mrb[0].mxu0 %v2662
        %v4477 = vpop.f32.mrb[0].mxu0
        %v4478 = vadd.f32 0.0, %v4477
        %v4479 = vpop.f32.mrb[0].mxu0
        %4480 = vmatprep.mubr.f32.mxu0 0.0
        %4481 = vmatmul.mubr.f32.gmra.mrb[0].mxu0 %v2665
        %v4482 = vpop.f32.mrb[0].mxu0
        %v4483 = vadd.f32 0.0, %v4482
        %v4484 = vpop.f32.mrb[0].mxu0
        %4485 = vdwg.mxu0
        %4486 = vmatprep.subr.mxu0 0.0
        %4487 = vmatpush1.msra.mxu0 %v2177
        %4488 = vmatprep.subr.mxu0 0.0
        %4489 = vmatpush1.msra.mxu0 %v2178
        %4490 = vmatprep.subr.mxu0 0.0
        %4491 = vmatpush1.msra.mxu0 %v2179
        %4492 = vmatprep.subr.mxu0 0.0
        %4493 = vmatpush1.msra.mxu0 %v2180
        %4494 = vmatprep.subr.mxu0 0.0
        %4495 = vmatpush1.msra.mxu0 %v2181
        %4496 = vmatprep.subr.mxu0 0.0
        %4497 = vmatpush1.msra.mxu0 %v2182
        %4498 = vmatprep.subr.mxu0 0.0
        %4499 = vmatpush1.msra.mxu0 %v2183
        %4500 = vmatprep.subr.mxu0 0.0
        %4501 = vmatpush1.msra.mxu0 %v2184
        %4502 = vmatprep.subr.mxu0 0.0
        %4503 = vmatpush1.msra.mxu0 0.0
        %4504 = vmatprep.subr.mxu0 0.0
        %4505 = vmatpush1.msra.mxu0 0.0
        %4506 = vmatprep.subr.mxu0 0.0
        %4507 = vmatpush1.msra.mxu0 0.0
        %4508 = vmatprep.subr.mxu0 0.0
        %4509 = vmatpush1.msra.mxu0 0.0
        %4510 = vmatprep.subr.mxu0 0.0
        %4511 = vmatpush1.msra.mxu0 0.0
        %4512 = vmatprep.subr.mxu0 0.0
        %4513 = vmatpush1.msra.mxu0 0.0
        %4514 = vmatprep.subr.mxu0 0.0
        %4515 = vmatpush1.msra.mxu0 0.0
        %4516 = vmatprep.subr.mxu0 0.0
        %4517 = vmatpush1.msra.mxu0 0.0
        %4518 = vmatprep.subr.mxu0 0.0
        %4519 = vmatpush1.msra.mxu0 0.0
        %4520 = vmatprep.subr.mxu0 0.0
        %4521 = vmatpush1.msra.mxu0 0.0
        %4522 = vmatprep.subr.mxu0 0.0
        %4523 = vmatpush1.msra.mxu0 0.0
        %4524 = vmatprep.subr.mxu0 0.0
        %4525 = vmatpush1.msra.mxu0 0.0
        %4526 = vmatprep.subr.mxu0 0.0
        %4527 = vmatpush1.msra.mxu0 0.0
        %4528 = vmatprep.subr.mxu0 0.0
        %4529 = vmatpush1.msra.mxu0 0.0
        %4530 = vmatprep.subr.mxu0 0.0
        %4531 = vmatpush1.msra.mxu0 0.0
        %4532 = vmatprep.subr.mxu0 0.0
        %4533 = vmatpush1.msra.mxu0 0.0
        %4534 = vmatprep.subr.mxu0 0.0
        %4535 = vmatpush1.msra.mxu0 0.0
        %4536 = vmatprep.subr.mxu0 0.0
        %4537 = vmatpush1.msra.mxu0 0.0
        %4538 = vmatprep.subr.mxu0 0.0
        %4539 = vmatpush1.msra.mxu0 0.0
        %4540 = vmatprep.subr.mxu0 0.0
        %4541 = vmatpush1.msra.mxu0 0.0
        %4542 = vmatprep.subr.mxu0 0.0
        %4543 = vmatpush1.msra.mxu0 0.0
        %4544 = vmatprep.subr.mxu0 0.0
        %4545 = vmatpush1.msra.mxu0 0.0
        %4546 = vmatprep.subr.mxu0 0.0
        %4547 = vmatpush1.msra.mxu0 0.0
        %4548 = vmatprep.subr.mxu0 0.0
        %4549 = vmatpush1.msra.mxu0 0.0
        %4550 = vmatprep.mubr.f32.mxu0 0.0
        %4551 = vmatmul.mubr.f32.gmra.mrb[0].mxu0 %v2579
        %v4552 = vpop.f32.mrb[0].mxu0
        %v4553 = vadd.f32 %v4478, %v4552
        %v4554 = vpop.f32.mrb[0].mxu0
        %4555 = vmatprep.mubr.f32.mxu0 0.0
        %4556 = vmatmul.mubr.f32.gmra.mrb[0].mxu0 %v2582
        %v4557 = vpop.f32.mrb[0].mxu0
        %v4558 = vadd.f32 %v4483, %v4557
        %v4559 = vpop.f32.mrb[0].mxu0
        %4560 = vdwg.mxu0
        %4561 = vmatprep.subr.mxu0 0.0
        %4562 = vmatpush1.msra.mxu0 %v2193
        %4563 = vmatprep.subr.mxu0 0.0
        %4564 = vmatpush1.msra.mxu0 %v2194
        %4565 = vmatprep.subr.mxu0 0.0
        %4566 = vmatpush1.msra.mxu0 %v2195
        %4567 = vmatprep.subr.mxu0 0.0
        %4568 = vmatpush1.msra.mxu0 %v2196
        %4569 = vmatprep.subr.mxu0 0.0
        %4570 = vmatpush1.msra.mxu0 %v2197
        %4571 = vmatprep.subr.mxu0 0.0
        %4572 = vmatpush1.msra.mxu0 %v2198
        %4573 = vmatprep.subr.mxu0 0.0
        %4574 = vmatpush1.msra.mxu0 %v2199
        %4575 = vmatprep.subr.mxu0 0.0
        %4576 = vmatpush1.msra.mxu0 %v2200
        %4577 = vmatprep.subr.mxu0 0.0
        %4578 = vmatpush1.msra.mxu0 0.0
        %4579 = vmatprep.subr.mxu0 0.0
        %4580 = vmatpush1.msra.mxu0 0.0
        %4581 = vmatprep.subr.mxu0 0.0
        %4582 = vmatpush1.msra.mxu0 0.0
        %4583 = vmatprep.subr.mxu0 0.0
        %4584 = vmatpush1.msra.mxu0 0.0
        %4585 = vmatprep.subr.mxu0 0.0
        %4586 = vmatpush1.msra.mxu0 0.0
        %4587 = vmatprep.subr.mxu0 0.0
        %4588 = vmatpush1.msra.mxu0 0.0
        %4589 = vmatprep.subr.mxu0 0.0
        %4590 = vmatpush1.msra.mxu0 0.0
        %4591 = vmatprep.subr.mxu0 0.0
        %4592 = vmatpush1.msra.mxu0 0.0
        %4593 = vmatprep.subr.mxu0 0.0
        %4594 = vmatpush1.msra.mxu0 0.0
        %4595 = vmatprep.subr.mxu0 0.0
        %4596 = vmatpush1.msra.mxu0 0.0
        %4597 = vmatprep.subr.mxu0 0.0
        %4598 = vmatpush1.msra.mxu0 0.0
        %4599 = vmatprep.subr.mxu0 0.0
        %4600 = vmatpush1.msra.mxu0 0.0
        %4601 = vmatprep.subr.mxu0 0.0
        %4602 = vmatpush1.msra.mxu0 0.0
        %4603 = vmatprep.subr.mxu0 0.0
        %4604 = vmatpush1.msra.mxu0 0.0
        %4605 = vmatprep.subr.mxu0 0.0
        %4606 = vmatpush1.msra.mxu0 0.0
        %4607 = vmatprep.subr.mxu0 0.0
        %4608 = vmatpush1.msra.mxu0 0.0
        %4609 = vmatprep.subr.mxu0 0.0
        %4610 = vmatpush1.msra.mxu0 0.0
        %4611 = vmatprep.subr.mxu0 0.0
        %4612 = vmatpush1.msra.mxu0 0.0
        %4613 = vmatprep.subr.mxu0 0.0
        %4614 = vmatpush1.msra.mxu0 0.0
        %4615 = vmatprep.subr.mxu0 0.0
        %4616 = vmatpush1.msra.mxu0 0.0
        %4617 = vmatprep.subr.mxu0 0.0
        %4618 = vmatpush1.msra.mxu0 0.0
        %4619 = vmatprep.subr.mxu0 0.0
        %4620 = vmatpush1.msra.mxu0 0.0
        %4621 = vmatprep.subr.mxu0 0.0
        %4622 = vmatpush1.msra.mxu0 0.0
        %4623 = vmatprep.subr.mxu0 0.0
        %4624 = vmatpush1.msra.mxu0 0.0
        %4625 = vmatprep.mubr.f32.mxu0 0.0
        %4626 = vmatmul.mubr.f32.gmra.mrb[0].mxu0 %v3381
        %v4627 = vpop.f32.mrb[0].mxu0
        %v4628 = vadd.f32 0.0, %v4627
        %v4629 = vpop.f32.mrb[0].mxu0
        %4630 = vmatprep.mubr.f32.mxu0 0.0
        %4631 = vmatmul.mubr.f32.gmra.mrb[0].mxu0 %v3384
        %v4632 = vpop.f32.mrb[0].mxu0
        %v4633 = vadd.f32 0.0, %v4632
        %v4634 = vpop.f32.mrb[0].mxu0
        %4635 = vdwg.mxu0
        %v4636 = vadd.f32 %v4553, %v4628
        %v4637 = vadd.f32 %v4558, %v4633
        %4638 = vmatprep.subr.mxu0 0.0
        %4639 = vmatpush1.msra.mxu0 %v2201
        %4640 = vmatprep.subr.mxu0 0.0
        %4641 = vmatpush1.msra.mxu0 %v2202
        %4642 = vmatprep.subr.mxu0 0.0
        %4643 = vmatpush1.msra.mxu0 %v2203
        %4644 = vmatprep.subr.mxu0 0.0
        %4645 = vmatpush1.msra.mxu0 %v2204
        %4646 = vmatprep.subr.mxu0 0.0
        %4647 = vmatpush1.msra.mxu0 %v2205
        %4648 = vmatprep.subr.mxu0 0.0
        %4649 = vmatpush1.msra.mxu0 %v2206
        %4650 = vmatprep.subr.mxu0 0.0
        %4651 = vmatpush1.msra.mxu0 %v2207
        %4652 = vmatprep.subr.mxu0 0.0
        %4653 = vmatpush1.msra.mxu0 %v2208
        %4654 = vmatprep.subr.mxu0 0.0
        %4655 = vmatpush1.msra.mxu0 0.0
        %4656 = vmatprep.subr.mxu0 0.0
        %4657 = vmatpush1.msra.mxu0 0.0
        %4658 = vmatprep.subr.mxu0 0.0
        %4659 = vmatpush1.msra.mxu0 0.0
        %4660 = vmatprep.subr.mxu0 0.0
        %4661 = vmatpush1.msra.mxu0 0.0
        %4662 = vmatprep.subr.mxu0 0.0
        %4663 = vmatpush1.msra.mxu0 0.0
        %4664 = vmatprep.subr.mxu0 0.0
        %4665 = vmatpush1.msra.mxu0 0.0
        %4666 = vmatprep.subr.mxu0 0.0
        %4667 = vmatpush1.msra.mxu0 0.0
        %4668 = vmatprep.subr.mxu0 0.0
        %4669 = vmatpush1.msra.mxu0 0.0
        %4670 = vmatprep.subr.mxu0 0.0
        %4671 = vmatpush1.msra.mxu0 0.0
        %4672 = vmatprep.subr.mxu0 0.0
        %4673 = vmatpush1.msra.mxu0 0.0
        %4674 = vmatprep.subr.mxu0 0.0
        %4675 = vmatpush1.msra.mxu0 0.0
        %4676 = vmatprep.subr.mxu0 0.0
        %4677 = vmatpush1.msra.mxu0 0.0
        %4678 = vmatprep.subr.mxu0 0.0
        %4679 = vmatpush1.msra.mxu0 0.0
        %4680 = vmatprep.subr.mxu0 0.0
        %4681 = vmatpush1.msra.mxu0 0.0
        %4682 = vmatprep.subr.mxu0 0.0
        %4683 = vmatpush1.msra.mxu0 0.0
        %4684 = vmatprep.subr.mxu0 0.0
        %4685 = vmatpush1.msra.mxu0 0.0
        %4686 = vmatprep.subr.mxu0 0.0
        %4687 = vmatpush1.msra.mxu0 0.0
        %4688 = vmatprep.subr.mxu0 0.0
        %4689 = vmatpush1.msra.mxu0 0.0
        %4690 = vmatprep.subr.mxu0 0.0
        %4691 = vmatpush1.msra.mxu0 0.0
        %4692 = vmatprep.subr.mxu0 0.0
        %4693 = vmatpush1.msra.mxu0 0.0
        %4694 = vmatprep.subr.mxu0 0.0
        %4695 = vmatpush1.msra.mxu0 0.0
        %4696 = vmatprep.subr.mxu0 0.0
        %4697 = vmatpush1.msra.mxu0 0.0
        %4698 = vmatprep.subr.mxu0 0.0
        %4699 = vmatpush1.msra.mxu0 0.0
        %4700 = vmatprep.subr.mxu0 0.0
        %4701 = vmatpush1.msra.mxu0 0.0
        %4702 = vmatprep.mubr.f32.mxu0 0.0
        %4703 = vmatmul.mubr.f32.gmra.mrb[0].mxu0 %v2828
        %v4704 = vpop.f32.mrb[0].mxu0
        %v4705 = vadd.f32 0.0, %v4704
        %v4706 = vpop.f32.mrb[0].mxu0
        %4707 = vmatprep.mubr.f32.mxu0 0.0
        %4708 = vmatmul.mubr.f32.gmra.mrb[0].mxu0 %v2831
        %v4709 = vpop.f32.mrb[0].mxu0
        %v4710 = vadd.f32 0.0, %v4709
        %v4711 = vpop.f32.mrb[0].mxu0
        %4712 = vdwg.mxu0
        %v4713 = vadd.f32 %v4636, %v4705
        %v4714 = vadd.f32 %v4637, %v4710
        %4715 = vmatprep.subr.mxu0 0.0
        %4716 = vmatpush1.msra.mxu0 %v2209
        %4717 = vmatprep.subr.mxu0 0.0
        %4718 = vmatpush1.msra.mxu0 %v2210
        %4719 = vmatprep.subr.mxu0 0.0
        %4720 = vmatpush1.msra.mxu0 %v2211
        %4721 = vmatprep.subr.mxu0 0.0
        %4722 = vmatpush1.msra.mxu0 %v2212
        %4723 = vmatprep.subr.mxu0 0.0
        %4724 = vmatpush1.msra.mxu0 %v2213
        %4725 = vmatprep.subr.mxu0 0.0
        %4726 = vmatpush1.msra.mxu0 %v2214
        %4727 = vmatprep.subr.mxu0 0.0
        %4728 = vmatpush1.msra.mxu0 %v2215
        %4729 = vmatprep.subr.mxu0 0.0
        %4730 = vmatpush1.msra.mxu0 %v2216
        %4731 = vmatprep.subr.mxu0 0.0
        %4732 = vmatpush1.msra.mxu0 0.0
        %4733 = vmatprep.subr.mxu0 0.0
        %4734 = vmatpush1.msra.mxu0 0.0
        %4735 = vmatprep.subr.mxu0 0.0
        %4736 = vmatpush1.msra.mxu0 0.0
        %4737 = vmatprep.subr.mxu0 0.0
        %4738 = vmatpush1.msra.mxu0 0.0
        %4739 = vmatprep.subr.mxu0 0.0
        %4740 = vmatpush1.msra.mxu0 0.0
        %4741 = vmatprep.subr.mxu0 0.0
        %4742 = vmatpush1.msra.mxu0 0.0
        %4743 = vmatprep.subr.mxu0 0.0
        %4744 = vmatpush1.msra.mxu0 0.0
        %4745 = vmatprep.subr.mxu0 0.0
        %4746 = vmatpush1.msra.mxu0 0.0
        %4747 = vmatprep.subr.mxu0 0.0
        %4748 = vmatpush1.msra.mxu0 0.0
        %4749 = vmatprep.subr.mxu0 0.0
        %4750 = vmatpush1.msra.mxu0 0.0
        %4751 = vmatprep.subr.mxu0 0.0
        %4752 = vmatpush1.msra.mxu0 0.0
        %4753 = vmatprep.subr.mxu0 0.0
        %4754 = vmatpush1.msra.mxu0 0.0
        %4755 = vmatprep.subr.mxu0 0.0
        %4756 = vmatpush1.msra.mxu0 0.0
        %4757 = vmatprep.subr.mxu0 0.0
        %4758 = vmatpush1.msra.mxu0 0.0
        %4759 = vmatprep.subr.mxu0 0.0
        %4760 = vmatpush1.msra.mxu0 0.0
        %4761 = vmatprep.subr.mxu0 0.0
        %4762 = vmatpush1.msra.mxu0 0.0
        %4763 = vmatprep.subr.mxu0 0.0
        %4764 = vmatpush1.msra.mxu0 0.0
        %4765 = vmatprep.subr.mxu0 0.0
        %4766 = vmatpush1.msra.mxu0 0.0
        %4767 = vmatprep.subr.mxu0 0.0
        %4768 = vmatpush1.msra.mxu0 0.0
        %4769 = vmatprep.subr.mxu0 0.0
        %4770 = vmatpush1.msra.mxu0 0.0
        %4771 = vmatprep.subr.mxu0 0.0
        %4772 = vmatpush1.msra.mxu0 0.0
        %4773 = vmatprep.subr.mxu0 0.0
        %4774 = vmatpush1.msra.mxu0 0.0
        %4775 = vmatprep.subr.mxu0 0.0
        %4776 = vmatpush1.msra.mxu0 0.0
        %4777 = vmatprep.subr.mxu0 0.0
        %4778 = vmatpush1.msra.mxu0 0.0
        %4779 = vmatprep.mubr.f32.mxu0 0.0
        %4780 = vmatmul.mubr.f32.gmra.mrb[0].mxu0 %v2911
        %v4781 = vpop.f32.mrb[0].mxu0
        %v4782 = vadd.f32 0.0, %v4781
        %v4783 = vpop.f32.mrb[0].mxu0
        %4784 = vmatprep.mubr.f32.mxu0 0.0
        %4785 = vmatmul.mubr.f32.gmra.mrb[0].mxu0 %v2914
        %v4786 = vpop.f32.mrb[0].mxu0
        %v4787 = vadd.f32 0.0, %v4786
        %v4788 = vpop.f32.mrb[0].mxu0
        %4789 = vdwg.mxu0
        %v4790 = vadd.f32 %v4713, %v4782
        %v4791 = vadd.f32 %v4714, %v4787
        %4792 = vmatprep.subr.mxu0 0.0
        %4793 = vmatpush1.msra.mxu0 %v2217
        %4794 = vmatprep.subr.mxu0 0.0
        %4795 = vmatpush1.msra.mxu0 %v2218
        %4796 = vmatprep.subr.mxu0 0.0
        %4797 = vmatpush1.msra.mxu0 %v2219
        %4798 = vmatprep.subr.mxu0 0.0
        %4799 = vmatpush1.msra.mxu0 %v2220
        %4800 = vmatprep.subr.mxu0 0.0
        %4801 = vmatpush1.msra.mxu0 %v2221
        %4802 = vmatprep.subr.mxu0 0.0
        %4803 = vmatpush1.msra.mxu0 %v2222
        %4804 = vmatprep.subr.mxu0 0.0
        %4805 = vmatpush1.msra.mxu0 %v2223
        %4806 = vmatprep.subr.mxu0 0.0
        %4807 = vmatpush1.msra.mxu0 %v2224
        %4808 = vmatprep.subr.mxu0 0.0
        %4809 = vmatpush1.msra.mxu0 0.0
        %4810 = vmatprep.subr.mxu0 0.0
        %4811 = vmatpush1.msra.mxu0 0.0
        %4812 = vmatprep.subr.mxu0 0.0
        %4813 = vmatpush1.msra.mxu0 0.0
        %4814 = vmatprep.subr.mxu0 0.0
        %4815 = vmatpush1.msra.mxu0 0.0
        %4816 = vmatprep.subr.mxu0 0.0
        %4817 = vmatpush1.msra.mxu0 0.0
        %4818 = vmatprep.subr.mxu0 0.0
        %4819 = vmatpush1.msra.mxu0 0.0
        %4820 = vmatprep.subr.mxu0 0.0
        %4821 = vmatpush1.msra.mxu0 0.0
        %4822 = vmatprep.subr.mxu0 0.0
        %4823 = vmatpush1.msra.mxu0 0.0
        %4824 = vmatprep.subr.mxu0 0.0
        %4825 = vmatpush1.msra.mxu0 0.0
        %4826 = vmatprep.subr.mxu0 0.0
        %4827 = vmatpush1.msra.mxu0 0.0
        %4828 = vmatprep.subr.mxu0 0.0
        %4829 = vmatpush1.msra.mxu0 0.0
        %4830 = vmatprep.subr.mxu0 0.0
        %4831 = vmatpush1.msra.mxu0 0.0
        %4832 = vmatprep.subr.mxu0 0.0
        %4833 = vmatpush1.msra.mxu0 0.0
        %4834 = vmatprep.subr.mxu0 0.0
        %4835 = vmatpush1.msra.mxu0 0.0
        %4836 = vmatprep.subr.mxu0 0.0
        %4837 = vmatpush1.msra.mxu0 0.0
        %4838 = vmatprep.subr.mxu0 0.0
        %4839 = vmatpush1.msra.mxu0 0.0
        %4840 = vmatprep.subr.mxu0 0.0
        %4841 = vmatpush1.msra.mxu0 0.0
        %4842 = vmatprep.subr.mxu0 0.0
        %4843 = vmatpush1.msra.mxu0 0.0
        %4844 = vmatprep.subr.mxu0 0.0
        %4845 = vmatpush1.msra.mxu0 0.0
        %4846 = vmatprep.subr.mxu0 0.0
        %4847 = vmatpush1.msra.mxu0 0.0
        %4848 = vmatprep.subr.mxu0 0.0
        %4849 = vmatpush1.msra.mxu0 0.0
        %4850 = vmatprep.subr.mxu0 0.0
        %4851 = vmatpush1.msra.mxu0 0.0
        %4852 = vmatprep.subr.mxu0 0.0
        %4853 = vmatpush1.msra.mxu0 0.0
        %4854 = vmatprep.subr.mxu0 0.0
        %4855 = vmatpush1.msra.mxu0 0.0
        %4856 = vmatprep.mubr.f32.mxu0 0.0
        %4857 = vmatmul.mubr.f32.gmra.mrb[0].mxu0 %v3618
        %v4858 = vpop.f32.mrb[0].mxu0
        %v4859 = vadd.f32 0.0, %v4858
        %v4860 = vpop.f32.mrb[0].mxu0
        %4861 = vmatprep.mubr.f32.mxu0 0.0
        %4862 = vmatmul.mubr.f32.gmra.mrb[0].mxu0 %v3621
        %v4863 = vpop.f32.mrb[0].mxu0
        %v4864 = vadd.f32 0.0, %v4863
        %v4865 = vpop.f32.mrb[0].mxu0
        %4866 = vdwg.mxu0
        %v4867 = vadd.f32 %v4790, %v4859
        %v4868 = vadd.f32 %v4791, %v4864
        %4869 = vmatprep.subr.mxu0 0.0
        %4870 = vmatpush1.msra.mxu0 %v2225
        %4871 = vmatprep.subr.mxu0 0.0
        %4872 = vmatpush1.msra.mxu0 %v2226
        %4873 = vmatprep.subr.mxu0 0.0
        %4874 = vmatpush1.msra.mxu0 %v2227
        %4875 = vmatprep.subr.mxu0 0.0
        %4876 = vmatpush1.msra.mxu0 %v2228
        %4877 = vmatprep.subr.mxu0 0.0
        %4878 = vmatpush1.msra.mxu0 %v2229
        %4879 = vmatprep.subr.mxu0 0.0
        %4880 = vmatpush1.msra.mxu0 %v2230
        %4881 = vmatprep.subr.mxu0 0.0
        %4882 = vmatpush1.msra.mxu0 %v2231
        %4883 = vmatprep.subr.mxu0 0.0
        %4884 = vmatpush1.msra.mxu0 %v2232
        %4885 = vmatprep.subr.mxu0 0.0
        %4886 = vmatpush1.msra.mxu0 0.0
        %4887 = vmatprep.subr.mxu0 0.0
        %4888 = vmatpush1.msra.mxu0 0.0
        %4889 = vmatprep.subr.mxu0 0.0
        %4890 = vmatpush1.msra.mxu0 0.0
        %4891 = vmatprep.subr.mxu0 0.0
        %4892 = vmatpush1.msra.mxu0 0.0
        %4893 = vmatprep.subr.mxu0 0.0
        %4894 = vmatpush1.msra.mxu0 0.0
        %4895 = vmatprep.subr.mxu0 0.0
        %4896 = vmatpush1.msra.mxu0 0.0
        %4897 = vmatprep.subr.mxu0 0.0
        %4898 = vmatpush1.msra.mxu0 0.0
        %4899 = vmatprep.subr.mxu0 0.0
        %4900 = vmatpush1.msra.mxu0 0.0
        %4901 = vmatprep.subr.mxu0 0.0
        %4902 = vmatpush1.msra.mxu0 0.0
        %4903 = vmatprep.subr.mxu0 0.0
        %4904 = vmatpush1.msra.mxu0 0.0
        %4905 = vmatprep.subr.mxu0 0.0
        %4906 = vmatpush1.msra.mxu0 0.0
        %4907 = vmatprep.subr.mxu0 0.0
        %4908 = vmatpush1.msra.mxu0 0.0
        %4909 = vmatprep.subr.mxu0 0.0
        %4910 = vmatpush1.msra.mxu0 0.0
        %4911 = vmatprep.subr.mxu0 0.0
        %4912 = vmatpush1.msra.mxu0 0.0
        %4913 = vmatprep.subr.mxu0 0.0
        %4914 = vmatpush1.msra.mxu0 0.0
        %4915 = vmatprep.subr.mxu0 0.0
        %4916 = vmatpush1.msra.mxu0 0.0
        %4917 = vmatprep.subr.mxu0 0.0
        %4918 = vmatpush1.msra.mxu0 0.0
        %4919 = vmatprep.subr.mxu0 0.0
        %4920 = vmatpush1.msra.mxu0 0.0
        %4921 = vmatprep.subr.mxu0 0.0
        %4922 = vmatpush1.msra.mxu0 0.0
        %4923 = vmatprep.subr.mxu0 0.0
        %4924 = vmatpush1.msra.mxu0 0.0
        %4925 = vmatprep.subr.mxu0 0.0
        %4926 = vmatpush1.msra.mxu0 0.0
        %4927 = vmatprep.subr.mxu0 0.0
        %4928 = vmatpush1.msra.mxu0 0.0
        %4929 = vmatprep.subr.mxu0 0.0
        %4930 = vmatpush1.msra.mxu0 0.0
        %4931 = vmatprep.subr.mxu0 0.0
        %4932 = vmatpush1.msra.mxu0 0.0
        %4933 = vmatprep.mubr.f32.mxu0 0.0
        %4934 = vmatmul.mubr.f32.gmra.mrb[0].mxu0 %v4244
        %v4935 = vpop.f32.mrb[0].mxu0
        %v4936 = vadd.f32 0.0, %v4935
        %v4937 = vpop.f32.mrb[0].mxu0
        %4938 = vmatprep.mubr.f32.mxu0 0.0
        %4939 = vmatmul.mubr.f32.gmra.mrb[0].mxu0 %v4247
        %v4940 = vpop.f32.mrb[0].mxu0
        %v4941 = vadd.f32 0.0, %v4940
        %v4942 = vpop.f32.mrb[0].mxu0
        %4943 = vdwg.mxu0
        %v4944 = vadd.f32 %v4867, %v4936
        %v4945 = vadd.f32 %v4868, %v4941
        %4946 = vmatprep.subr.mxu0 0.0
        %4947 = vmatpush1.msra.mxu0 %v2233
        %4948 = vmatprep.subr.mxu0 0.0
        %4949 = vmatpush1.msra.mxu0 %v2234
        %4950 = vmatprep.subr.mxu0 0.0
        %4951 = vmatpush1.msra.mxu0 %v2235
        %4952 = vmatprep.subr.mxu0 0.0
        %4953 = vmatpush1.msra.mxu0 %v2236
        %4954 = vmatprep.subr.mxu0 0.0
        %4955 = vmatpush1.msra.mxu0 %v2237
        %4956 = vmatprep.subr.mxu0 0.0
        %4957 = vmatpush1.msra.mxu0 %v2238
        %4958 = vmatprep.subr.mxu0 0.0
        %4959 = vmatpush1.msra.mxu0 %v2239
        %4960 = vmatprep.subr.mxu0 0.0
        %4961 = vmatpush1.msra.mxu0 %v2240
        %4962 = vmatprep.subr.mxu0 0.0
        %4963 = vmatpush1.msra.mxu0 0.0
        %4964 = vmatprep.subr.mxu0 0.0
        %4965 = vmatpush1.msra.mxu0 0.0
        %4966 = vmatprep.subr.mxu0 0.0
        %4967 = vmatpush1.msra.mxu0 0.0
        %4968 = vmatprep.subr.mxu0 0.0
        %4969 = vmatpush1.msra.mxu0 0.0
        %4970 = vmatprep.subr.mxu0 0.0
        %4971 = vmatpush1.msra.mxu0 0.0
        %4972 = vmatprep.subr.mxu0 0.0
        %4973 = vmatpush1.msra.mxu0 0.0
        %4974 = vmatprep.subr.mxu0 0.0
        %4975 = vmatpush1.msra.mxu0 0.0
        %4976 = vmatprep.subr.mxu0 0.0
        %4977 = vmatpush1.msra.mxu0 0.0
        %4978 = vmatprep.subr.mxu0 0.0
        %4979 = vmatpush1.msra.mxu0 0.0
        %4980 = vmatprep.subr.mxu0 0.0
        %4981 = vmatpush1.msra.mxu0 0.0
        %4982 = vmatprep.subr.mxu0 0.0
        %4983 = vmatpush1.msra.mxu0 0.0
        %4984 = vmatprep.subr.mxu0 0.0
        %4985 = vmatpush1.msra.mxu0 0.0
        %4986 = vmatprep.subr.mxu0 0.0
        %4987 = vmatpush1.msra.mxu0 0.0
        %4988 = vmatprep.subr.mxu0 0.0
        %4989 = vmatpush1.msra.mxu0 0.0
        %4990 = vmatprep.subr.mxu0 0.0
        %4991 = vmatpush1.msra.mxu0 0.0
        %4992 = vmatprep.subr.mxu0 0.0
        %4993 = vmatpush1.msra.mxu0 0.0
        %4994 = vmatprep.subr.mxu0 0.0
        %4995 = vmatpush1.msra.mxu0 0.0
        %4996 = vmatprep.subr.mxu0 0.0
        %4997 = vmatpush1.msra.mxu0 0.0
        %4998 = vmatprep.subr.mxu0 0.0
        %4999 = vmatpush1.msra.mxu0 0.0
        %5000 = vmatprep.subr.mxu0 0.0
        %5001 = vmatpush1.msra.mxu0 0.0
        %5002 = vmatprep.subr.mxu0 0.0
        %5003 = vmatpush1.msra.mxu0 0.0
        %5004 = vmatprep.subr.mxu0 0.0
        %5005 = vmatpush1.msra.mxu0 0.0
        %5006 = vmatprep.subr.mxu0 0.0
        %5007 = vmatpush1.msra.mxu0 0.0
        %5008 = vmatprep.subr.mxu0 0.0
        %5009 = vmatpush1.msra.mxu0 0.0
        %5010 = vmatprep.mubr.f32.mxu0 0.0
        %5011 = vmatmul.mubr.f32.gmra.mrb[0].mxu0 %v4327
        %v5012 = vpop.f32.mrb[0].mxu0
        %v5013 = vadd.f32 0.0, %v5012
        %v5014 = vpop.f32.mrb[0].mxu0
        %5015 = vmatprep.mubr.f32.mxu0 0.0
        %5016 = vmatmul.mubr.f32.gmra.mrb[0].mxu0 %v4330
        %v5017 = vpop.f32.mrb[0].mxu0
        %v5018 = vadd.f32 0.0, %v5017
        %v5019 = vpop.f32.mrb[0].mxu0
        %5020 = vdwg.mxu0
        %v5021 = vadd.f32 %v4944, %v5013
        %v5022 = vadd.f32 %v4945, %v5018
        %v5024 = vsel %vm2249, %v2175, 0
        %v5027 = vsel %vm2249, %v2176, 0
        %5029 = vmatprep.subr.mxu0 0.0
        %5030 = vmatpush1.msra.mxu0 %v2241
        %5031 = vmatprep.subr.mxu0 0.0
        %5032 = vmatpush1.msra.mxu0 %v2242
        %5033 = vmatprep.subr.mxu0 0.0
        %5034 = vmatpush1.msra.mxu0 %v2243
        %5035 = vmatprep.subr.mxu0 0.0
        %5036 = vmatpush1.msra.mxu0 %v2244
        %5037 = vmatprep.subr.mxu0 0.0
        %5038 = vmatpush1.msra.mxu0 %v2245
        %5039 = vmatprep.subr.mxu0 0.0
        %5040 = vmatpush1.msra.mxu0 %v2246
        %5041 = vmatprep.subr.mxu0 0.0
        %5042 = vmatpush1.msra.mxu0 %v2247
        %5043 = vmatprep.subr.mxu0 0.0
        %5044 = vmatpush1.msra.mxu0 %v2248
        %5045 = vmatprep.subr.mxu0 0.0
        %5046 = vmatpush1.msra.mxu0 0.0
        %5047 = vmatprep.subr.mxu0 0.0
        %5048 = vmatpush1.msra.mxu0 0.0
        %5049 = vmatprep.subr.mxu0 0.0
        %5050 = vmatpush1.msra.mxu0 0.0
        %5051 = vmatprep.subr.mxu0 0.0
        %5052 = vmatpush1.msra.mxu0 0.0
        %5053 = vmatprep.subr.mxu0 0.0
        %5054 = vmatpush1.msra.mxu0 0.0
        %5055 = vmatprep.subr.mxu0 0.0
        %5056 = vmatpush1.msra.mxu0 0.0
        %5057 = vmatprep.subr.mxu0 0.0
        %5058 = vmatpush1.msra.mxu0 0.0
        %5059 = vmatprep.subr.mxu0 0.0
        %5060 = vmatpush1.msra.mxu0 0.0
        %5061 = vmatprep.subr.mxu0 0.0
        %5062 = vmatpush1.msra.mxu0 0.0
        %5063 = vmatprep.subr.mxu0 0.0
        %5064 = vmatpush1.msra.mxu0 0.0
        %5065 = vmatprep.subr.mxu0 0.0
        %5066 = vmatpush1.msra.mxu0 0.0
        %5067 = vmatprep.subr.mxu0 0.0
        %5068 = vmatpush1.msra.mxu0 0.0
        %5069 = vmatprep.subr.mxu0 0.0
        %5070 = vmatpush1.msra.mxu0 0.0
        %5071 = vmatprep.subr.mxu0 0.0
        %5072 = vmatpush1.msra.mxu0 0.0
        %5073 = vmatprep.subr.mxu0 0.0
        %5074 = vmatpush1.msra.mxu0 0.0
        %5075 = vmatprep.subr.mxu0 0.0
        %5076 = vmatpush1.msra.mxu0 0.0
        %5077 = vmatprep.subr.mxu0 0.0
        %5078 = vmatpush1.msra.mxu0 0.0
        %5079 = vmatprep.subr.mxu0 0.0
        %5080 = vmatpush1.msra.mxu0 0.0
        %5081 = vmatprep.subr.mxu0 0.0
        %5082 = vmatpush1.msra.mxu0 0.0
        %5083 = vmatprep.subr.mxu0 0.0
        %5084 = vmatpush1.msra.mxu0 0.0
        %5085 = vmatprep.subr.mxu0 0.0
        %5086 = vmatpush1.msra.mxu0 0.0
        %5087 = vmatprep.subr.mxu0 0.0
        %5088 = vmatpush1.msra.mxu0 0.0
        %5089 = vmatprep.subr.mxu0 0.0
        %5090 = vmatpush1.msra.mxu0 0.0
        %5091 = vmatprep.subr.mxu0 0.0
        %5092 = vmatpush1.msra.mxu0 0.0
        %5093 = vmatprep.mubr.f32.mxu0 0.0
        %5094 = vmatmul.mubr.f32.gmra.mrb[0].mxu0 %v5024
        %v5095 = vpop.f32.mrb[0].mxu0
        %v5096 = vadd.f32 0.0, %v5095
        %v5097 = vpop.f32.mrb[0].mxu0
        %5098 = vmatprep.mubr.f32.mxu0 0.0
        %5099 = vmatmul.mubr.f32.gmra.mrb[0].mxu0 %v5027
        %v5100 = vpop.f32.mrb[0].mxu0
        %v5101 = vadd.f32 0.0, %v5100
        %v5102 = vpop.f32.mrb[0].mxu0
        %5103 = vdwg.mxu0
        %v5104 = vadd.f32 %v5021, %v5096
        %v5105 = vadd.f32 %v5022, %v5101
        %v5106 = vmax.f32 %v4409, %v5104
        %v5107 = vmax.f32 %v4410, %v5105
        %v5108 = vld [vmem:[#allocation10] sm:$0x1]
        %v5110 = vlaneseq
        %v5111 = vshrl.u32 %v5110, 7
        %v5112 = vsub.s32 0, %v5111
        %v5113 = vrot.slane %v5108, %v5112
        %v5115 = vadd.f32 %v5106, %v5113
        %v5116 = vadd.f32 %v5107, %v5113
        %v5117 = vmax.f32 %v5115, 0.0
        %v5118 = vmax.f32 %v5116, 0.0
        %v5119 = vld [vmem:[#allocation11] sm:$0xff]
        %v5120 = vld [vmem:[#allocation11 + $0x8] sm:$0xff]
        %v5121 = vld [vmem:[#allocation11 + $0x10] sm:$0xff]
        %v5122 = vld [vmem:[#allocation11 + $0x18] sm:$0xff]
        %v5123 = vld [vmem:[#allocation13] sm:$0x3]
        %v5125 = vlaneseq
        %v5126 = vshrl.u32 %v5125, 7
        %v5127 = vsub.s32 0, %v5126
        %v5128 = vrot.slane %v5123, %v5127
        %v5129 = vlaneseq
        %v5130 = vshrl.u32 %v5129, 7
        %v5131 = vsub.s32 1, %v5130
        %v5132 = vrot.slane %v5123, %v5131
        %vm5135 = vcmask 130048
        %v5137 = vsel %vm5135, %v5117, 0
        %v5140 = vsel %vm5135, %v5118, 0
        %5142 = vmatprep.subr.mxu0 %v5120
        %5143 = vmatpush1.msra.mxu0 %v5119
        %5144 = vmatprep.subr.mxu0 %v5122
        %5145 = vmatpush1.msra.mxu0 %v5121
        %5146 = vmatprep.subr.mxu0 0.0
        %5147 = vmatpush1.msra.mxu0 0.0
        %5148 = vmatprep.subr.mxu0 0.0
        %5149 = vmatpush1.msra.mxu0 0.0
        %5150 = vmatprep.subr.mxu0 0.0
        %5151 = vmatpush1.msra.mxu0 0.0
        %5152 = vmatprep.subr.mxu0 0.0
        %5153 = vmatpush1.msra.mxu0 0.0
        %5154 = vmatprep.subr.mxu0 0.0
        %5155 = vmatpush1.msra.mxu0 0.0
        %5156 = vmatprep.subr.mxu0 0.0
        %5157 = vmatpush1.msra.mxu0 0.0
        %5158 = vmatprep.subr.mxu0 0.0
        %5159 = vmatpush1.msra.mxu0 0.0
        %5160 = vmatprep.subr.mxu0 0.0
        %5161 = vmatpush1.msra.mxu0 0.0
        %5162 = vmatprep.subr.mxu0 0.0
        %5163 = vmatpush1.msra.mxu0 0.0
        %5164 = vmatprep.subr.mxu0 0.0
        %5165 = vmatpush1.msra.mxu0 0.0
        %5166 = vmatprep.subr.mxu0 0.0
        %5167 = vmatpush1.msra.mxu0 0.0
        %5168 = vmatprep.subr.mxu0 0.0
        %5169 = vmatpush1.msra.mxu0 0.0
        %5170 = vmatprep.subr.mxu0 0.0
        %5171 = vmatpush1.msra.mxu0 0.0
        %5172 = vmatprep.subr.mxu0 0.0
        %5173 = vmatpush1.msra.mxu0 0.0
        %5174 = vmatprep.subr.mxu0 0.0
        %5175 = vmatpush1.msra.mxu0 0.0
        %5176 = vmatprep.subr.mxu0 0.0
        %5177 = vmatpush1.msra.mxu0 0.0
        %5178 = vmatprep.subr.mxu0 0.0
        %5179 = vmatpush1.msra.mxu0 0.0
        %5180 = vmatprep.subr.mxu0 0.0
        %5181 = vmatpush1.msra.mxu0 0.0
        %5182 = vmatprep.subr.mxu0 0.0
        %5183 = vmatpush1.msra.mxu0 0.0
        %5184 = vmatprep.subr.mxu0 0.0
        %5185 = vmatpush1.msra.mxu0 0.0
        %5186 = vmatprep.subr.mxu0 0.0
        %5187 = vmatpush1.msra.mxu0 0.0
        %5188 = vmatprep.subr.mxu0 0.0
        %5189 = vmatpush1.msra.mxu0 0.0
        %5190 = vmatprep.subr.mxu0 0.0
        %5191 = vmatpush1.msra.mxu0 0.0
        %5192 = vmatprep.subr.mxu0 0.0
        %5193 = vmatpush1.msra.mxu0 0.0
        %5194 = vmatprep.subr.mxu0 0.0
        %5195 = vmatpush1.msra.mxu0 0.0
        %5196 = vmatprep.subr.mxu0 0.0
        %5197 = vmatpush1.msra.mxu0 0.0
        %5198 = vmatprep.subr.mxu0 0.0
        %5199 = vmatpush1.msra.mxu0 0.0
        %5200 = vmatprep.subr.mxu0 0.0
        %5201 = vmatpush1.msra.mxu0 0.0
        %5202 = vmatprep.subr.mxu0 0.0
        %5203 = vmatpush1.msra.mxu0 0.0
        %5204 = vmatprep.subr.mxu0 0.0
        %5205 = vmatpush1.msra.mxu0 0.0
        %5206 = vmatprep.mubr.f32.mxu0 0.0
        %5207 = vmatmul.mubr.f32.gmra.mrb[0].mxu0 %v5137
        %v5208 = vpop.f32.mrb[0].mxu0
        %v5209 = vadd.f32 %v5128, %v5208
        %v5210 = vpop.f32.mrb[0].mxu0
        %v5211 = vadd.f32 %v5132, %v5210
        %5212 = vmatprep.mubr.f32.mxu0 0.0
        %5213 = vmatmul.mubr.f32.gmra.mrb[0].mxu0 %v5140
        %v5214 = vpop.f32.mrb[0].mxu0
        %v5215 = vadd.f32 %v5128, %v5214
        %v5216 = vpop.f32.mrb[0].mxu0
        %v5217 = vadd.f32 %v5132, %v5216
        %5218 = vdwg.mxu0
        %v5219 = vmax.f32 %v5209, 0.0
        %v5220 = vmax.f32 %v5211, 0.0
        %v5221 = vmax.f32 %v5215, 0.0
        %v5222 = vmax.f32 %v5217, 0.0
        %v5223 = vld [vmem:[#allocation14] sm:$0xff]
        %v5224 = vld [vmem:[#allocation14 + $0x8] sm:$0xff]
        %v5225 = vld [vmem:[#allocation14 + $0x10] sm:$0xff]
        %v5226 = vld [vmem:[#allocation14 + $0x18] sm:$0xff]
        %v5227 = vld [vmem:[#allocation14 + $0x20] sm:$0xff]
        %v5228 = vld [vmem:[#allocation14 + $0x28] sm:$0xff]
        %v5229 = vld [vmem:[#allocation14 + $0x30] sm:$0xff]
        %v5230 = vld [vmem:[#allocation14 + $0x38] sm:$0xff]
        %v5231 = vld [vmem:[#allocation14 + $0x40] sm:$0xff]
        %v5232 = vld [vmem:[#allocation14 + $0x48] sm:$0xff]
        %v5233 = vld [vmem:[#allocation14 + $0x50] sm:$0xff]
        %v5234 = vld [vmem:[#allocation14 + $0x58] sm:$0xff]
        %v5235 = vld [vmem:[#allocation14 + $0x60] sm:$0xff]
        %v5236 = vld [vmem:[#allocation14 + $0x68] sm:$0xff]
        %v5237 = vld [vmem:[#allocation14 + $0x70] sm:$0xff]
        %v5238 = vld [vmem:[#allocation14 + $0x78] sm:$0xff]
        %v5239 = vld [vmem:[#allocation14 + $0x80] sm:$0xff]
        %v5240 = vld [vmem:[#allocation14 + $0x88] sm:$0xff]
        %v5241 = vld [vmem:[#allocation14 + $0x90] sm:$0xff]
        %v5242 = vld [vmem:[#allocation14 + $0x98] sm:$0xff]
        %v5243 = vld [vmem:[#allocation14 + $0xa0] sm:$0xff]
        %v5244 = vld [vmem:[#allocation14 + $0xa8] sm:$0xff]
        %v5245 = vld [vmem:[#allocation14 + $0xb0] sm:$0xff]
        %v5246 = vld [vmem:[#allocation14 + $0xb8] sm:$0xff]
        %v5247 = vld [vmem:[#allocation14 + $0xc0] sm:$0xff]
        %v5248 = vld [vmem:[#allocation14 + $0xc8] sm:$0xff]
        %v5249 = vld [vmem:[#allocation14 + $0xd0] sm:$0xff]
        %v5250 = vld [vmem:[#allocation14 + $0xd8] sm:$0xff]
        %v5251 = vld [vmem:[#allocation14 + $0xe0] sm:$0xff]
        %v5252 = vld [vmem:[#allocation14 + $0xe8] sm:$0xff]
        %v5253 = vld [vmem:[#allocation14 + $0xf0] sm:$0xff]
        %v5254 = vld [vmem:[#allocation14 + $0xf8] sm:$0xff]
        %v5255 = vld [vmem:[#allocation16] sm:$0x1]
        %v5257 = vlaneseq
        %v5258 = vshrl.u32 %v5257, 7
        %v5259 = vsub.s32 0, %v5258
        %v5260 = vrot.slane %v5255, %v5259
        %5262 = vmatprep.subr.mxu0 0.0
        %5263 = vmatpush1.msra.mxu0 %v5223
        %5264 = vmatprep.subr.mxu0 0.0
        %5265 = vmatpush1.msra.mxu0 %v5224
        %5266 = vmatprep.subr.mxu0 0.0
        %5267 = vmatpush1.msra.mxu0 %v5225
        %5268 = vmatprep.subr.mxu0 0.0
        %5269 = vmatpush1.msra.mxu0 %v5226
        %5270 = vmatprep.subr.mxu0 0.0
        %5271 = vmatpush1.msra.mxu0 %v5227
        %5272 = vmatprep.subr.mxu0 0.0
        %5273 = vmatpush1.msra.mxu0 %v5228
        %5274 = vmatprep.subr.mxu0 0.0
        %5275 = vmatpush1.msra.mxu0 %v5229
        %5276 = vmatprep.subr.mxu0 0.0
        %5277 = vmatpush1.msra.mxu0 %v5230
        %5278 = vmatprep.subr.mxu0 0.0
        %5279 = vmatpush1.msra.mxu0 %v5231
        %5280 = vmatprep.subr.mxu0 0.0
        %5281 = vmatpush1.msra.mxu0 %v5232
        %5282 = vmatprep.subr.mxu0 0.0
        %5283 = vmatpush1.msra.mxu0 %v5233
        %5284 = vmatprep.subr.mxu0 0.0
        %5285 = vmatpush1.msra.mxu0 %v5234
        %5286 = vmatprep.subr.mxu0 0.0
        %5287 = vmatpush1.msra.mxu0 %v5235
        %5288 = vmatprep.subr.mxu0 0.0
        %5289 = vmatpush1.msra.mxu0 %v5236
        %5290 = vmatprep.subr.mxu0 0.0
        %5291 = vmatpush1.msra.mxu0 %v5237
        %5292 = vmatprep.subr.mxu0 0.0
        %5293 = vmatpush1.msra.mxu0 %v5238
        %5294 = vmatprep.subr.mxu0 0.0
        %5295 = vmatpush1.msra.mxu0 %v5239
        %5296 = vmatprep.subr.mxu0 0.0
        %5297 = vmatpush1.msra.mxu0 %v5240
        %5298 = vmatprep.subr.mxu0 0.0
        %5299 = vmatpush1.msra.mxu0 %v5241
        %5300 = vmatprep.subr.mxu0 0.0
        %5301 = vmatpush1.msra.mxu0 %v5242
        %5302 = vmatprep.subr.mxu0 0.0
        %5303 = vmatpush1.msra.mxu0 %v5243
        %5304 = vmatprep.subr.mxu0 0.0
        %5305 = vmatpush1.msra.mxu0 %v5244
        %5306 = vmatprep.subr.mxu0 0.0
        %5307 = vmatpush1.msra.mxu0 %v5245
        %5308 = vmatprep.subr.mxu0 0.0
        %5309 = vmatpush1.msra.mxu0 %v5246
        %5310 = vmatprep.subr.mxu0 0.0
        %5311 = vmatpush1.msra.mxu0 %v5247
        %5312 = vmatprep.subr.mxu0 0.0
        %5313 = vmatpush1.msra.mxu0 %v5248
        %5314 = vmatprep.subr.mxu0 0.0
        %5315 = vmatpush1.msra.mxu0 %v5249
        %5316 = vmatprep.subr.mxu0 0.0
        %5317 = vmatpush1.msra.mxu0 %v5250
        %5318 = vmatprep.subr.mxu0 0.0
        %5319 = vmatpush1.msra.mxu0 %v5251
        %5320 = vmatprep.subr.mxu0 0.0
        %5321 = vmatpush1.msra.mxu0 %v5252
        %5322 = vmatprep.subr.mxu0 0.0
        %5323 = vmatpush1.msra.mxu0 %v5253
        %5324 = vmatprep.subr.mxu0 0.0
        %5325 = vmatpush1.msra.mxu0 %v5254
        %5326 = vmatprep.mubr.f32.mxu0 %v5220
        %5327 = vmatmul.mubr.f32.gmra.mrb[0].mxu0 %v5219
        %v5328 = vpop.f32.mrb[0].mxu0
        %v5329 = vadd.f32 %v5260, %v5328
        %v5330 = vpop.f32.mrb[0].mxu0
        %5331 = vmatprep.mubr.f32.mxu0 %v5222
        %5332 = vmatmul.mubr.f32.gmra.mrb[0].mxu0 %v5221
        %v5333 = vpop.f32.mrb[0].mxu0
        %v5334 = vadd.f32 %v5260, %v5333
        %v5335 = vpop.f32.mrb[0].mxu0
        %5336 = vdwg.mxu0
        %v5337 = vmax.f32 %v5329, 0.0
        %v5338 = vmax.f32 %v5334, 0.0
        %v5339 = vld [vmem:[#allocation17] sm:$0xff]
        %v5340 = vld [vmem:[#allocation17 + $0x8] sm:$0xff]
        %v5341 = vld [vmem:[#allocation17 + $0x10] sm:$0xff]
        %v5342 = vld [vmem:[#allocation17 + $0x18] sm:$0xff]
        %v5343 = vld [vmem:[#allocation17 + $0x20] sm:$0xff]
        %v5344 = vld [vmem:[#allocation17 + $0x28] sm:$0xff]
        %v5345 = vld [vmem:[#allocation17 + $0x30] sm:$0xff]
        %v5346 = vld [vmem:[#allocation17 + $0x38] sm:$0xff]
        %v5347 = vld [vmem:[#allocation17 + $0x40] sm:$0xff]
        %v5348 = vld [vmem:[#allocation17 + $0x48] sm:$0xff]
        %v5349 = vld [vmem:[#allocation17 + $0x50] sm:$0xff]
        %v5350 = vld [vmem:[#allocation17 + $0x58] sm:$0xff]
        %v5351 = vld [vmem:[#allocation17 + $0x60] sm:$0xff]
        %v5352 = vld [vmem:[#allocation17 + $0x68] sm:$0xff]
        %v5353 = vld [vmem:[#allocation17 + $0x70] sm:$0xff]
        %v5354 = vld [vmem:[#allocation17 + $0x78] sm:$0xff]
        %v5355 = vld [vmem:[#allocation17 + $0x80] sm:$0xff]
        %v5356 = vld [vmem:[#allocation17 + $0x88] sm:$0xff]
        %v5357 = vld [vmem:[#allocation17 + $0x90] sm:$0xff]
        %v5358 = vld [vmem:[#allocation17 + $0x98] sm:$0xff]
        %v5359 = vld [vmem:[#allocation17 + $0xa0] sm:$0xff]
        %v5360 = vld [vmem:[#allocation17 + $0xa8] sm:$0xff]
        %v5361 = vld [vmem:[#allocation17 + $0xb0] sm:$0xff]
        %v5362 = vld [vmem:[#allocation17 + $0xb8] sm:$0xff]
        %v5363 = vld [vmem:[#allocation17 + $0xc0] sm:$0xff]
        %v5364 = vld [vmem:[#allocation17 + $0xc8] sm:$0xff]
        %v5365 = vld [vmem:[#allocation17 + $0xd0] sm:$0xff]
        %v5366 = vld [vmem:[#allocation17 + $0xd8] sm:$0xff]
        %v5367 = vld [vmem:[#allocation17 + $0xe0] sm:$0xff]
        %v5368 = vld [vmem:[#allocation17 + $0xe8] sm:$0xff]
        %v5369 = vld [vmem:[#allocation17 + $0xf0] sm:$0xff]
        %v5370 = vld [vmem:[#allocation17 + $0xf8] sm:$0xff]
        %v5371 = vld [vmem:[#allocation19] sm:$0x3]
        %v5373 = vlaneseq
        %v5374 = vshrl.u32 %v5373, 7
        %v5375 = vsub.s32 0, %v5374
        %v5376 = vrot.slane %v5371, %v5375
        %v5377 = vlaneseq
        %v5378 = vshrl.u32 %v5377, 7
        %v5379 = vsub.s32 1, %v5378
        %v5380 = vrot.slane %v5371, %v5379
        %5383 = vmatprep.subr.mxu0 %v5340
        %5384 = vmatpush1.msra.mxu0 %v5339
        %5385 = vmatprep.subr.mxu0 %v5342
        %5386 = vmatpush1.msra.mxu0 %v5341
        %5387 = vmatprep.subr.mxu0 %v5344
        %5388 = vmatpush1.msra.mxu0 %v5343
        %5389 = vmatprep.subr.mxu0 %v5346
        %5390 = vmatpush1.msra.mxu0 %v5345
        %5391 = vmatprep.subr.mxu0 %v5348
        %5392 = vmatpush1.msra.mxu0 %v5347
        %5393 = vmatprep.subr.mxu0 %v5350
        %5394 = vmatpush1.msra.mxu0 %v5349
        %5395 = vmatprep.subr.mxu0 %v5352
        %5396 = vmatpush1.msra.mxu0 %v5351
        %5397 = vmatprep.subr.mxu0 %v5354
        %5398 = vmatpush1.msra.mxu0 %v5353
        %5399 = vmatprep.subr.mxu0 %v5356
        %5400 = vmatpush1.msra.mxu0 %v5355
        %5401 = vmatprep.subr.mxu0 %v5358
        %5402 = vmatpush1.msra.mxu0 %v5357
        %5403 = vmatprep.subr.mxu0 %v5360
        %5404 = vmatpush1.msra.mxu0 %v5359
        %5405 = vmatprep.subr.mxu0 %v5362
        %5406 = vmatpush1.msra.mxu0 %v5361
        %5407 = vmatprep.subr.mxu0 %v5364
        %5408 = vmatpush1.msra.mxu0 %v5363
        %5409 = vmatprep.subr.mxu0 %v5366
        %5410 = vmatpush1.msra.mxu0 %v5365
        %5411 = vmatprep.subr.mxu0 %v5368
        %5412 = vmatpush1.msra.mxu0 %v5367
        %5413 = vmatprep.subr.mxu0 %v5370
        %5414 = vmatpush1.msra.mxu0 %v5369
        %5415 = vmatprep.subr.mxu0 0.0
        %5416 = vmatpush1.msra.mxu0 0.0
        %5417 = vmatprep.subr.mxu0 0.0
        %5418 = vmatpush1.msra.mxu0 0.0
        %5419 = vmatprep.subr.mxu0 0.0
        %5420 = vmatpush1.msra.mxu0 0.0
        %5421 = vmatprep.subr.mxu0 0.0
        %5422 = vmatpush1.msra.mxu0 0.0
        %5423 = vmatprep.subr.mxu0 0.0
        %5424 = vmatpush1.msra.mxu0 0.0
        %5425 = vmatprep.subr.mxu0 0.0
        %5426 = vmatpush1.msra.mxu0 0.0
        %5427 = vmatprep.subr.mxu0 0.0
        %5428 = vmatpush1.msra.mxu0 0.0
        %5429 = vmatprep.subr.mxu0 0.0
        %5430 = vmatpush1.msra.mxu0 0.0
        %5431 = vmatprep.subr.mxu0 0.0
        %5432 = vmatpush1.msra.mxu0 0.0
        %5433 = vmatprep.subr.mxu0 0.0
        %5434 = vmatpush1.msra.mxu0 0.0
        %5435 = vmatprep.subr.mxu0 0.0
        %5436 = vmatpush1.msra.mxu0 0.0
        %5437 = vmatprep.subr.mxu0 0.0
        %5438 = vmatpush1.msra.mxu0 0.0
        %5439 = vmatprep.subr.mxu0 0.0
        %5440 = vmatpush1.msra.mxu0 0.0
        %5441 = vmatprep.subr.mxu0 0.0
        %5442 = vmatpush1.msra.mxu0 0.0
        %5443 = vmatprep.subr.mxu0 0.0
        %5444 = vmatpush1.msra.mxu0 0.0
        %5445 = vmatprep.subr.mxu0 0.0
        %5446 = vmatpush1.msra.mxu0 0.0
        %5447 = vmatprep.mubr.f32.mxu0 0.0
        %5448 = vmatmul.mubr.f32.gmra.mrb[0].mxu0 %v5337
        %v5449 = vpop.f32.mrb[0].mxu0
        %v5450 = vadd.f32 %v5376, %v5449
        %v5451 = vpop.f32.mrb[0].mxu0
        %v5452 = vadd.f32 %v5380, %v5451
        %5453 = vmatprep.mubr.f32.mxu0 0.0
        %5454 = vmatmul.mubr.f32.gmra.mrb[0].mxu0 %v5338
        %v5455 = vpop.f32.mrb[0].mxu0
        %v5456 = vadd.f32 %v5376, %v5455
        %v5457 = vpop.f32.mrb[0].mxu0
        %v5458 = vadd.f32 %v5380, %v5457
        %5459 = vdwg.mxu0
        %v5460 = vtanh.pop %v5450
        %v5461 = vtanh.pop %v5452
        %v5462 = vtanh.pop %v5456
        %v5463 = vtanh.pop %v5458
        %5464 = vst [vmem:[%s565] sm:$0xff] %v5460
        %5465 = vst [vmem:[%s565 + $0x8] sm:$0xff] %v5461
        %5466 = vst [vmem:[%s565 + $0x10] sm:$0xff] %v5462
        %5467 = vst [vmem:[%s565 + $0x18] sm:$0xff] %v5463
        %s5468 = sand.u32 %s277, 1
        %s5469 = scalar_lea.sflag [#allocation4], %s5468
        %s5470 = sand.u32 %s277, 1
        %s5471 = smul.addr %s5470, 32
        %s5472 = scalar_lea.vmem [#allocation20], %s5471
        // Predicated region
        $region109: #{forward_pallas.1} parent=63 // pred_check
          %p5473 = pneg %p287
        $region110: #{forward_pallas.1} parent=63 // pred_check_branch
          %5475 = sbr.rel (%p5473) target = $region112
        $region111: #{forward_pallas.1} parent=63 // pred_region
          %s5476 = smul.u32 2, %s33
          %s5478 = ssub.s32 512, 512
          %5479 = vsyncadd %s5469, %s5478
          %s5480 = smul.addr %s5476, 2
          %s5481 = smul.addr %s5480, 128
          %s5482 = scalar_lea.hbm %s11, %s5481
          %s5483 = sshll.u32 %s5472, 4
          %s5484 = int_to_ptr.vmem [resolvable:$true] %s5483
          %5489 = dma.vmem_to_hbm [thread:$0]  %s5484, 512, %s5482, %s5469, 256, 256, 16
        $region112: #{forward_pallas.1} parent=63 // pred_fallthru
          _
      $region64: #{forward_pallas.1} parent=5 // pred_fallthru
        _
      %p5490 = scmp.le.s32.totalorder 2, %s28
      // Predicated region
      $region113: #{forward_pallas.1} parent=5 // pred_check
        %p5491 = pneg %p5490
      $region114: #{forward_pallas.1} parent=5 // pred_check_branch
        %5493 = sbr.rel (%p5491) target = $region116
      $region115: #{forward_pallas.1} parent=5 // pred_region
        %s5494 = ssub.s32 %s28, 2
        // Predicated region
        $region117: #{forward_pallas.1} parent=115 // pred_check
          %p5495 = pneg %p293
        $region118: #{forward_pallas.1} parent=115 // pred_check_branch
          %5497 = sbr.rel (%p5495) target = $region120
        $region119: #{forward_pallas.1} parent=115 // pred_region
          %s5498 = sand.u32 %s278, 1
          %s5499 = scalar_lea.sflag [#allocation4], %s5498
          %s5500 = sand.u32 %s278, 1
          %s5501 = smul.addr %s5500, 32
          %s5502 = scalar_lea.vmem [#allocation20], %s5501
          %5503 = dma.done %s5499, 512
        $region120: #{forward_pallas.1} parent=115 // pred_fallthru
          _
      $region116: #{forward_pallas.1} parent=5 // pred_fallthru
        _
    $region6: #{forward_pallas.1} parent=1 // loop_footer
      %s32 = sadd.s32 1, %s28
    $region7: #{forward_pallas.1} parent=1 // loop_footer_branch
      %27 = sbr.rel target = $region3
    $region8: #{forward_pallas.1} parent=1 // loop_exit
      _
    %5504 = vsyncpa [#allocation3], 1
    %s5505 = scalar_lea.sflag [#allocation3], 1
    %5506 = vsyncpa %s5505, 1
    %5507 = vsyncpa [#allocation6], 1
    %5508 = vsyncpa [#allocation9], 1
    %5509 = vsyncpa [#allocation12], 1
    %5510 = vsyncpa [#allocation15], 1
    %5511 = vsyncpa [#allocation18], 1
    %5512 = vsyncpa [#allocation4], 1
    %s5513 = scalar_lea.sflag [#allocation4], 1
    %5514 = vsyncpa %s5513, 1

</llo_original>
